<compile_context>
chip_gen: v5e
topology: v5e:2x2
jax: 0.10.0
libtpu: 0.0.40
codegen_flags: <defaults>
</compile_context>

<pallas_src>
import jax
import jax.numpy as jnp
from jax import lax
from jax.experimental import pallas as pl
from jax.experimental.pallas import tpu as pltpu


def _round_up(x, m):
    return (x + m - 1) // m * m


def _make_supcon_kernel(*, use_groups, block_m, block_n, n_valid,
                        inv_temp, loss_scale):
    """Build the tiled online-LSE SupCon kernel body."""

    def kernel(*refs):
        if use_groups:
            (grp_row_ref, grp_col_ref, fa_ref, fc_ref,
             out_ref, m_sc, l_sc, s_sc, p_sc) = refs
        else:
            (mask_ref, fa_ref, fc_ref,
             out_ref, m_sc, l_sc, s_sc, p_sc) = refs

        i = pl.program_id(0)
        j = pl.program_id(1)
        nj = pl.num_programs(1)

        # ---- init per-row-tile accumulators at the first column tile ------
        @pl.when(j == 0)
        def _():
            m_sc[...] = jnp.full(m_sc.shape, -jnp.inf, dtype=jnp.float32)
            l_sc[...] = jnp.zeros(l_sc.shape, dtype=jnp.float32)
            s_sc[...] = jnp.zeros(s_sc.shape, dtype=jnp.float32)
            p_sc[...] = jnp.zeros(p_sc.shape, dtype=jnp.float32)

        # ---- scaled similarity tile: (anchor / T) @ contrast^T on the MXU -
        fa = fa_ref[...]
        fa = fa * jnp.asarray(inv_temp, dtype=fa.dtype)   # fold 1/T into [tm, D]
        adc = lax.dot_general(                            # no explicit transpose
            fa, fc_ref[...],
            dimension_numbers=(((1,), (1,)), ((), ())),
            preferred_element_type=jnp.float32)           # (tm, tn) f32

        # ---- rebuild masks in-kernel (no [N,N] arrays shipped from HBM) ----
        row_ids = i * block_m + lax.broadcasted_iota(jnp.int32, (block_m, 1), 0)
        col_ids = j * block_n + lax.broadcasted_iota(jnp.int32, (1, block_n), 1)
        not_diag = row_ids != col_ids            # (tm, tn): logits_mask
        valid_col = col_ids < n_valid            # (1, tn): drop padding columns
        lmask = jnp.logical_and(not_diag, valid_col)

        if use_groups:
            same = grp_row_ref[...] == grp_col_ref[...]            # (tm, tn)
            w = jnp.where(jnp.logical_and(same, lmask), 1.0, 0.0)  # positives
        else:
            w = mask_ref[...] * lmask.astype(jnp.float32)

        # ---- online log-sum-exp across column tiles ------------------------
        adc_for_max = jnp.where(valid_col, adc, -jnp.inf)
        m_prev = m_sc[...]
        m_new = jnp.maximum(m_prev, jnp.max(adc_for_max, axis=1, keepdims=True))
        alpha = jnp.exp(m_prev - m_new)

        e = jnp.where(lmask, jnp.exp(adc - m_new), 0.0)
        l_sc[...] = l_sc[...] * alpha + jnp.sum(e, axis=1, keepdims=True)
        s_sc[...] = s_sc[...] + jnp.sum(w * adc, axis=1, keepdims=True)
        p_sc[...] = p_sc[...] + jnp.sum(w, axis=1, keepdims=True)
        m_sc[...] = m_new

        # ---- finalize: per-anchor loss for this row tile --------------------
        @pl.when(j == nj - 1)
        def _():
            # mean_log_prob_pos = sum(mask*adc)/sum(mask) - row_max - log(sum exp)
            # NOTE: rows with zero positives yield NaN, matching the original
            # PyTorch module's 0/0 behavior.
            inv_p = pl.reciprocal(p_sc[...], approx=True)
            mlpp = s_sc[...] * inv_p - m_sc[...] - jnp.log(l_sc[...])
            out_ref[...] = loss_scale * mlpp            # (tm, 1)

    return kernel


def supcon_loss(features, labels=None, mask=None, *, temperature=0.07,
                contrast_mode='all', base_temperature=0.07,
                block_size=256, matmul_dtype=None):
    """JAX/Pallas port of SupConLoss.forward (contrast_mode='all')."""
    if features.ndim < 3:
        raise ValueError('`features` needs to be [bsz, n_views, ...]')
    if features.ndim > 3:
        features = features.reshape(features.shape[0], features.shape[1], -1)
    B, V, D = features.shape

    if labels is not None and mask is not None:
        raise ValueError('Cannot define both `labels` and `mask`')
    if contrast_mode != 'all':
        # TODO(synk): contrast_mode='one' (single-anchor) variant not implemented.
        raise ValueError('Only contrast_mode="all" is implemented')

    use_groups = mask is None
    if use_groups:
        if labels is None:
            group = jnp.arange(B, dtype=jnp.int32)          # SimCLR: mask = eye(B)
        else:
            labels = jnp.asarray(labels).reshape(-1)
            if labels.shape[0] != B:
                raise ValueError('Num of labels does not match num of features')
            group = labels.astype(jnp.int32)
        group = jnp.tile(group, V)                          # view-major, length N
    else:
        mask = jnp.asarray(mask, dtype=jnp.float32)

    # contrast_feature = cat(unbind(features, dim=1), dim=0)  -> [N, D]
    cf = jnp.transpose(features, (1, 0, 2)).reshape(V * B, D)
    if matmul_dtype is not None:
        cf = cf.astype(matmul_dtype)    # e.g. bf16 for MXU-native matmul (f32 acc)
    N = V * B

    tm = tn = int(block_size)
    assert tm % 128 == 0, 'block_size must be a multiple of 128'
    n_pad = _round_up(N, tm)
    d_pad = _round_up(D, 128)           # lane/MXU-aligned contraction dim
    cf = jnp.pad(cf, ((0, n_pad - N), (0, d_pad - D)))
    grid = (n_pad // tm, n_pad // tn)

    kernel = _make_supcon_kernel(
        use_groups=use_groups, block_m=tm, block_n=tn, n_valid=N,
        inv_temp=1.0 / float(temperature),
        loss_scale=-float(temperature) / float(base_temperature))

    feat_row_spec = pl.BlockSpec((tm, d_pad), lambda i, j: (i, 0))
    feat_col_spec = pl.BlockSpec((tn, d_pad), lambda i, j: (j, 0))
    out_spec = pl.BlockSpec((tm, 1), lambda i, j: (i, 0))

    if use_groups:
        grp = jnp.pad(group, (0, n_pad - N))
        inputs = (grp.reshape(n_pad, 1), grp.reshape(1, n_pad), cf, cf)
        in_specs = [pl.BlockSpec((tm, 1), lambda i, j: (i, 0)),
                    pl.BlockSpec((1, tn), lambda i, j: (0, j)),
                    feat_row_spec, feat_col_spec]
    else:
        # Rare path (explicit user mask): stream the tiled [N,N] mask per block.
        mask_full = jnp.pad(jnp.tile(mask, (V, V)),
                            ((0, n_pad - N), (0, n_pad - N)))
        inputs = (mask_full, cf, cf)
        in_specs = [pl.BlockSpec((tm, tn), lambda i, j: (i, j)),
                    feat_row_spec, feat_col_spec]

    feat_bytes = int(cf.size) * cf.dtype.itemsize
    cost = pl.CostEstimate(
        flops=2 * n_pad * n_pad * d_pad,
        transcendentals=n_pad * n_pad,
        bytes_accessed=feat_bytes * (grid[0] + 1) + 8 * n_pad * 4)

    per_anchor = pl.pallas_call(
        kernel,
        out_shape=jax.ShapeDtypeStruct((n_pad, 1), jnp.float32),
        grid_spec=pltpu.PrefetchScalarGridSpec(
            num_scalar_prefetch=0, grid=grid,
            in_specs=in_specs, out_specs=out_spec,
            scratch_shapes=[pltpu.VMEM((tm, 1), jnp.float32)] * 4),
        compiler_params=pltpu.CompilerParams(
            dimension_semantics=("parallel", "arbitrary")),
        cost_estimate=cost,
    )(*inputs)

    # loss.view(anchor_count, batch_size).mean() == mean over all N anchors.
    return jnp.mean(per_anchor[:N, 0])


def _supcon_loss_ref(features, labels=None, *, temperature=0.07,
                     base_temperature=0.07):
    """Pure-JAX reference for correctness checking."""
    B, V, D = features.shape
    if labels is None:
        mask = jnp.eye(B, dtype=jnp.float32)
    else:
        labels = labels.reshape(-1, 1)
        mask = (labels == labels.T).astype(jnp.float32)
    cf = jnp.transpose(features, (1, 0, 2)).reshape(V * B, D).astype(jnp.float32)
    N = V * B
    adc = (cf @ cf.T) / temperature
    logits = adc - jnp.max(adc, axis=1, keepdims=True)
    mask_full = jnp.tile(mask, (V, V))
    lmask = 1.0 - jnp.eye(N, dtype=jnp.float32)
    mask_full = mask_full * lmask
    exp_logits = jnp.exp(logits) * lmask
    log_prob = logits - jnp.log(jnp.sum(exp_logits, axis=1, keepdims=True))
    mlpp = jnp.sum(mask_full * log_prob, axis=1) / jnp.sum(mask_full, axis=1)
    return jnp.mean(-(temperature / base_temperature) * mlpp)


if __name__ == "__main__":
    key = jax.random.PRNGKey(0)
    k1, k2, k3 = jax.random.split(key, 3)

    # ---- small case (single tile) ---------------------------------------
    B, V, D = 4, 2, 32
    feats = jax.random.normal(k1, (B, V, D), dtype=jnp.float32)
    feats = feats / jnp.linalg.norm(feats, axis=-1, keepdims=True)
    labels = jnp.array([0, 1, 0, 1], dtype=jnp.int32)

    loss = jax.block_until_ready(supcon_loss(feats, labels=labels))
    ref = _supcon_loss_ref(feats, labels=labels)
    assert jnp.allclose(loss, ref, rtol=2e-2, atol=2e-2), (loss, ref)

    # SimCLR path (labels=None, mask=None)
    loss_simclr = jax.block_until_ready(supcon_loss(feats))
    ref_simclr = _supcon_loss_ref(feats)
    assert jnp.allclose(loss_simclr, ref_simclr, rtol=2e-2, atol=2e-2), (
        loss_simclr, ref_simclr)

    # Explicit-mask path (equivalent mask; exercises the mask kernel variant)
    mask_arg = (labels.reshape(-1, 1) == labels.reshape(1, -1)).astype(jnp.float32)
    loss_mask = jax.block_until_ready(supcon_loss(feats, mask=mask_arg))
    assert jnp.allclose(loss_mask, ref, rtol=2e-2, atol=2e-2), (loss_mask, ref)

    # bf16-matmul path (MXU-native), looser tolerance
    loss_bf16 = jax.block_until_ready(
        supcon_loss(feats, labels=labels, matmul_dtype=jnp.bfloat16))
    assert jnp.allclose(loss_bf16, ref, rtol=5e-2, atol=5e-2), (loss_bf16, ref)

    # ---- multi-tile case: exercises 2-D grid, online LSE and padding -----
    B2, V2, D2 = 160, 2, 32       # N = 320 > 256 -> padded to 512, 2x2 grid
    feats2 = jax.random.normal(k2, (B2, V2, D2), dtype=jnp.float32)
    feats2 = feats2 / jnp.linalg.norm(feats2, axis=-1, keepdims=True)
    labels2 = jax.random.randint(k3, (B2,), 0, 10, dtype=jnp.int32)

    loss2 = jax.block_until_ready(supcon_loss(feats2, labels=labels2))
    ref2 = _supcon_loss_ref(feats2, labels=labels2)
    assert jnp.allclose(loss2, ref2, rtol=2e-2, atol=2e-2), (loss2, ref2)

    print("KERNEL_OK")
</pallas_src>

<mosaic_0001>
module attributes {stable_mosaic.version = 11 : i64} {
  func.func @kernel(%arg0: i32, %arg1: i32, %arg2: memref<256x1xi32, #tpu.memory_space<vmem>>, %arg3: memref<1x256xi32, #tpu.memory_space<vmem>>, %arg4: memref<256x128xf32, #tpu.memory_space<vmem>>, %arg5: memref<256x128xf32, #tpu.memory_space<vmem>>, %arg6: memref<256x1xf32, #tpu.memory_space<vmem>>, %arg7: memref<256x1xf32, #tpu.memory_space<vmem>>, %arg8: memref<256x1xf32, #tpu.memory_space<vmem>>, %arg9: memref<256x1xf32, #tpu.memory_space<vmem>>, %arg10: memref<256x1xf32, #tpu.memory_space<vmem>>) attributes {dimension_semantics = [#tpu.dimension_semantics<parallel>, #tpu.dimension_semantics<arbitrary>], iteration_bounds = array<i64: 1, 1>, scalar_prefetch = 0 : i64, scratch_operands = 4 : i64, tpu.core_type = #tpu.core_type<tc>, window_params = [{transform_indices = @transform_0, window_bounds = array<i64: 256, 1>}, {transform_indices = @transform_1, window_bounds = array<i64: 1, 256>}, {transform_indices = @transform_2, window_bounds = array<i64: 256, 128>}, {transform_indices = @transform_3, window_bounds = array<i64: 256, 128>}, {transform_indices = @transform_4, window_bounds = array<i64: 256, 1>}]} {
    %c0_i32 = arith.constant 0 : i32
    %0 = arith.cmpi eq, %arg1, %c0_i32 : i32
    %1 = arith.extui %0 : i1 to i32
    %c0_i32_0 = arith.constant 0 : i32
    %2 = arith.cmpi ne, %1, %c0_i32_0 : i32
    scf.if %2 {
      %cst_36 = arith.constant 0xFF800000 : f32
      %68 = vector.broadcast %cst_36 : f32 to vector<256x1xf32>
      %c0_37 = arith.constant 0 : index
      %c0_38 = arith.constant 0 : index
      %69 = vector.load %arg7[%c0_37, %c0_38] : memref<256x1xf32, #tpu.memory_space<vmem>>, vector<256x1xf32>
      tpu.vector_store %arg7[%c0_37, %c0_38], %68 {strides = array<i32>} : memref<256x1xf32, #tpu.memory_space<vmem>>, vector<256x1xf32>,
      %cst_39 = arith.constant 0.000000e+00 : f32
      %70 = vector.broadcast %cst_39 : f32 to vector<256x1xf32>
      %c0_40 = arith.constant 0 : index
      %c0_41 = arith.constant 0 : index
      %71 = vector.load %arg8[%c0_40, %c0_41] : memref<256x1xf32, #tpu.memory_space<vmem>>, vector<256x1xf32>
      tpu.vector_store %arg8[%c0_40, %c0_41], %70 {strides = array<i32>} : memref<256x1xf32, #tpu.memory_space<vmem>>, vector<256x1xf32>,
      %cst_42 = arith.constant 0.000000e+00 : f32
      %72 = vector.broadcast %cst_42 : f32 to vector<256x1xf32>
      %c0_43 = arith.constant 0 : index
      %c0_44 = arith.constant 0 : index
      %73 = vector.load %arg9[%c0_43, %c0_44] : memref<256x1xf32, #tpu.memory_space<vmem>>, vector<256x1xf32>
      tpu.vector_store %arg9[%c0_43, %c0_44], %72 {strides = array<i32>} : memref<256x1xf32, #tpu.memory_space<vmem>>, vector<256x1xf32>,
      %cst_45 = arith.constant 0.000000e+00 : f32
      %74 = vector.broadcast %cst_45 : f32 to vector<256x1xf32>
      %c0_46 = arith.constant 0 : index
      %c0_47 = arith.constant 0 : index
      %75 = vector.load %arg10[%c0_46, %c0_47] : memref<256x1xf32, #tpu.memory_space<vmem>>, vector<256x1xf32>
      tpu.vector_store %arg10[%c0_46, %c0_47], %74 {strides = array<i32>} : memref<256x1xf32, #tpu.memory_space<vmem>>, vector<256x1xf32>,
    } else {
    }
    %c0 = arith.constant 0 : index
    %c0_1 = arith.constant 0 : index
    %3 = vector.load %arg4[%c0, %c0_1] : memref<256x128xf32, #tpu.memory_space<vmem>>, vector<256x128xf32>
    %cst = arith.constant 14.2857141 : f32
    %4 = vector.broadcast %cst : f32 to vector<256x128xf32>
    %5 = arith.mulf %3, %4 : vector<256x128xf32>
    %c0_2 = arith.constant 0 : index
    %c0_3 = arith.constant 0 : index
    %6 = vector.load %arg5[%c0_2, %c0_3] : memref<256x128xf32, #tpu.memory_space<vmem>>, vector<256x128xf32>
    %cst_4 = arith.constant dense<0.000000e+00> : vector<256x256xf32>
    %7 = tpu.matmul %5, %6, %cst_4 {dimension_numbers = #tpu.dot_dimension_numbers<[1], [1], [0], [0], [0, 0, 1, 0], [], []>} : vector<256x128xf32>, vector<256x128xf32>, vector<256x256xf32> -> vector<256x256xf32>
    %c256_i32 = arith.constant 256 : i32
    %8 = arith.muli %arg0, %c256_i32 : i32
    %9 = tpu.iota {dimensions = array<i32: 0>} : vector<256x1xi32>
    %10 = vector.broadcast %8 : i32 to vector<256x1xi32>
    %11 = arith.addi %10, %9 : vector<256x1xi32>
    %c256_i32_5 = arith.constant 256 : i32
    %12 = arith.muli %arg1, %c256_i32_5 : i32
    %13 = tpu.iota {dimensions = array<i32: 1>} : vector<1x256xi32>
    %14 = vector.broadcast %12 : i32 to vector<1x256xi32>
    %15 = arith.addi %14, %13 : vector<1x256xi32>
    %16 = vector.broadcast %11 : vector<256x1xi32> to vector<256x256xi32>
    %17 = vector.broadcast %15 : vector<1x256xi32> to vector<256x256xi32>
    %18 = arith.cmpi ne, %16, %17 : vector<256x256xi32>
    %c8_i32 = arith.constant 8 : i32
    %19 = vector.broadcast %c8_i32 : i32 to vector<1x256xi32>
    %20 = arith.cmpi slt, %15, %19 : vector<1x256xi32>
    %21 = vector.broadcast %20 : vector<1x256xi1> to vector<256x256xi1>
    %22 = arith.andi %18, %21 : vector<256x256xi1>
    %c0_6 = arith.constant 0 : index
    %c0_7 = arith.constant 0 : index
    %23 = vector.load %arg2[%c0_6, %c0_7] : memref<256x1xi32, #tpu.memory_space<vmem>>, vector<256x1xi32>
    %c0_8 = arith.constant 0 : index
    %c0_9 = arith.constant 0 : index
    %24 = vector.load %arg3[%c0_8, %c0_9] : memref<1x256xi32, #tpu.memory_space<vmem>>, vector<1x256xi32>
    %25 = vector.broadcast %23 : vector<256x1xi32> to vector<256x256xi32>
    %26 = vector.broadcast %24 : vector<1x256xi32> to vector<256x256xi32>
    %27 = arith.cmpi eq, %25, %26 : vector<256x256xi32>
    %28 = arith.andi %27, %22 : vector<256x256xi1>
    %cst_10 = arith.constant 1.000000e+00 : f32
    %cst_11 = arith.constant 0.000000e+00 : f32
    %29 = vector.broadcast %cst_10 : f32 to vector<256x256xf32>
    %30 = vector.broadcast %cst_11 : f32 to vector<256x256xf32>
    %31 = arith.select %28, %29, %30 : vector<256x256xi1>, vector<256x256xf32>
    %cst_12 = arith.constant 0xFF800000 : f32
    %32 = vector.shape_cast %20 : vector<1x256xi1> to vector<1x256xi1>
    %33 = vector.broadcast %32 : vector<1x256xi1> to vector<256x256xi1>
    %34 = vector.broadcast %cst_12 : f32 to vector<256x256xf32>
    %35 = arith.select %33, %7, %34 : vector<256x256xi1>, vector<256x256xf32>
    %c0_13 = arith.constant 0 : index
    %c0_14 = arith.constant 0 : index
    %36 = vector.load %arg7[%c0_13, %c0_14] : memref<256x1xf32, #tpu.memory_space<vmem>>, vector<256x1xf32>
    %cst_15 = arith.constant dense<0xFF800000> : vector<256xf32>
    %37 = vector.multi_reduction <maximumf>, %35, %cst_15 [1] : vector<256x256xf32> to vector<256xf32>
    %38 = vector.shape_cast %37 : vector<256xf32> to vector<256x1xf32>
    %39 = arith.maximumf %36, %38 : vector<256x1xf32>
    %40 = arith.subf %36, %39 : vector<256x1xf32>
    %41 = math.exp %40 : vector<256x1xf32>
    %42 = vector.broadcast %39 : vector<256x1xf32> to vector<256x256xf32>
    %43 = arith.subf %7, %42 : vector<256x256xf32>
    %44 = math.exp %43 : vector<256x256xf32>
    %cst_16 = arith.constant 0.000000e+00 : f32
    %45 = vector.broadcast %cst_16 : f32 to vector<256x256xf32>
    %46 = arith.select %22, %44, %45 : vector<256x256xi1>, vector<256x256xf32>
    %c0_17 = arith.constant 0 : index
    %c0_18 = arith.constant 0 : index
    %47 = vector.load %arg8[%c0_17, %c0_18] : memref<256x1xf32, #tpu.memory_space<vmem>>, vector<256x1xf32>
    %48 = arith.mulf %47, %41 : vector<256x1xf32>
    %cst_19 = arith.constant dense<0.000000e+00> : vector<256xf32>
    %49 = vector.multi_reduction <add>, %46, %cst_19 [1] : vector<256x256xf32> to vector<256xf32>
    %50 = vector.shape_cast %49 : vector<256xf32> to vector<256x1xf32>
    %51 = arith.addf %48, %50 : vector<256x1xf32>
    %c0_20 = arith.constant 0 : index
    %c0_21 = arith.constant 0 : index
    %52 = vector.load %arg8[%c0_20, %c0_21] : memref<256x1xf32, #tpu.memory_space<vmem>>, vector<256x1xf32>
    tpu.vector_store %arg8[%c0_20, %c0_21], %51 {strides = array<i32>} : memref<256x1xf32, #tpu.memory_space<vmem>>, vector<256x1xf32>,
    %c0_22 = arith.constant 0 : index
    %c0_23 = arith.constant 0 : index
    %53 = vector.load %arg9[%c0_22, %c0_23] : memref<256x1xf32, #tpu.memory_space<vmem>>, vector<256x1xf32>
    %54 = arith.mulf %31, %7 : vector<256x256xf32>
    %cst_24 = arith.constant dense<0.000000e+00> : vector<256xf32>
    %55 = vector.multi_reduction <add>, %54, %cst_24 [1] : vector<256x256xf32> to vector<256xf32>
    %56 = vector.shape_cast %55 : vector<256xf32> to vector<256x1xf32>
    %57 = arith.addf %53, %56 : vector<256x1xf32>
    %c0_25 = arith.constant 0 : index
    %c0_26 = arith.constant 0 : index
    %58 = vector.load %arg9[%c0_25, %c0_26] : memref<256x1xf32, #tpu.memory_space<vmem>>, vector<256x1xf32>
    tpu.vector_store %arg9[%c0_25, %c0_26], %57 {strides = array<i32>} : memref<256x1xf32, #tpu.memory_space<vmem>>, vector<256x1xf32>,
    %c0_27 = arith.constant 0 : index
    %c0_28 = arith.constant 0 : index
    %59 = vector.load %arg10[%c0_27, %c0_28] : memref<256x1xf32, #tpu.memory_space<vmem>>, vector<256x1xf32>
    %cst_29 = arith.constant dense<0.000000e+00> : vector<256xf32>
    %60 = vector.multi_reduction <add>, %31, %cst_29 [1] : vector<256x256xf32> to vector<256xf32>
    %61 = vector.shape_cast %60 : vector<256xf32> to vector<256x1xf32>
    %62 = arith.addf %59, %61 : vector<256x1xf32>
    %c0_30 = arith.constant 0 : index
    %c0_31 = arith.constant 0 : index
    %63 = vector.load %arg10[%c0_30, %c0_31] : memref<256x1xf32, #tpu.memory_space<vmem>>, vector<256x1xf32>
    tpu.vector_store %arg10[%c0_30, %c0_31], %62 {strides = array<i32>} : memref<256x1xf32, #tpu.memory_space<vmem>>, vector<256x1xf32>,
    %c0_32 = arith.constant 0 : index
    %c0_33 = arith.constant 0 : index
    %64 = vector.load %arg7[%c0_32, %c0_33] : memref<256x1xf32, #tpu.memory_space<vmem>>, vector<256x1xf32>
    tpu.vector_store %arg7[%c0_32, %c0_33], %39 {strides = array<i32>} : memref<256x1xf32, #tpu.memory_space<vmem>>, vector<256x1xf32>,
    %c0_i32_34 = arith.constant 0 : i32
    %65 = arith.cmpi eq, %arg1, %c0_i32_34 : i32
    %66 = arith.extui %65 : i1 to i32
    %c0_i32_35 = arith.constant 0 : i32
    %67 = arith.cmpi ne, %66, %c0_i32_35 : i32
    scf.if %67 {
      %c0_36 = arith.constant 0 : index
      %c0_37 = arith.constant 0 : index
      %68 = vector.load %arg10[%c0_36, %c0_37] : memref<256x1xf32, #tpu.memory_space<vmem>>, vector<256x1xf32>
      %69 = tpu.reciprocal %68 {approx = true} : vector<256x1xf32> -> vector<256x1xf32>
      %c0_38 = arith.constant 0 : index
      %c0_39 = arith.constant 0 : index
      %70 = vector.load %arg9[%c0_38, %c0_39] : memref<256x1xf32, #tpu.memory_space<vmem>>, vector<256x1xf32>
      %71 = arith.mulf %70, %69 : vector<256x1xf32>
      %c0_40 = arith.constant 0 : index
      %c0_41 = arith.constant 0 : index
      %72 = vector.load %arg7[%c0_40, %c0_41] : memref<256x1xf32, #tpu.memory_space<vmem>>, vector<256x1xf32>
      %73 = arith.subf %71, %72 : vector<256x1xf32>
      %c0_42 = arith.constant 0 : index
      %c0_43 = arith.constant 0 : index
      %74 = vector.load %arg8[%c0_42, %c0_43] : memref<256x1xf32, #tpu.memory_space<vmem>>, vector<256x1xf32>
      %75 = math.log %74 : vector<256x1xf32>
      %76 = arith.subf %73, %75 : vector<256x1xf32>
      %cst_44 = arith.constant -1.000000e+00 : f32
      %77 = vector.broadcast %cst_44 : f32 to vector<256x1xf32>
      %78 = arith.mulf %77, %76 : vector<256x1xf32>
      %c0_45 = arith.constant 0 : index
      %c0_46 = arith.constant 0 : index
      %79 = vector.load %arg6[%c0_45, %c0_46] : memref<256x1xf32, #tpu.memory_space<vmem>>, vector<256x1xf32>
      tpu.vector_store %arg6[%c0_45, %c0_46], %78 {strides = array<i32>} : memref<256x1xf32, #tpu.memory_space<vmem>>, vector<256x1xf32>,
    } else {
    }
    return
  }
  func.func @transform_0(%arg0: i32, %arg1: i32) -> (i32, i32) {
    %c0_i32 = arith.constant 0 : i32
    %c0_i32_0 = arith.constant 0 : i32
    return %arg0, %c0_i32 : i32, i32
  }
  func.func @transform_1(%arg0: i32, %arg1: i32) -> (i32, i32) {
    %c0_i32 = arith.constant 0 : i32
    %c0_i32_0 = arith.constant 0 : i32
    return %c0_i32, %arg1 : i32, i32
  }
  func.func @transform_2(%arg0: i32, %arg1: i32) -> (i32, i32) {
    %c0_i32 = arith.constant 0 : i32
    %c0_i32_0 = arith.constant 0 : i32
    return %arg0, %c0_i32 : i32, i32
  }
  func.func @transform_3(%arg0: i32, %arg1: i32) -> (i32, i32) {
    %c0_i32 = arith.constant 0 : i32
    %c0_i32_0 = arith.constant 0 : i32
    return %arg1, %c0_i32 : i32, i32
  }
  func.func @transform_4(%arg0: i32, %arg1: i32) -> (i32, i32) {
    %c0_i32 = arith.constant 0 : i32
    %c0_i32_0 = arith.constant 0 : i32
    return %arg0, %c0_i32 : i32, i32
  }
}

</mosaic_0001>

<llo_original>
// kernel: tpu_custom_call.1
$region0: #{tpu_custom_call.1}
  #allocation0 [shape = 'u32[]', space=smem, size = 0x4, offset = 0x4, fixed_abs, tag = 'smem constant byte address 0x4 - core index']
  #allocation1 [shape = 'u32[72,128]{1,0:T(1,128)}', space=vmem, size = 0x9000, scoped, tag = 'internal scratch']
  #allocation2 [shape = 'f32[256,1]{1,0:T(8,128)}', space=vmem, size = 0x20000, scoped, tag = 'scratch operand']
  #allocation3 [shape = 'f32[256,1]{1,0:T(8,128)}', space=vmem, size = 0x20000, scoped, tag = 'scratch operand']
  #allocation4 [shape = 'f32[256,1]{1,0:T(8,128)}', space=vmem, size = 0x20000, scoped, tag = 'scratch operand']
  #allocation5 [shape = 'f32[256,1]{1,0:T(8,128)}', space=vmem, size = 0x20000, scoped, tag = 'scratch operand']
  %s0 = inlined_call_operand.vmem [shape: s32[256,1], index: 0, kind: input, shape index: {}]
  %s1 = inlined_call_operand.vmem [shape: s32[1,256], index: 1, kind: input, shape index: {}]
  %s2 = inlined_call_operand.vmem [shape: f32[256,128], index: 2, kind: input, shape index: {}]
  %s3 = inlined_call_operand.hbm [shape: f32[256,128], index: 3, kind: input, shape index: {}]
  %s4 = inlined_call_operand.vmem [shape: f32[256,1], index: 4, kind: output, shape index: {}]
  %s5 = sld [smem:[#allocation0]]
  $region38: #{tpu_custom_call.1} parent=0
    _
  %s7 = ssub.s32 1, %s5
  %s8 = scalar_select 0, %s7, %s5
  $region1: #{tpu_custom_call.1} parent=0
    #allocation6 [shape = 'u8[131072]{0}', space=vmem, size = 0x20000, scoped, tag = 'input window, operand 3, single buffered']
    #allocation7 [shape = 's32[1]{0}', space=sflag, size = 0x4, scoped, tag = 'scoped memory for tpu_custom_call.1']
    %9 = vsyncpa [#allocation7], 0
    // Predicated region
    $region2: #{tpu_custom_call.1} parent=1 // pred_check
      _
    $region3: #{tpu_custom_call.1} parent=1 // pred_check_branch
      %11 = sbr.rel (0) target = $region5
    $region4: #{tpu_custom_call.1} parent=1 // pred_region
      _
    $region5: #{tpu_custom_call.1} parent=1 // pred_fallthru
      _
    // Predicated region
    $region6: #{tpu_custom_call.1} parent=1 // pred_check
      _
    $region7: #{tpu_custom_call.1} parent=1 // pred_check_branch
      %13 = sbr.rel (0) target = $region9
    $region8: #{tpu_custom_call.1} parent=1 // pred_region
      _
    $region9: #{tpu_custom_call.1} parent=1 // pred_fallthru
      _
    // Predicated region
    $region10: #{tpu_custom_call.1} parent=1 // pred_check
      _
    $region11: #{tpu_custom_call.1} parent=1 // pred_check_branch
      %15 = sbr.rel (0) target = $region13
    $region12: #{tpu_custom_call.1} parent=1 // pred_region
      _
    $region13: #{tpu_custom_call.1} parent=1 // pred_fallthru
      _
    // Predicated region
    $region14: #{tpu_custom_call.1} parent=1 // pred_check
      _
    $region15: #{tpu_custom_call.1} parent=1 // pred_check_branch
      %17 = sbr.rel (0) target = $region17
    $region16: #{tpu_custom_call.1} parent=1 // pred_region
      %19 = vsyncadd [#allocation7], 0
      %s20 = sshll.u32 %s3, 4
      %s21 = int_to_ptr.hbm [resolvable:$true] %s20
      %s22 = sshll.u32 [#allocation6], 4
      %s23 = int_to_ptr.vmem [resolvable:$true] %s22
      %28 = dma.hbm_to_vmem [thread:$0]  %s21, 4096, %s23, [#allocation7], 128, 128, 8
    $region17: #{tpu_custom_call.1} parent=1 // pred_fallthru
      _
    // Predicated region
    $region18: #{tpu_custom_call.1} parent=1 // pred_check
      _
    $region19: #{tpu_custom_call.1} parent=1 // pred_check_branch
      %30 = sbr.rel (0) target = $region21
    $region20: #{tpu_custom_call.1} parent=1 // pred_region
      %32 = dma.done [#allocation7], 4096
    $region21: #{tpu_custom_call.1} parent=1 // pred_fallthru
      _
    %p33 = scmp.eq.s32.totalorder 0, 0
    // Predicated region
    $region22: #{tpu_custom_call.1} parent=1 // pred_check
      %p34 = pneg %p33
    $region23: #{tpu_custom_call.1} parent=1 // pred_check_branch
      %36 = sbr.rel (%p34) target = $region25
    $region24: #{tpu_custom_call.1} parent=1 // pred_region
      %vm37 = vcmask 7168
      %38 = vst.msk [vmem:[#allocation2] sm:$0xff] %vm37, -inf
      %39 = vst.msk [vmem:[#allocation2 + $0x8] sm:$0xff] %vm37, -inf
      %40 = vst.msk [vmem:[#allocation2 + $0x10] sm:$0xff] %vm37, -inf
      %41 = vst.msk [vmem:[#allocation2 + $0x18] sm:$0xff] %vm37, -inf
      %42 = vst.msk [vmem:[#allocation2 + $0x20] sm:$0xff] %vm37, -inf
      %43 = vst.msk [vmem:[#allocation2 + $0x28] sm:$0xff] %vm37, -inf
      %44 = vst.msk [vmem:[#allocation2 + $0x30] sm:$0xff] %vm37, -inf
      %45 = vst.msk [vmem:[#allocation2 + $0x38] sm:$0xff] %vm37, -inf
      %46 = vst.msk [vmem:[#allocation2 + $0x40] sm:$0xff] %vm37, -inf
      %47 = vst.msk [vmem:[#allocation2 + $0x48] sm:$0xff] %vm37, -inf
      %48 = vst.msk [vmem:[#allocation2 + $0x50] sm:$0xff] %vm37, -inf
      %49 = vst.msk [vmem:[#allocation2 + $0x58] sm:$0xff] %vm37, -inf
      %50 = vst.msk [vmem:[#allocation2 + $0x60] sm:$0xff] %vm37, -inf
      %51 = vst.msk [vmem:[#allocation2 + $0x68] sm:$0xff] %vm37, -inf
      %52 = vst.msk [vmem:[#allocation2 + $0x70] sm:$0xff] %vm37, -inf
      %53 = vst.msk [vmem:[#allocation2 + $0x78] sm:$0xff] %vm37, -inf
      %54 = vst.msk [vmem:[#allocation2 + $0x80] sm:$0xff] %vm37, -inf
      %55 = vst.msk [vmem:[#allocation2 + $0x88] sm:$0xff] %vm37, -inf
      %56 = vst.msk [vmem:[#allocation2 + $0x90] sm:$0xff] %vm37, -inf
      %57 = vst.msk [vmem:[#allocation2 + $0x98] sm:$0xff] %vm37, -inf
      %58 = vst.msk [vmem:[#allocation2 + $0xa0] sm:$0xff] %vm37, -inf
      %59 = vst.msk [vmem:[#allocation2 + $0xa8] sm:$0xff] %vm37, -inf
      %60 = vst.msk [vmem:[#allocation2 + $0xb0] sm:$0xff] %vm37, -inf
      %61 = vst.msk [vmem:[#allocation2 + $0xb8] sm:$0xff] %vm37, -inf
      %62 = vst.msk [vmem:[#allocation2 + $0xc0] sm:$0xff] %vm37, -inf
      %63 = vst.msk [vmem:[#allocation2 + $0xc8] sm:$0xff] %vm37, -inf
      %64 = vst.msk [vmem:[#allocation2 + $0xd0] sm:$0xff] %vm37, -inf
      %65 = vst.msk [vmem:[#allocation2 + $0xd8] sm:$0xff] %vm37, -inf
      %66 = vst.msk [vmem:[#allocation2 + $0xe0] sm:$0xff] %vm37, -inf
      %67 = vst.msk [vmem:[#allocation2 + $0xe8] sm:$0xff] %vm37, -inf
      %68 = vst.msk [vmem:[#allocation2 + $0xf0] sm:$0xff] %vm37, -inf
      %69 = vst.msk [vmem:[#allocation2 + $0xf8] sm:$0xff] %vm37, -inf
      %70 = vst.msk [vmem:[#allocation3] sm:$0xff] %vm37, 0.0
      %71 = vst.msk [vmem:[#allocation3 + $0x8] sm:$0xff] %vm37, 0.0
      %72 = vst.msk [vmem:[#allocation3 + $0x10] sm:$0xff] %vm37, 0.0
      %73 = vst.msk [vmem:[#allocation3 + $0x18] sm:$0xff] %vm37, 0.0
      %74 = vst.msk [vmem:[#allocation3 + $0x20] sm:$0xff] %vm37, 0.0
      %75 = vst.msk [vmem:[#allocation3 + $0x28] sm:$0xff] %vm37, 0.0
      %76 = vst.msk [vmem:[#allocation3 + $0x30] sm:$0xff] %vm37, 0.0
      %77 = vst.msk [vmem:[#allocation3 + $0x38] sm:$0xff] %vm37, 0.0
      %78 = vst.msk [vmem:[#allocation3 + $0x40] sm:$0xff] %vm37, 0.0
      %79 = vst.msk [vmem:[#allocation3 + $0x48] sm:$0xff] %vm37, 0.0
      %80 = vst.msk [vmem:[#allocation3 + $0x50] sm:$0xff] %vm37, 0.0
      %81 = vst.msk [vmem:[#allocation3 + $0x58] sm:$0xff] %vm37, 0.0
      %82 = vst.msk [vmem:[#allocation3 + $0x60] sm:$0xff] %vm37, 0.0
      %83 = vst.msk [vmem:[#allocation3 + $0x68] sm:$0xff] %vm37, 0.0
      %84 = vst.msk [vmem:[#allocation3 + $0x70] sm:$0xff] %vm37, 0.0
      %85 = vst.msk [vmem:[#allocation3 + $0x78] sm:$0xff] %vm37, 0.0
      %86 = vst.msk [vmem:[#allocation3 + $0x80] sm:$0xff] %vm37, 0.0
      %87 = vst.msk [vmem:[#allocation3 + $0x88] sm:$0xff] %vm37, 0.0
      %88 = vst.msk [vmem:[#allocation3 + $0x90] sm:$0xff] %vm37, 0.0
      %89 = vst.msk [vmem:[#allocation3 + $0x98] sm:$0xff] %vm37, 0.0
      %90 = vst.msk [vmem:[#allocation3 + $0xa0] sm:$0xff] %vm37, 0.0
      %91 = vst.msk [vmem:[#allocation3 + $0xa8] sm:$0xff] %vm37, 0.0
      %92 = vst.msk [vmem:[#allocation3 + $0xb0] sm:$0xff] %vm37, 0.0
      %93 = vst.msk [vmem:[#allocation3 + $0xb8] sm:$0xff] %vm37, 0.0
      %94 = vst.msk [vmem:[#allocation3 + $0xc0] sm:$0xff] %vm37, 0.0
      %95 = vst.msk [vmem:[#allocation3 + $0xc8] sm:$0xff] %vm37, 0.0
      %96 = vst.msk [vmem:[#allocation3 + $0xd0] sm:$0xff] %vm37, 0.0
      %97 = vst.msk [vmem:[#allocation3 + $0xd8] sm:$0xff] %vm37, 0.0
      %98 = vst.msk [vmem:[#allocation3 + $0xe0] sm:$0xff] %vm37, 0.0
      %99 = vst.msk [vmem:[#allocation3 + $0xe8] sm:$0xff] %vm37, 0.0
      %100 = vst.msk [vmem:[#allocation3 + $0xf0] sm:$0xff] %vm37, 0.0
      %101 = vst.msk [vmem:[#allocation3 + $0xf8] sm:$0xff] %vm37, 0.0
      %102 = vst.msk [vmem:[#allocation4] sm:$0xff] %vm37, 0.0
      %103 = vst.msk [vmem:[#allocation4 + $0x8] sm:$0xff] %vm37, 0.0
      %104 = vst.msk [vmem:[#allocation4 + $0x10] sm:$0xff] %vm37, 0.0
      %105 = vst.msk [vmem:[#allocation4 + $0x18] sm:$0xff] %vm37, 0.0
      %106 = vst.msk [vmem:[#allocation4 + $0x20] sm:$0xff] %vm37, 0.0
      %107 = vst.msk [vmem:[#allocation4 + $0x28] sm:$0xff] %vm37, 0.0
      %108 = vst.msk [vmem:[#allocation4 + $0x30] sm:$0xff] %vm37, 0.0
      %109 = vst.msk [vmem:[#allocation4 + $0x38] sm:$0xff] %vm37, 0.0
      %110 = vst.msk [vmem:[#allocation4 + $0x40] sm:$0xff] %vm37, 0.0
      %111 = vst.msk [vmem:[#allocation4 + $0x48] sm:$0xff] %vm37, 0.0
      %112 = vst.msk [vmem:[#allocation4 + $0x50] sm:$0xff] %vm37, 0.0
      %113 = vst.msk [vmem:[#allocation4 + $0x58] sm:$0xff] %vm37, 0.0
      %114 = vst.msk [vmem:[#allocation4 + $0x60] sm:$0xff] %vm37, 0.0
      %115 = vst.msk [vmem:[#allocation4 + $0x68] sm:$0xff] %vm37, 0.0
      %116 = vst.msk [vmem:[#allocation4 + $0x70] sm:$0xff] %vm37, 0.0
      %117 = vst.msk [vmem:[#allocation4 + $0x78] sm:$0xff] %vm37, 0.0
      %118 = vst.msk [vmem:[#allocation4 + $0x80] sm:$0xff] %vm37, 0.0
      %119 = vst.msk [vmem:[#allocation4 + $0x88] sm:$0xff] %vm37, 0.0
      %120 = vst.msk [vmem:[#allocation4 + $0x90] sm:$0xff] %vm37, 0.0
      %121 = vst.msk [vmem:[#allocation4 + $0x98] sm:$0xff] %vm37, 0.0
      %122 = vst.msk [vmem:[#allocation4 + $0xa0] sm:$0xff] %vm37, 0.0
      %123 = vst.msk [vmem:[#allocation4 + $0xa8] sm:$0xff] %vm37, 0.0
      %124 = vst.msk [vmem:[#allocation4 + $0xb0] sm:$0xff] %vm37, 0.0
      %125 = vst.msk [vmem:[#allocation4 + $0xb8] sm:$0xff] %vm37, 0.0
      %126 = vst.msk [vmem:[#allocation4 + $0xc0] sm:$0xff] %vm37, 0.0
      %127 = vst.msk [vmem:[#allocation4 + $0xc8] sm:$0xff] %vm37, 0.0
      %128 = vst.msk [vmem:[#allocation4 + $0xd0] sm:$0xff] %vm37, 0.0
      %129 = vst.msk [vmem:[#allocation4 + $0xd8] sm:$0xff] %vm37, 0.0
      %130 = vst.msk [vmem:[#allocation4 + $0xe0] sm:$0xff] %vm37, 0.0
      %131 = vst.msk [vmem:[#allocation4 + $0xe8] sm:$0xff] %vm37, 0.0
      %132 = vst.msk [vmem:[#allocation4 + $0xf0] sm:$0xff] %vm37, 0.0
      %133 = vst.msk [vmem:[#allocation4 + $0xf8] sm:$0xff] %vm37, 0.0
      %134 = vst.msk [vmem:[#allocation5] sm:$0xff] %vm37, 0.0
      %135 = vst.msk [vmem:[#allocation5 + $0x8] sm:$0xff] %vm37, 0.0
      %136 = vst.msk [vmem:[#allocation5 + $0x10] sm:$0xff] %vm37, 0.0
      %137 = vst.msk [vmem:[#allocation5 + $0x18] sm:$0xff] %vm37, 0.0
      %138 = vst.msk [vmem:[#allocation5 + $0x20] sm:$0xff] %vm37, 0.0
      %139 = vst.msk [vmem:[#allocation5 + $0x28] sm:$0xff] %vm37, 0.0
      %140 = vst.msk [vmem:[#allocation5 + $0x30] sm:$0xff] %vm37, 0.0
      %141 = vst.msk [vmem:[#allocation5 + $0x38] sm:$0xff] %vm37, 0.0
      %142 = vst.msk [vmem:[#allocation5 + $0x40] sm:$0xff] %vm37, 0.0
      %143 = vst.msk [vmem:[#allocation5 + $0x48] sm:$0xff] %vm37, 0.0
      %144 = vst.msk [vmem:[#allocation5 + $0x50] sm:$0xff] %vm37, 0.0
      %145 = vst.msk [vmem:[#allocation5 + $0x58] sm:$0xff] %vm37, 0.0
      %146 = vst.msk [vmem:[#allocation5 + $0x60] sm:$0xff] %vm37, 0.0
      %147 = vst.msk [vmem:[#allocation5 + $0x68] sm:$0xff] %vm37, 0.0
      %148 = vst.msk [vmem:[#allocation5 + $0x70] sm:$0xff] %vm37, 0.0
      %149 = vst.msk [vmem:[#allocation5 + $0x78] sm:$0xff] %vm37, 0.0
      %150 = vst.msk [vmem:[#allocation5 + $0x80] sm:$0xff] %vm37, 0.0
      %151 = vst.msk [vmem:[#allocation5 + $0x88] sm:$0xff] %vm37, 0.0
      %152 = vst.msk [vmem:[#allocation5 + $0x90] sm:$0xff] %vm37, 0.0
      %153 = vst.msk [vmem:[#allocation5 + $0x98] sm:$0xff] %vm37, 0.0
      %154 = vst.msk [vmem:[#allocation5 + $0xa0] sm:$0xff] %vm37, 0.0
      %155 = vst.msk [vmem:[#allocation5 + $0xa8] sm:$0xff] %vm37, 0.0
      %156 = vst.msk [vmem:[#allocation5 + $0xb0] sm:$0xff] %vm37, 0.0
      %157 = vst.msk [vmem:[#allocation5 + $0xb8] sm:$0xff] %vm37, 0.0
      %158 = vst.msk [vmem:[#allocation5 + $0xc0] sm:$0xff] %vm37, 0.0
      %159 = vst.msk [vmem:[#allocation5 + $0xc8] sm:$0xff] %vm37, 0.0
      %160 = vst.msk [vmem:[#allocation5 + $0xd0] sm:$0xff] %vm37, 0.0
      %161 = vst.msk [vmem:[#allocation5 + $0xd8] sm:$0xff] %vm37, 0.0
      %162 = vst.msk [vmem:[#allocation5 + $0xe0] sm:$0xff] %vm37, 0.0
      %163 = vst.msk [vmem:[#allocation5 + $0xe8] sm:$0xff] %vm37, 0.0
      %164 = vst.msk [vmem:[#allocation5 + $0xf0] sm:$0xff] %vm37, 0.0
      %165 = vst.msk [vmem:[#allocation5 + $0xf8] sm:$0xff] %vm37, 0.0
    $region25: #{tpu_custom_call.1} parent=1 // pred_fallthru
      _
    %v166 = vld [vmem:[%s2] sm:$0xff]
    %v167 = vld [vmem:[%s2 + $0x8] sm:$0xff]
    %v168 = vld [vmem:[%s2 + $0x10] sm:$0xff]
    %v169 = vld [vmem:[%s2 + $0x18] sm:$0xff]
    %v170 = vld [vmem:[%s2 + $0x20] sm:$0xff]
    %v171 = vld [vmem:[%s2 + $0x28] sm:$0xff]
    %v172 = vld [vmem:[%s2 + $0x30] sm:$0xff]
    %v173 = vld [vmem:[%s2 + $0x38] sm:$0xff]
    %v174 = vld [vmem:[%s2 + $0x40] sm:$0xff]
    %v175 = vld [vmem:[%s2 + $0x48] sm:$0xff]
    %v176 = vld [vmem:[%s2 + $0x50] sm:$0xff]
    %v177 = vld [vmem:[%s2 + $0x58] sm:$0xff]
    %v178 = vld [vmem:[%s2 + $0x60] sm:$0xff]
    %v179 = vld [vmem:[%s2 + $0x68] sm:$0xff]
    %v180 = vld [vmem:[%s2 + $0x70] sm:$0xff]
    %v181 = vld [vmem:[%s2 + $0x78] sm:$0xff]
    %v182 = vld [vmem:[%s2 + $0x80] sm:$0xff]
    %v183 = vld [vmem:[%s2 + $0x88] sm:$0xff]
    %v184 = vld [vmem:[%s2 + $0x90] sm:$0xff]
    %v185 = vld [vmem:[%s2 + $0x98] sm:$0xff]
    %v186 = vld [vmem:[%s2 + $0xa0] sm:$0xff]
    %v187 = vld [vmem:[%s2 + $0xa8] sm:$0xff]
    %v188 = vld [vmem:[%s2 + $0xb0] sm:$0xff]
    %v189 = vld [vmem:[%s2 + $0xb8] sm:$0xff]
    %v190 = vld [vmem:[%s2 + $0xc0] sm:$0xff]
    %v191 = vld [vmem:[%s2 + $0xc8] sm:$0xff]
    %v192 = vld [vmem:[%s2 + $0xd0] sm:$0xff]
    %v193 = vld [vmem:[%s2 + $0xd8] sm:$0xff]
    %v194 = vld [vmem:[%s2 + $0xe0] sm:$0xff]
    %v195 = vld [vmem:[%s2 + $0xe8] sm:$0xff]
    %v196 = vld [vmem:[%s2 + $0xf0] sm:$0xff]
    %v197 = vld [vmem:[%s2 + $0xf8] sm:$0xff]
    %v198 = vmul.f32 %v166, 14.285714
    %v199 = vmul.f32 %v167, 14.285714
    %v200 = vmul.f32 %v168, 14.285714
    %v201 = vmul.f32 %v169, 14.285714
    %v202 = vmul.f32 %v170, 14.285714
    %v203 = vmul.f32 %v171, 14.285714
    %v204 = vmul.f32 %v172, 14.285714
    %v205 = vmul.f32 %v173, 14.285714
    %v206 = vmul.f32 %v174, 14.285714
    %v207 = vmul.f32 %v175, 14.285714
    %v208 = vmul.f32 %v176, 14.285714
    %v209 = vmul.f32 %v177, 14.285714
    %v210 = vmul.f32 %v178, 14.285714
    %v211 = vmul.f32 %v179, 14.285714
    %v212 = vmul.f32 %v180, 14.285714
    %v213 = vmul.f32 %v181, 14.285714
    %v214 = vmul.f32 %v182, 14.285714
    %v215 = vmul.f32 %v183, 14.285714
    %v216 = vmul.f32 %v184, 14.285714
    %v217 = vmul.f32 %v185, 14.285714
    %v218 = vmul.f32 %v186, 14.285714
    %v219 = vmul.f32 %v187, 14.285714
    %v220 = vmul.f32 %v188, 14.285714
    %v221 = vmul.f32 %v189, 14.285714
    %v222 = vmul.f32 %v190, 14.285714
    %v223 = vmul.f32 %v191, 14.285714
    %v224 = vmul.f32 %v192, 14.285714
    %v225 = vmul.f32 %v193, 14.285714
    %v226 = vmul.f32 %v194, 14.285714
    %v227 = vmul.f32 %v195, 14.285714
    %v228 = vmul.f32 %v196, 14.285714
    %v229 = vmul.f32 %v197, 14.285714
    %v230 = vld [vmem:[#allocation6] sm:$0xff]
    %v231 = vld [vmem:[#allocation6 + $0x8] sm:$0xff]
    %v232 = vld [vmem:[#allocation6 + $0x10] sm:$0xff]
    %v233 = vld [vmem:[#allocation6 + $0x18] sm:$0xff]
    %v234 = vld [vmem:[#allocation6 + $0x20] sm:$0xff]
    %v235 = vld [vmem:[#allocation6 + $0x28] sm:$0xff]
    %v236 = vld [vmem:[#allocation6 + $0x30] sm:$0xff]
    %v237 = vld [vmem:[#allocation6 + $0x38] sm:$0xff]
    %v238 = vld [vmem:[#allocation6 + $0x40] sm:$0xff]
    %v239 = vld [vmem:[#allocation6 + $0x48] sm:$0xff]
    %v240 = vld [vmem:[#allocation6 + $0x50] sm:$0xff]
    %v241 = vld [vmem:[#allocation6 + $0x58] sm:$0xff]
    %v242 = vld [vmem:[#allocation6 + $0x60] sm:$0xff]
    %v243 = vld [vmem:[#allocation6 + $0x68] sm:$0xff]
    %v244 = vld [vmem:[#allocation6 + $0x70] sm:$0xff]
    %v245 = vld [vmem:[#allocation6 + $0x78] sm:$0xff]
    %v246 = vld [vmem:[#allocation6 + $0x80] sm:$0xff]
    %v247 = vld [vmem:[#allocation6 + $0x88] sm:$0xff]
    %v248 = vld [vmem:[#allocation6 + $0x90] sm:$0xff]
    %v249 = vld [vmem:[#allocation6 + $0x98] sm:$0xff]
    %v250 = vld [vmem:[#allocation6 + $0xa0] sm:$0xff]
    %v251 = vld [vmem:[#allocation6 + $0xa8] sm:$0xff]
    %v252 = vld [vmem:[#allocation6 + $0xb0] sm:$0xff]
    %v253 = vld [vmem:[#allocation6 + $0xb8] sm:$0xff]
    %v254 = vld [vmem:[#allocation6 + $0xc0] sm:$0xff]
    %v255 = vld [vmem:[#allocation6 + $0xc8] sm:$0xff]
    %v256 = vld [vmem:[#allocation6 + $0xd0] sm:$0xff]
    %v257 = vld [vmem:[#allocation6 + $0xd8] sm:$0xff]
    %v258 = vld [vmem:[#allocation6 + $0xe0] sm:$0xff]
    %v259 = vld [vmem:[#allocation6 + $0xe8] sm:$0xff]
    %v260 = vld [vmem:[#allocation6 + $0xf0] sm:$0xff]
    %v261 = vld [vmem:[#allocation6 + $0xf8] sm:$0xff]
    %262 = vmatpush.xpose.msra.mxu0 %v245
    %263 = vmatpush.xpose.msra.mxu0 %v244
    %264 = vmatpush.xpose.msra.mxu0 %v243
    %265 = vmatpush.xpose.msra.mxu0 %v242
    %266 = vmatpush.xpose.msra.mxu0 %v241
    %267 = vmatpush.xpose.msra.mxu0 %v240
    %268 = vmatpush.xpose.msra.mxu0 %v239
    %269 = vmatpush.xpose.msra.mxu0 %v238
    %270 = vmatpush.xpose.msra.mxu0 %v237
    %271 = vmatpush.xpose.msra.mxu0 %v236
    %272 = vmatpush.xpose.msra.mxu0 %v235
    %273 = vmatpush.xpose.msra.mxu0 %v234
    %274 = vmatpush.xpose.msra.mxu0 %v233
    %275 = vmatpush.xpose.msra.mxu0 %v232
    %276 = vmatpush.xpose.msra.mxu0 %v231
    %277 = vmatpush.xpose.msra.mxu0 %v230
    %278 = vmatmul.f32.gmra.mxu0 %v198
    %v279 = vpop.f32.mrf.mxu0
    %v280 = vadd.f32 0.0, %v279
    %281 = vmatmul.f32.gmra.mxu0 %v199
    %v282 = vpop.f32.mrf.mxu0
    %v283 = vadd.f32 0.0, %v282
    %284 = vmatmul.f32.gmra.mxu0 %v200
    %v285 = vpop.f32.mrf.mxu0
    %v286 = vadd.f32 0.0, %v285
    %287 = vmatmul.f32.gmra.mxu0 %v201
    %v288 = vpop.f32.mrf.mxu0
    %v289 = vadd.f32 0.0, %v288
    %290 = vmatmul.f32.gmra.mxu0 %v202
    %v291 = vpop.f32.mrf.mxu0
    %v292 = vadd.f32 0.0, %v291
    %293 = vmatmul.f32.gmra.mxu0 %v203
    %v294 = vpop.f32.mrf.mxu0
    %v295 = vadd.f32 0.0, %v294
    %296 = vmatmul.f32.gmra.mxu0 %v204
    %v297 = vpop.f32.mrf.mxu0
    %v298 = vadd.f32 0.0, %v297
    %299 = vmatmul.f32.gmra.mxu0 %v205
    %v300 = vpop.f32.mrf.mxu0
    %v301 = vadd.f32 0.0, %v300
    %302 = vmatmul.f32.gmra.mxu0 %v206
    %v303 = vpop.f32.mrf.mxu0
    %v304 = vadd.f32 0.0, %v303
    %305 = vmatmul.f32.gmra.mxu0 %v207
    %v306 = vpop.f32.mrf.mxu0
    %v307 = vadd.f32 0.0, %v306
    %308 = vmatmul.f32.gmra.mxu0 %v208
    %v309 = vpop.f32.mrf.mxu0
    %v310 = vadd.f32 0.0, %v309
    %311 = vmatmul.f32.gmra.mxu0 %v209
    %v312 = vpop.f32.mrf.mxu0
    %v313 = vadd.f32 0.0, %v312
    %314 = vmatmul.f32.gmra.mxu0 %v210
    %v315 = vpop.f32.mrf.mxu0
    %v316 = vadd.f32 0.0, %v315
    %317 = vmatmul.f32.gmra.mxu0 %v211
    %v318 = vpop.f32.mrf.mxu0
    %v319 = vadd.f32 0.0, %v318
    %320 = vmatmul.f32.gmra.mxu0 %v212
    %v321 = vpop.f32.mrf.mxu0
    %v322 = vadd.f32 0.0, %v321
    %323 = vmatmul.f32.gmra.mxu0 %v213
    %v324 = vpop.f32.mrf.mxu0
    %v325 = vadd.f32 0.0, %v324
    %326 = vmatmul.f32.gmra.mxu0 %v214
    %v327 = vpop.f32.mrf.mxu0
    %v328 = vadd.f32 0.0, %v327
    %329 = vmatmul.f32.gmra.mxu0 %v215
    %v330 = vpop.f32.mrf.mxu0
    %v331 = vadd.f32 0.0, %v330
    %332 = vmatmul.f32.gmra.mxu0 %v216
    %v333 = vpop.f32.mrf.mxu0
    %v334 = vadd.f32 0.0, %v333
    %335 = vmatmul.f32.gmra.mxu0 %v217
    %v336 = vpop.f32.mrf.mxu0
    %v337 = vadd.f32 0.0, %v336
    %338 = vmatmul.f32.gmra.mxu0 %v218
    %v339 = vpop.f32.mrf.mxu0
    %v340 = vadd.f32 0.0, %v339
    %341 = vmatmul.f32.gmra.mxu0 %v219
    %v342 = vpop.f32.mrf.mxu0
    %v343 = vadd.f32 0.0, %v342
    %344 = vmatmul.f32.gmra.mxu0 %v220
    %v345 = vpop.f32.mrf.mxu0
    %v346 = vadd.f32 0.0, %v345
    %347 = vmatmul.f32.gmra.mxu0 %v221
    %v348 = vpop.f32.mrf.mxu0
    %v349 = vadd.f32 0.0, %v348
    %350 = vmatmul.f32.gmra.mxu0 %v222
    %v351 = vpop.f32.mrf.mxu0
    %v352 = vadd.f32 0.0, %v351
    %353 = vmatmul.f32.gmra.mxu0 %v223
    %v354 = vpop.f32.mrf.mxu0
    %v355 = vadd.f32 0.0, %v354
    %356 = vmatmul.f32.gmra.mxu0 %v224
    %v357 = vpop.f32.mrf.mxu0
    %v358 = vadd.f32 0.0, %v357
    %359 = vmatmul.f32.gmra.mxu0 %v225
    %v360 = vpop.f32.mrf.mxu0
    %v361 = vadd.f32 0.0, %v360
    %362 = vmatmul.f32.gmra.mxu0 %v226
    %v363 = vpop.f32.mrf.mxu0
    %v364 = vadd.f32 0.0, %v363
    %365 = vmatmul.f32.gmra.mxu0 %v227
    %v366 = vpop.f32.mrf.mxu0
    %v367 = vadd.f32 0.0, %v366
    %368 = vmatmul.f32.gmra.mxu0 %v228
    %v369 = vpop.f32.mrf.mxu0
    %v370 = vadd.f32 0.0, %v369
    %371 = vmatmul.f32.gmra.mxu0 %v229
    %v372 = vpop.f32.mrf.mxu0
    %v373 = vadd.f32 0.0, %v372
    %374 = vdwg.mxu0
    %375 = vmatpush.xpose.msra.mxu0 %v261
    %376 = vmatpush.xpose.msra.mxu0 %v260
    %377 = vmatpush.xpose.msra.mxu0 %v259
    %378 = vmatpush.xpose.msra.mxu0 %v258
    %379 = vmatpush.xpose.msra.mxu0 %v257
    %380 = vmatpush.xpose.msra.mxu0 %v256
    %381 = vmatpush.xpose.msra.mxu0 %v255
    %382 = vmatpush.xpose.msra.mxu0 %v254
    %383 = vmatpush.xpose.msra.mxu0 %v253
    %384 = vmatpush.xpose.msra.mxu0 %v252
    %385 = vmatpush.xpose.msra.mxu0 %v251
    %386 = vmatpush.xpose.msra.mxu0 %v250
    %387 = vmatpush.xpose.msra.mxu0 %v249
    %388 = vmatpush.xpose.msra.mxu0 %v248
    %389 = vmatpush.xpose.msra.mxu0 %v247
    %390 = vmatpush.xpose.msra.mxu0 %v246
    %391 = vmatmul.f32.gmra.mxu0 %v198
    %v392 = vpop.f32.mrf.mxu0
    %v393 = vadd.f32 0.0, %v392
    %394 = vmatmul.f32.gmra.mxu0 %v199
    %v395 = vpop.f32.mrf.mxu0
    %v396 = vadd.f32 0.0, %v395
    %397 = vmatmul.f32.gmra.mxu0 %v200
    %v398 = vpop.f32.mrf.mxu0
    %v399 = vadd.f32 0.0, %v398
    %400 = vmatmul.f32.gmra.mxu0 %v201
    %v401 = vpop.f32.mrf.mxu0
    %v402 = vadd.f32 0.0, %v401
    %403 = vmatmul.f32.gmra.mxu0 %v202
    %v404 = vpop.f32.mrf.mxu0
    %v405 = vadd.f32 0.0, %v404
    %406 = vmatmul.f32.gmra.mxu0 %v203
    %v407 = vpop.f32.mrf.mxu0
    %v408 = vadd.f32 0.0, %v407
    %409 = vmatmul.f32.gmra.mxu0 %v204
    %v410 = vpop.f32.mrf.mxu0
    %v411 = vadd.f32 0.0, %v410
    %412 = vmatmul.f32.gmra.mxu0 %v205
    %v413 = vpop.f32.mrf.mxu0
    %v414 = vadd.f32 0.0, %v413
    %415 = vmatmul.f32.gmra.mxu0 %v206
    %v416 = vpop.f32.mrf.mxu0
    %v417 = vadd.f32 0.0, %v416
    %418 = vmatmul.f32.gmra.mxu0 %v207
    %v419 = vpop.f32.mrf.mxu0
    %v420 = vadd.f32 0.0, %v419
    %421 = vmatmul.f32.gmra.mxu0 %v208
    %v422 = vpop.f32.mrf.mxu0
    %v423 = vadd.f32 0.0, %v422
    %424 = vmatmul.f32.gmra.mxu0 %v209
    %v425 = vpop.f32.mrf.mxu0
    %v426 = vadd.f32 0.0, %v425
    %427 = vmatmul.f32.gmra.mxu0 %v210
    %v428 = vpop.f32.mrf.mxu0
    %v429 = vadd.f32 0.0, %v428
    %430 = vmatmul.f32.gmra.mxu0 %v211
    %v431 = vpop.f32.mrf.mxu0
    %v432 = vadd.f32 0.0, %v431
    %433 = vmatmul.f32.gmra.mxu0 %v212
    %v434 = vpop.f32.mrf.mxu0
    %v435 = vadd.f32 0.0, %v434
    %436 = vmatmul.f32.gmra.mxu0 %v213
    %v437 = vpop.f32.mrf.mxu0
    %v438 = vadd.f32 0.0, %v437
    %439 = vmatmul.f32.gmra.mxu0 %v214
    %v440 = vpop.f32.mrf.mxu0
    %v441 = vadd.f32 0.0, %v440
    %442 = vmatmul.f32.gmra.mxu0 %v215
    %v443 = vpop.f32.mrf.mxu0
    %v444 = vadd.f32 0.0, %v443
    %445 = vmatmul.f32.gmra.mxu0 %v216
    %v446 = vpop.f32.mrf.mxu0
    %v447 = vadd.f32 0.0, %v446
    %448 = vmatmul.f32.gmra.mxu0 %v217
    %v449 = vpop.f32.mrf.mxu0
    %v450 = vadd.f32 0.0, %v449
    %451 = vmatmul.f32.gmra.mxu0 %v218
    %v452 = vpop.f32.mrf.mxu0
    %v453 = vadd.f32 0.0, %v452
    %454 = vmatmul.f32.gmra.mxu0 %v219
    %v455 = vpop.f32.mrf.mxu0
    %v456 = vadd.f32 0.0, %v455
    %457 = vmatmul.f32.gmra.mxu0 %v220
    %v458 = vpop.f32.mrf.mxu0
    %v459 = vadd.f32 0.0, %v458
    %460 = vmatmul.f32.gmra.mxu0 %v221
    %v461 = vpop.f32.mrf.mxu0
    %v462 = vadd.f32 0.0, %v461
    %463 = vmatmul.f32.gmra.mxu0 %v222
    %v464 = vpop.f32.mrf.mxu0
    %v465 = vadd.f32 0.0, %v464
    %466 = vmatmul.f32.gmra.mxu0 %v223
    %v467 = vpop.f32.mrf.mxu0
    %v468 = vadd.f32 0.0, %v467
    %469 = vmatmul.f32.gmra.mxu0 %v224
    %v470 = vpop.f32.mrf.mxu0
    %v471 = vadd.f32 0.0, %v470
    %472 = vmatmul.f32.gmra.mxu0 %v225
    %v473 = vpop.f32.mrf.mxu0
    %v474 = vadd.f32 0.0, %v473
    %475 = vmatmul.f32.gmra.mxu0 %v226
    %v476 = vpop.f32.mrf.mxu0
    %v477 = vadd.f32 0.0, %v476
    %478 = vmatmul.f32.gmra.mxu0 %v227
    %v479 = vpop.f32.mrf.mxu0
    %v480 = vadd.f32 0.0, %v479
    %481 = vmatmul.f32.gmra.mxu0 %v228
    %v482 = vpop.f32.mrf.mxu0
    %v483 = vadd.f32 0.0, %v482
    %484 = vmatmul.f32.gmra.mxu0 %v229
    %v485 = vpop.f32.mrf.mxu0
    %v486 = vadd.f32 0.0, %v485
    %487 = vdwg.mxu0
    %s488 = smul.u32 0, 256
    %v489 = vlaneseq
    %v490 = vshrl.u32 %v489, 7
    %v491 = vadd.s32 %v490, 8
    %v492 = vadd.s32 %v490, 16
    %v493 = vadd.s32 %v490, 24
    %v494 = vadd.s32 %v490, 32
    %v495 = vadd.s32 %v490, 40
    %v496 = vadd.s32 %v490, 48
    %v497 = vadd.s32 %v490, 56
    %v498 = vadd.s32 %v490, 64
    %v499 = vadd.s32 %v490, 72
    %v500 = vadd.s32 %v490, 80
    %v501 = vadd.s32 %v490, 88
    %v502 = vadd.s32 %v490, 96
    %v503 = vadd.s32 %v490, 104
    %v504 = vadd.s32 %v490, 112
    %v505 = vadd.s32 %v490, 120
    %v506 = vadd.s32 %v490, 128
    %v507 = vadd.s32 %v490, 136
    %v508 = vadd.s32 %v490, 144
    %v509 = vadd.s32 %v490, 152
    %v510 = vadd.s32 %v490, 160
    %v511 = vadd.s32 %v490, 168
    %v512 = vadd.s32 %v490, 176
    %v513 = vadd.s32 %v490, 184
    %v514 = vadd.s32 %v490, 192
    %v515 = vadd.s32 %v490, 200
    %v516 = vadd.s32 %v490, 208
    %v517 = vadd.s32 %v490, 216
    %v518 = vadd.s32 %v490, 224
    %v519 = vadd.s32 %v490, 232
    %v520 = vadd.s32 %v490, 240
    %v521 = vadd.s32 %v490, 248
    %v522 = vstv %s488
    %v523 = vadd.s32 %v522, %v490
    %v524 = vadd.s32 %v522, %v491
    %v525 = vadd.s32 %v522, %v492
    %v526 = vadd.s32 %v522, %v493
    %v527 = vadd.s32 %v522, %v494
    %v528 = vadd.s32 %v522, %v495
    %v529 = vadd.s32 %v522, %v496
    %v530 = vadd.s32 %v522, %v497
    %v531 = vadd.s32 %v522, %v498
    %v532 = vadd.s32 %v522, %v499
    %v533 = vadd.s32 %v522, %v500
    %v534 = vadd.s32 %v522, %v501
    %v535 = vadd.s32 %v522, %v502
    %v536 = vadd.s32 %v522, %v503
    %v537 = vadd.s32 %v522, %v504
    %v538 = vadd.s32 %v522, %v505
    %v539 = vadd.s32 %v522, %v506
    %v540 = vadd.s32 %v522, %v507
    %v541 = vadd.s32 %v522, %v508
    %v542 = vadd.s32 %v522, %v509
    %v543 = vadd.s32 %v522, %v510
    %v544 = vadd.s32 %v522, %v511
    %v545 = vadd.s32 %v522, %v512
    %v546 = vadd.s32 %v522, %v513
    %v547 = vadd.s32 %v522, %v514
    %v548 = vadd.s32 %v522, %v515
    %v549 = vadd.s32 %v522, %v516
    %v550 = vadd.s32 %v522, %v517
    %v551 = vadd.s32 %v522, %v518
    %v552 = vadd.s32 %v522, %v519
    %v553 = vadd.s32 %v522, %v520
    %v554 = vadd.s32 %v522, %v521
    %s555 = smul.u32 0, 256
    %v556 = vlaneseq
    %v557 = vand.u32 %v556, 127
    %v558 = vadd.s32 %v557, 128
    %v559 = vstv %s555
    %v560 = vadd.s32 %v559, %v557
    %v561 = vadd.s32 %v559, %v558
    %vm562 = vcmp.ne.s32.totalorder %v523, %v560
    %vm563 = vcmp.ne.s32.totalorder %v523, %v561
    %vm564 = vcmp.ne.s32.totalorder %v524, %v560
    %vm565 = vcmp.ne.s32.totalorder %v524, %v561
    %vm566 = vcmp.ne.s32.totalorder %v525, %v560
    %vm567 = vcmp.ne.s32.totalorder %v525, %v561
    %vm568 = vcmp.ne.s32.totalorder %v526, %v560
    %vm569 = vcmp.ne.s32.totalorder %v526, %v561
    %vm570 = vcmp.ne.s32.totalorder %v527, %v560
    %vm571 = vcmp.ne.s32.totalorder %v527, %v561
    %vm572 = vcmp.ne.s32.totalorder %v528, %v560
    %vm573 = vcmp.ne.s32.totalorder %v528, %v561
    %vm574 = vcmp.ne.s32.totalorder %v529, %v560
    %vm575 = vcmp.ne.s32.totalorder %v529, %v561
    %vm576 = vcmp.ne.s32.totalorder %v530, %v560
    %vm577 = vcmp.ne.s32.totalorder %v530, %v561
    %vm578 = vcmp.ne.s32.totalorder %v531, %v560
    %vm579 = vcmp.ne.s32.totalorder %v531, %v561
    %vm580 = vcmp.ne.s32.totalorder %v532, %v560
    %vm581 = vcmp.ne.s32.totalorder %v532, %v561
    %vm582 = vcmp.ne.s32.totalorder %v533, %v560
    %vm583 = vcmp.ne.s32.totalorder %v533, %v561
    %vm584 = vcmp.ne.s32.totalorder %v534, %v560
    %vm585 = vcmp.ne.s32.totalorder %v534, %v561
    %vm586 = vcmp.ne.s32.totalorder %v535, %v560
    %vm587 = vcmp.ne.s32.totalorder %v535, %v561
    %vm588 = vcmp.ne.s32.totalorder %v536, %v560
    %vm589 = vcmp.ne.s32.totalorder %v536, %v561
    %vm590 = vcmp.ne.s32.totalorder %v537, %v560
    %vm591 = vcmp.ne.s32.totalorder %v537, %v561
    %vm592 = vcmp.ne.s32.totalorder %v538, %v560
    %vm593 = vcmp.ne.s32.totalorder %v538, %v561
    %vm594 = vcmp.ne.s32.totalorder %v539, %v560
    %vm595 = vcmp.ne.s32.totalorder %v539, %v561
    %vm596 = vcmp.ne.s32.totalorder %v540, %v560
    %vm597 = vcmp.ne.s32.totalorder %v540, %v561
    %vm598 = vcmp.ne.s32.totalorder %v541, %v560
    %vm599 = vcmp.ne.s32.totalorder %v541, %v561
    %vm600 = vcmp.ne.s32.totalorder %v542, %v560
    %vm601 = vcmp.ne.s32.totalorder %v542, %v561
    %vm602 = vcmp.ne.s32.totalorder %v543, %v560
    %vm603 = vcmp.ne.s32.totalorder %v543, %v561
    %vm604 = vcmp.ne.s32.totalorder %v544, %v560
    %vm605 = vcmp.ne.s32.totalorder %v544, %v561
    %vm606 = vcmp.ne.s32.totalorder %v545, %v560
    %vm607 = vcmp.ne.s32.totalorder %v545, %v561
    %vm608 = vcmp.ne.s32.totalorder %v546, %v560
    %vm609 = vcmp.ne.s32.totalorder %v546, %v561
    %vm610 = vcmp.ne.s32.totalorder %v547, %v560
    %vm611 = vcmp.ne.s32.totalorder %v547, %v561
    %vm612 = vcmp.ne.s32.totalorder %v548, %v560
    %vm613 = vcmp.ne.s32.totalorder %v548, %v561
    %vm614 = vcmp.ne.s32.totalorder %v549, %v560
    %vm615 = vcmp.ne.s32.totalorder %v549, %v561
    %vm616 = vcmp.ne.s32.totalorder %v550, %v560
    %vm617 = vcmp.ne.s32.totalorder %v550, %v561
    %vm618 = vcmp.ne.s32.totalorder %v551, %v560
    %vm619 = vcmp.ne.s32.totalorder %v551, %v561
    %vm620 = vcmp.ne.s32.totalorder %v552, %v560
    %vm621 = vcmp.ne.s32.totalorder %v552, %v561
    %vm622 = vcmp.ne.s32.totalorder %v553, %v560
    %vm623 = vcmp.ne.s32.totalorder %v553, %v561
    %vm624 = vcmp.ne.s32.totalorder %v554, %v560
    %vm625 = vcmp.ne.s32.totalorder %v554, %v561
    %vm626 = vcmp.lt.s32.totalorder %v560, 8
    %vm627 = vcmp.lt.s32.totalorder %v561, 8
    %v628 = vsel %vm626, 1, 0
    %v629 = vsel %vm627, 1, 0
    %vm630 = vcmp.eq.s32.totalorder %v628, 1
    %vm631 = vcmp.eq.s32.totalorder %v629, 1
    %vm632 = vmand %vm562, %vm630
    %vm633 = vmand %vm563, %vm631
    %vm634 = vmand %vm564, %vm630
    %vm635 = vmand %vm565, %vm631
    %vm636 = vmand %vm566, %vm630
    %vm637 = vmand %vm567, %vm631
    %vm638 = vmand %vm568, %vm630
    %vm639 = vmand %vm569, %vm631
    %vm640 = vmand %vm570, %vm630
    %vm641 = vmand %vm571, %vm631
    %vm642 = vmand %vm572, %vm630
    %vm643 = vmand %vm573, %vm631
    %vm644 = vmand %vm574, %vm630
    %vm645 = vmand %vm575, %vm631
    %vm646 = vmand %vm576, %vm630
    %vm647 = vmand %vm577, %vm631
    %vm648 = vmand %vm578, %vm630
    %vm649 = vmand %vm579, %vm631
    %vm650 = vmand %vm580, %vm630
    %vm651 = vmand %vm581, %vm631
    %vm652 = vmand %vm582, %vm630
    %vm653 = vmand %vm583, %vm631
    %vm654 = vmand %vm584, %vm630
    %vm655 = vmand %vm585, %vm631
    %vm656 = vmand %vm586, %vm630
    %vm657 = vmand %vm587, %vm631
    %vm658 = vmand %vm588, %vm630
    %vm659 = vmand %vm589, %vm631
    %vm660 = vmand %vm590, %vm630
    %vm661 = vmand %vm591, %vm631
    %vm662 = vmand %vm592, %vm630
    %vm663 = vmand %vm593, %vm631
    %vm664 = vmand %vm594, %vm630
    %vm665 = vmand %vm595, %vm631
    %vm666 = vmand %vm596, %vm630
    %vm667 = vmand %vm597, %vm631
    %vm668 = vmand %vm598, %vm630
    %vm669 = vmand %vm599, %vm631
    %vm670 = vmand %vm600, %vm630
    %vm671 = vmand %vm601, %vm631
    %vm672 = vmand %vm602, %vm630
    %vm673 = vmand %vm603, %vm631
    %vm674 = vmand %vm604, %vm630
    %vm675 = vmand %vm605, %vm631
    %vm676 = vmand %vm606, %vm630
    %vm677 = vmand %vm607, %vm631
    %vm678 = vmand %vm608, %vm630
    %vm679 = vmand %vm609, %vm631
    %vm680 = vmand %vm610, %vm630
    %vm681 = vmand %vm611, %vm631
    %vm682 = vmand %vm612, %vm630
    %vm683 = vmand %vm613, %vm631
    %vm684 = vmand %vm614, %vm630
    %vm685 = vmand %vm615, %vm631
    %vm686 = vmand %vm616, %vm630
    %vm687 = vmand %vm617, %vm631
    %vm688 = vmand %vm618, %vm630
    %vm689 = vmand %vm619, %vm631
    %vm690 = vmand %vm620, %vm630
    %vm691 = vmand %vm621, %vm631
    %vm692 = vmand %vm622, %vm630
    %vm693 = vmand %vm623, %vm631
    %vm694 = vmand %vm624, %vm630
    %vm695 = vmand %vm625, %vm631
    %v696 = vld [vmem:[%s0] sm:$0xff]
    %v697 = vld [vmem:[%s0 + $0x8] sm:$0xff]
    %v698 = vld [vmem:[%s0 + $0x10] sm:$0xff]
    %v699 = vld [vmem:[%s0 + $0x18] sm:$0xff]
    %v700 = vld [vmem:[%s0 + $0x20] sm:$0xff]
    %v701 = vld [vmem:[%s0 + $0x28] sm:$0xff]
    %v702 = vld [vmem:[%s0 + $0x30] sm:$0xff]
    %v703 = vld [vmem:[%s0 + $0x38] sm:$0xff]
    %v704 = vld [vmem:[%s0 + $0x40] sm:$0xff]
    %v705 = vld [vmem:[%s0 + $0x48] sm:$0xff]
    %v706 = vld [vmem:[%s0 + $0x50] sm:$0xff]
    %v707 = vld [vmem:[%s0 + $0x58] sm:$0xff]
    %v708 = vld [vmem:[%s0 + $0x60] sm:$0xff]
    %v709 = vld [vmem:[%s0 + $0x68] sm:$0xff]
    %v710 = vld [vmem:[%s0 + $0x70] sm:$0xff]
    %v711 = vld [vmem:[%s0 + $0x78] sm:$0xff]
    %v712 = vld [vmem:[%s0 + $0x80] sm:$0xff]
    %v713 = vld [vmem:[%s0 + $0x88] sm:$0xff]
    %v714 = vld [vmem:[%s0 + $0x90] sm:$0xff]
    %v715 = vld [vmem:[%s0 + $0x98] sm:$0xff]
    %v716 = vld [vmem:[%s0 + $0xa0] sm:$0xff]
    %v717 = vld [vmem:[%s0 + $0xa8] sm:$0xff]
    %v718 = vld [vmem:[%s0 + $0xb0] sm:$0xff]
    %v719 = vld [vmem:[%s0 + $0xb8] sm:$0xff]
    %v720 = vld [vmem:[%s0 + $0xc0] sm:$0xff]
    %v721 = vld [vmem:[%s0 + $0xc8] sm:$0xff]
    %v722 = vld [vmem:[%s0 + $0xd0] sm:$0xff]
    %v723 = vld [vmem:[%s0 + $0xd8] sm:$0xff]
    %v724 = vld [vmem:[%s0 + $0xe0] sm:$0xff]
    %v725 = vld [vmem:[%s0 + $0xe8] sm:$0xff]
    %v726 = vld [vmem:[%s0 + $0xf0] sm:$0xff]
    %v727 = vld [vmem:[%s0 + $0xf8] sm:$0xff]
    %v728 = vld [vmem:[%s1] sm:$0x3]
    %729 = vset.pattern.permute.xlu0 0
    %730 = vperm.xlu0 %729, %v696
    %v731 = vpop.permute.xlu0 %730
    %732 = vset.pattern.permute.xlu0 0
    %733 = vperm.xlu0 %732, %v697
    %v734 = vpop.permute.xlu0 %733
    %735 = vset.pattern.permute.xlu0 0
    %736 = vperm.xlu0 %735, %v698
    %v737 = vpop.permute.xlu0 %736
    %738 = vset.pattern.permute.xlu0 0
    %739 = vperm.xlu0 %738, %v699
    %v740 = vpop.permute.xlu0 %739
    %741 = vset.pattern.permute.xlu0 0
    %742 = vperm.xlu0 %741, %v700
    %v743 = vpop.permute.xlu0 %742
    %744 = vset.pattern.permute.xlu0 0
    %745 = vperm.xlu0 %744, %v701
    %v746 = vpop.permute.xlu0 %745
    %747 = vset.pattern.permute.xlu0 0
    %748 = vperm.xlu0 %747, %v702
    %v749 = vpop.permute.xlu0 %748
    %750 = vset.pattern.permute.xlu0 0
    %751 = vperm.xlu0 %750, %v703
    %v752 = vpop.permute.xlu0 %751
    %753 = vset.pattern.permute.xlu0 0
    %754 = vperm.xlu0 %753, %v704
    %v755 = vpop.permute.xlu0 %754
    %756 = vset.pattern.permute.xlu0 0
    %757 = vperm.xlu0 %756, %v705
    %v758 = vpop.permute.xlu0 %757
    %759 = vset.pattern.permute.xlu0 0
    %760 = vperm.xlu0 %759, %v706
    %v761 = vpop.permute.xlu0 %760
    %762 = vset.pattern.permute.xlu0 0
    %763 = vperm.xlu0 %762, %v707
    %v764 = vpop.permute.xlu0 %763
    %765 = vset.pattern.permute.xlu0 0
    %766 = vperm.xlu0 %765, %v708
    %v767 = vpop.permute.xlu0 %766
    %768 = vset.pattern.permute.xlu0 0
    %769 = vperm.xlu0 %768, %v709
    %v770 = vpop.permute.xlu0 %769
    %771 = vset.pattern.permute.xlu0 0
    %772 = vperm.xlu0 %771, %v710
    %v773 = vpop.permute.xlu0 %772
    %774 = vset.pattern.permute.xlu0 0
    %775 = vperm.xlu0 %774, %v711
    %v776 = vpop.permute.xlu0 %775
    %777 = vset.pattern.permute.xlu0 0
    %778 = vperm.xlu0 %777, %v712
    %v779 = vpop.permute.xlu0 %778
    %780 = vset.pattern.permute.xlu0 0
    %781 = vperm.xlu0 %780, %v713
    %v782 = vpop.permute.xlu0 %781
    %783 = vset.pattern.permute.xlu0 0
    %784 = vperm.xlu0 %783, %v714
    %v785 = vpop.permute.xlu0 %784
    %786 = vset.pattern.permute.xlu0 0
    %787 = vperm.xlu0 %786, %v715
    %v788 = vpop.permute.xlu0 %787
    %789 = vset.pattern.permute.xlu0 0
    %790 = vperm.xlu0 %789, %v716
    %v791 = vpop.permute.xlu0 %790
    %792 = vset.pattern.permute.xlu0 0
    %793 = vperm.xlu0 %792, %v717
    %v794 = vpop.permute.xlu0 %793
    %795 = vset.pattern.permute.xlu0 0
    %796 = vperm.xlu0 %795, %v718
    %v797 = vpop.permute.xlu0 %796
    %798 = vset.pattern.permute.xlu0 0
    %799 = vperm.xlu0 %798, %v719
    %v800 = vpop.permute.xlu0 %799
    %801 = vset.pattern.permute.xlu0 0
    %802 = vperm.xlu0 %801, %v720
    %v803 = vpop.permute.xlu0 %802
    %804 = vset.pattern.permute.xlu0 0
    %805 = vperm.xlu0 %804, %v721
    %v806 = vpop.permute.xlu0 %805
    %807 = vset.pattern.permute.xlu0 0
    %808 = vperm.xlu0 %807, %v722
    %v809 = vpop.permute.xlu0 %808
    %810 = vset.pattern.permute.xlu0 0
    %811 = vperm.xlu0 %810, %v723
    %v812 = vpop.permute.xlu0 %811
    %813 = vset.pattern.permute.xlu0 0
    %814 = vperm.xlu0 %813, %v724
    %v815 = vpop.permute.xlu0 %814
    %816 = vset.pattern.permute.xlu0 0
    %817 = vperm.xlu0 %816, %v725
    %v818 = vpop.permute.xlu0 %817
    %819 = vset.pattern.permute.xlu0 0
    %820 = vperm.xlu0 %819, %v726
    %v821 = vpop.permute.xlu0 %820
    %822 = vset.pattern.permute.xlu0 0
    %823 = vperm.xlu0 %822, %v727
    %v824 = vpop.permute.xlu0 %823
    %v825 = vperm.slane %v728, 0
    %v826 = vperm.slane %v728, 1
    %vm827 = vcmp.eq.s32.totalorder %v731, %v825
    %vm828 = vcmp.eq.s32.totalorder %v731, %v826
    %vm829 = vcmp.eq.s32.totalorder %v734, %v825
    %vm830 = vcmp.eq.s32.totalorder %v734, %v826
    %vm831 = vcmp.eq.s32.totalorder %v737, %v825
    %vm832 = vcmp.eq.s32.totalorder %v737, %v826
    %vm833 = vcmp.eq.s32.totalorder %v740, %v825
    %vm834 = vcmp.eq.s32.totalorder %v740, %v826
    %vm835 = vcmp.eq.s32.totalorder %v743, %v825
    %vm836 = vcmp.eq.s32.totalorder %v743, %v826
    %vm837 = vcmp.eq.s32.totalorder %v746, %v825
    %vm838 = vcmp.eq.s32.totalorder %v746, %v826
    %vm839 = vcmp.eq.s32.totalorder %v749, %v825
    %vm840 = vcmp.eq.s32.totalorder %v749, %v826
    %vm841 = vcmp.eq.s32.totalorder %v752, %v825
    %vm842 = vcmp.eq.s32.totalorder %v752, %v826
    %vm843 = vcmp.eq.s32.totalorder %v755, %v825
    %vm844 = vcmp.eq.s32.totalorder %v755, %v826
    %vm845 = vcmp.eq.s32.totalorder %v758, %v825
    %vm846 = vcmp.eq.s32.totalorder %v758, %v826
    %vm847 = vcmp.eq.s32.totalorder %v761, %v825
    %vm848 = vcmp.eq.s32.totalorder %v761, %v826
    %vm849 = vcmp.eq.s32.totalorder %v764, %v825
    %vm850 = vcmp.eq.s32.totalorder %v764, %v826
    %vm851 = vcmp.eq.s32.totalorder %v767, %v825
    %vm852 = vcmp.eq.s32.totalorder %v767, %v826
    %vm853 = vcmp.eq.s32.totalorder %v770, %v825
    %vm854 = vcmp.eq.s32.totalorder %v770, %v826
    %vm855 = vcmp.eq.s32.totalorder %v773, %v825
    %vm856 = vcmp.eq.s32.totalorder %v773, %v826
    %vm857 = vcmp.eq.s32.totalorder %v776, %v825
    %vm858 = vcmp.eq.s32.totalorder %v776, %v826
    %vm859 = vcmp.eq.s32.totalorder %v779, %v825
    %vm860 = vcmp.eq.s32.totalorder %v779, %v826
    %vm861 = vcmp.eq.s32.totalorder %v782, %v825
    %vm862 = vcmp.eq.s32.totalorder %v782, %v826
    %vm863 = vcmp.eq.s32.totalorder %v785, %v825
    %vm864 = vcmp.eq.s32.totalorder %v785, %v826
    %vm865 = vcmp.eq.s32.totalorder %v788, %v825
    %vm866 = vcmp.eq.s32.totalorder %v788, %v826
    %vm867 = vcmp.eq.s32.totalorder %v791, %v825
    %vm868 = vcmp.eq.s32.totalorder %v791, %v826
    %vm869 = vcmp.eq.s32.totalorder %v794, %v825
    %vm870 = vcmp.eq.s32.totalorder %v794, %v826
    %vm871 = vcmp.eq.s32.totalorder %v797, %v825
    %vm872 = vcmp.eq.s32.totalorder %v797, %v826
    %vm873 = vcmp.eq.s32.totalorder %v800, %v825
    %vm874 = vcmp.eq.s32.totalorder %v800, %v826
    %vm875 = vcmp.eq.s32.totalorder %v803, %v825
    %vm876 = vcmp.eq.s32.totalorder %v803, %v826
    %vm877 = vcmp.eq.s32.totalorder %v806, %v825
    %vm878 = vcmp.eq.s32.totalorder %v806, %v826
    %vm879 = vcmp.eq.s32.totalorder %v809, %v825
    %vm880 = vcmp.eq.s32.totalorder %v809, %v826
    %vm881 = vcmp.eq.s32.totalorder %v812, %v825
    %vm882 = vcmp.eq.s32.totalorder %v812, %v826
    %vm883 = vcmp.eq.s32.totalorder %v815, %v825
    %vm884 = vcmp.eq.s32.totalorder %v815, %v826
    %vm885 = vcmp.eq.s32.totalorder %v818, %v825
    %vm886 = vcmp.eq.s32.totalorder %v818, %v826
    %vm887 = vcmp.eq.s32.totalorder %v821, %v825
    %vm888 = vcmp.eq.s32.totalorder %v821, %v826
    %vm889 = vcmp.eq.s32.totalorder %v824, %v825
    %vm890 = vcmp.eq.s32.totalorder %v824, %v826
    %vm891 = vmand %vm827, %vm632
    %vm892 = vmand %vm828, %vm633
    %vm893 = vmand %vm829, %vm634
    %vm894 = vmand %vm830, %vm635
    %vm895 = vmand %vm831, %vm636
    %vm896 = vmand %vm832, %vm637
    %vm897 = vmand %vm833, %vm638
    %vm898 = vmand %vm834, %vm639
    %vm899 = vmand %vm835, %vm640
    %vm900 = vmand %vm836, %vm641
    %vm901 = vmand %vm837, %vm642
    %vm902 = vmand %vm838, %vm643
    %vm903 = vmand %vm839, %vm644
    %vm904 = vmand %vm840, %vm645
    %vm905 = vmand %vm841, %vm646
    %vm906 = vmand %vm842, %vm647
    %vm907 = vmand %vm843, %vm648
    %vm908 = vmand %vm844, %vm649
    %vm909 = vmand %vm845, %vm650
    %vm910 = vmand %vm846, %vm651
    %vm911 = vmand %vm847, %vm652
    %vm912 = vmand %vm848, %vm653
    %vm913 = vmand %vm849, %vm654
    %vm914 = vmand %vm850, %vm655
    %vm915 = vmand %vm851, %vm656
    %vm916 = vmand %vm852, %vm657
    %vm917 = vmand %vm853, %vm658
    %vm918 = vmand %vm854, %vm659
    %vm919 = vmand %vm855, %vm660
    %vm920 = vmand %vm856, %vm661
    %vm921 = vmand %vm857, %vm662
    %vm922 = vmand %vm858, %vm663
    %vm923 = vmand %vm859, %vm664
    %vm924 = vmand %vm860, %vm665
    %vm925 = vmand %vm861, %vm666
    %vm926 = vmand %vm862, %vm667
    %vm927 = vmand %vm863, %vm668
    %vm928 = vmand %vm864, %vm669
    %vm929 = vmand %vm865, %vm670
    %vm930 = vmand %vm866, %vm671
    %vm931 = vmand %vm867, %vm672
    %vm932 = vmand %vm868, %vm673
    %vm933 = vmand %vm869, %vm674
    %vm934 = vmand %vm870, %vm675
    %vm935 = vmand %vm871, %vm676
    %vm936 = vmand %vm872, %vm677
    %vm937 = vmand %vm873, %vm678
    %vm938 = vmand %vm874, %vm679
    %vm939 = vmand %vm875, %vm680
    %vm940 = vmand %vm876, %vm681
    %vm941 = vmand %vm877, %vm682
    %vm942 = vmand %vm878, %vm683
    %vm943 = vmand %vm879, %vm684
    %vm944 = vmand %vm880, %vm685
    %vm945 = vmand %vm881, %vm686
    %vm946 = vmand %vm882, %vm687
    %vm947 = vmand %vm883, %vm688
    %vm948 = vmand %vm884, %vm689
    %vm949 = vmand %vm885, %vm690
    %vm950 = vmand %vm886, %vm691
    %vm951 = vmand %vm887, %vm692
    %vm952 = vmand %vm888, %vm693
    %vm953 = vmand %vm889, %vm694
    %vm954 = vmand %vm890, %vm695
    %v955 = vsel %vm891, 1.0, 0.0
    %v956 = vsel %vm892, 1.0, 0.0
    %v957 = vsel %vm893, 1.0, 0.0
    %v958 = vsel %vm894, 1.0, 0.0
    %v959 = vsel %vm895, 1.0, 0.0
    %v960 = vsel %vm896, 1.0, 0.0
    %v961 = vsel %vm897, 1.0, 0.0
    %v962 = vsel %vm898, 1.0, 0.0
    %v963 = vsel %vm899, 1.0, 0.0
    %v964 = vsel %vm900, 1.0, 0.0
    %v965 = vsel %vm901, 1.0, 0.0
    %v966 = vsel %vm902, 1.0, 0.0
    %v967 = vsel %vm903, 1.0, 0.0
    %v968 = vsel %vm904, 1.0, 0.0
    %v969 = vsel %vm905, 1.0, 0.0
    %v970 = vsel %vm906, 1.0, 0.0
    %v971 = vsel %vm907, 1.0, 0.0
    %v972 = vsel %vm908, 1.0, 0.0
    %v973 = vsel %vm909, 1.0, 0.0
    %v974 = vsel %vm910, 1.0, 0.0
    %v975 = vsel %vm911, 1.0, 0.0
    %v976 = vsel %vm912, 1.0, 0.0
    %v977 = vsel %vm913, 1.0, 0.0
    %v978 = vsel %vm914, 1.0, 0.0
    %v979 = vsel %vm915, 1.0, 0.0
    %v980 = vsel %vm916, 1.0, 0.0
    %v981 = vsel %vm917, 1.0, 0.0
    %v982 = vsel %vm918, 1.0, 0.0
    %v983 = vsel %vm919, 1.0, 0.0
    %v984 = vsel %vm920, 1.0, 0.0
    %v985 = vsel %vm921, 1.0, 0.0
    %v986 = vsel %vm922, 1.0, 0.0
    %v987 = vsel %vm923, 1.0, 0.0
    %v988 = vsel %vm924, 1.0, 0.0
    %v989 = vsel %vm925, 1.0, 0.0
    %v990 = vsel %vm926, 1.0, 0.0
    %v991 = vsel %vm927, 1.0, 0.0
    %v992 = vsel %vm928, 1.0, 0.0
    %v993 = vsel %vm929, 1.0, 0.0
    %v994 = vsel %vm930, 1.0, 0.0
    %v995 = vsel %vm931, 1.0, 0.0
    %v996 = vsel %vm932, 1.0, 0.0
    %v997 = vsel %vm933, 1.0, 0.0
    %v998 = vsel %vm934, 1.0, 0.0
    %v999 = vsel %vm935, 1.0, 0.0
    %v1000 = vsel %vm936, 1.0, 0.0
    %v1001 = vsel %vm937, 1.0, 0.0
    %v1002 = vsel %vm938, 1.0, 0.0
    %v1003 = vsel %vm939, 1.0, 0.0
    %v1004 = vsel %vm940, 1.0, 0.0
    %v1005 = vsel %vm941, 1.0, 0.0
    %v1006 = vsel %vm942, 1.0, 0.0
    %v1007 = vsel %vm943, 1.0, 0.0
    %v1008 = vsel %vm944, 1.0, 0.0
    %v1009 = vsel %vm945, 1.0, 0.0
    %v1010 = vsel %vm946, 1.0, 0.0
    %v1011 = vsel %vm947, 1.0, 0.0
    %v1012 = vsel %vm948, 1.0, 0.0
    %v1013 = vsel %vm949, 1.0, 0.0
    %v1014 = vsel %vm950, 1.0, 0.0
    %v1015 = vsel %vm951, 1.0, 0.0
    %v1016 = vsel %vm952, 1.0, 0.0
    %v1017 = vsel %vm953, 1.0, 0.0
    %v1018 = vsel %vm954, 1.0, 0.0
    %v1019 = vsel %vm630, %v280, -inf
    %v1020 = vsel %vm631, %v393, -inf
    %v1021 = vsel %vm630, %v283, -inf
    %v1022 = vsel %vm631, %v396, -inf
    %v1023 = vsel %vm630, %v286, -inf
    %v1024 = vsel %vm631, %v399, -inf
    %v1025 = vsel %vm630, %v289, -inf
    %v1026 = vsel %vm631, %v402, -inf
    %v1027 = vsel %vm630, %v292, -inf
    %v1028 = vsel %vm631, %v405, -inf
    %v1029 = vsel %vm630, %v295, -inf
    %v1030 = vsel %vm631, %v408, -inf
    %v1031 = vsel %vm630, %v298, -inf
    %v1032 = vsel %vm631, %v411, -inf
    %v1033 = vsel %vm630, %v301, -inf
    %v1034 = vsel %vm631, %v414, -inf
    %v1035 = vsel %vm630, %v304, -inf
    %v1036 = vsel %vm631, %v417, -inf
    %v1037 = vsel %vm630, %v307, -inf
    %v1038 = vsel %vm631, %v420, -inf
    %v1039 = vsel %vm630, %v310, -inf
    %v1040 = vsel %vm631, %v423, -inf
    %v1041 = vsel %vm630, %v313, -inf
    %v1042 = vsel %vm631, %v426, -inf
    %v1043 = vsel %vm630, %v316, -inf
    %v1044 = vsel %vm631, %v429, -inf
    %v1045 = vsel %vm630, %v319, -inf
    %v1046 = vsel %vm631, %v432, -inf
    %v1047 = vsel %vm630, %v322, -inf
    %v1048 = vsel %vm631, %v435, -inf
    %v1049 = vsel %vm630, %v325, -inf
    %v1050 = vsel %vm631, %v438, -inf
    %v1051 = vsel %vm630, %v328, -inf
    %v1052 = vsel %vm631, %v441, -inf
    %v1053 = vsel %vm630, %v331, -inf
    %v1054 = vsel %vm631, %v444, -inf
    %v1055 = vsel %vm630, %v334, -inf
    %v1056 = vsel %vm631, %v447, -inf
    %v1057 = vsel %vm630, %v337, -inf
    %v1058 = vsel %vm631, %v450, -inf
    %v1059 = vsel %vm630, %v340, -inf
    %v1060 = vsel %vm631, %v453, -inf
    %v1061 = vsel %vm630, %v343, -inf
    %v1062 = vsel %vm631, %v456, -inf
    %v1063 = vsel %vm630, %v346, -inf
    %v1064 = vsel %vm631, %v459, -inf
    %v1065 = vsel %vm630, %v349, -inf
    %v1066 = vsel %vm631, %v462, -inf
    %v1067 = vsel %vm630, %v352, -inf
    %v1068 = vsel %vm631, %v465, -inf
    %v1069 = vsel %vm630, %v355, -inf
    %v1070 = vsel %vm631, %v468, -inf
    %v1071 = vsel %vm630, %v358, -inf
    %v1072 = vsel %vm631, %v471, -inf
    %v1073 = vsel %vm630, %v361, -inf
    %v1074 = vsel %vm631, %v474, -inf
    %v1075 = vsel %vm630, %v364, -inf
    %v1076 = vsel %vm631, %v477, -inf
    %v1077 = vsel %vm630, %v367, -inf
    %v1078 = vsel %vm631, %v480, -inf
    %v1079 = vsel %vm630, %v370, -inf
    %v1080 = vsel %vm631, %v483, -inf
    %v1081 = vsel %vm630, %v373, -inf
    %v1082 = vsel %vm631, %v486, -inf
    %v1083 = vld [vmem:[#allocation2] sm:$0xff]
    %v1084 = vld [vmem:[#allocation2 + $0x8] sm:$0xff]
    %v1085 = vld [vmem:[#allocation2 + $0x10] sm:$0xff]
    %v1086 = vld [vmem:[#allocation2 + $0x18] sm:$0xff]
    %v1087 = vld [vmem:[#allocation2 + $0x20] sm:$0xff]
    %v1088 = vld [vmem:[#allocation2 + $0x28] sm:$0xff]
    %v1089 = vld [vmem:[#allocation2 + $0x30] sm:$0xff]
    %v1090 = vld [vmem:[#allocation2 + $0x38] sm:$0xff]
    %v1091 = vld [vmem:[#allocation2 + $0x40] sm:$0xff]
    %v1092 = vld [vmem:[#allocation2 + $0x48] sm:$0xff]
    %v1093 = vld [vmem:[#allocation2 + $0x50] sm:$0xff]
    %v1094 = vld [vmem:[#allocation2 + $0x58] sm:$0xff]
    %v1095 = vld [vmem:[#allocation2 + $0x60] sm:$0xff]
    %v1096 = vld [vmem:[#allocation2 + $0x68] sm:$0xff]
    %v1097 = vld [vmem:[#allocation2 + $0x70] sm:$0xff]
    %v1098 = vld [vmem:[#allocation2 + $0x78] sm:$0xff]
    %v1099 = vld [vmem:[#allocation2 + $0x80] sm:$0xff]
    %v1100 = vld [vmem:[#allocation2 + $0x88] sm:$0xff]
    %v1101 = vld [vmem:[#allocation2 + $0x90] sm:$0xff]
    %v1102 = vld [vmem:[#allocation2 + $0x98] sm:$0xff]
    %v1103 = vld [vmem:[#allocation2 + $0xa0] sm:$0xff]
    %v1104 = vld [vmem:[#allocation2 + $0xa8] sm:$0xff]
    %v1105 = vld [vmem:[#allocation2 + $0xb0] sm:$0xff]
    %v1106 = vld [vmem:[#allocation2 + $0xb8] sm:$0xff]
    %v1107 = vld [vmem:[#allocation2 + $0xc0] sm:$0xff]
    %v1108 = vld [vmem:[#allocation2 + $0xc8] sm:$0xff]
    %v1109 = vld [vmem:[#allocation2 + $0xd0] sm:$0xff]
    %v1110 = vld [vmem:[#allocation2 + $0xd8] sm:$0xff]
    %v1111 = vld [vmem:[#allocation2 + $0xe0] sm:$0xff]
    %v1112 = vld [vmem:[#allocation2 + $0xe8] sm:$0xff]
    %v1113 = vld [vmem:[#allocation2 + $0xf0] sm:$0xff]
    %v1114 = vld [vmem:[#allocation2 + $0xf8] sm:$0xff]
    %v1115 = vmax.f32 %v1019, %v1020
    %1116 = vmax.xlane.f32.xlu0 %v1115
    %v1117 = vpop.xlane.xlu0 %1116
    %v1118 = vmax.f32 %v1021, %v1022
    %1119 = vmax.xlane.f32.xlu0 %v1118
    %v1120 = vpop.xlane.xlu0 %1119
    %v1121 = vmax.f32 %v1023, %v1024
    %1122 = vmax.xlane.f32.xlu0 %v1121
    %v1123 = vpop.xlane.xlu0 %1122
    %v1124 = vmax.f32 %v1025, %v1026
    %1125 = vmax.xlane.f32.xlu0 %v1124
    %v1126 = vpop.xlane.xlu0 %1125
    %v1127 = vmax.f32 %v1027, %v1028
    %1128 = vmax.xlane.f32.xlu0 %v1127
    %v1129 = vpop.xlane.xlu0 %1128
    %v1130 = vmax.f32 %v1029, %v1030
    %1131 = vmax.xlane.f32.xlu0 %v1130
    %v1132 = vpop.xlane.xlu0 %1131
    %v1133 = vmax.f32 %v1031, %v1032
    %1134 = vmax.xlane.f32.xlu0 %v1133
    %v1135 = vpop.xlane.xlu0 %1134
    %v1136 = vmax.f32 %v1033, %v1034
    %1137 = vmax.xlane.f32.xlu0 %v1136
    %v1138 = vpop.xlane.xlu0 %1137
    %v1139 = vmax.f32 %v1035, %v1036
    %1140 = vmax.xlane.f32.xlu0 %v1139
    %v1141 = vpop.xlane.xlu0 %1140
    %v1142 = vmax.f32 %v1037, %v1038
    %1143 = vmax.xlane.f32.xlu0 %v1142
    %v1144 = vpop.xlane.xlu0 %1143
    %v1145 = vmax.f32 %v1039, %v1040
    %1146 = vmax.xlane.f32.xlu0 %v1145
    %v1147 = vpop.xlane.xlu0 %1146
    %v1148 = vmax.f32 %v1041, %v1042
    %1149 = vmax.xlane.f32.xlu0 %v1148
    %v1150 = vpop.xlane.xlu0 %1149
    %v1151 = vmax.f32 %v1043, %v1044
    %1152 = vmax.xlane.f32.xlu0 %v1151
    %v1153 = vpop.xlane.xlu0 %1152
    %v1154 = vmax.f32 %v1045, %v1046
    %1155 = vmax.xlane.f32.xlu0 %v1154
    %v1156 = vpop.xlane.xlu0 %1155
    %v1157 = vmax.f32 %v1047, %v1048
    %1158 = vmax.xlane.f32.xlu0 %v1157
    %v1159 = vpop.xlane.xlu0 %1158
    %v1160 = vmax.f32 %v1049, %v1050
    %1161 = vmax.xlane.f32.xlu0 %v1160
    %v1162 = vpop.xlane.xlu0 %1161
    %v1163 = vmax.f32 %v1051, %v1052
    %1164 = vmax.xlane.f32.xlu0 %v1163
    %v1165 = vpop.xlane.xlu0 %1164
    %v1166 = vmax.f32 %v1053, %v1054
    %1167 = vmax.xlane.f32.xlu0 %v1166
    %v1168 = vpop.xlane.xlu0 %1167
    %v1169 = vmax.f32 %v1055, %v1056
    %1170 = vmax.xlane.f32.xlu0 %v1169
    %v1171 = vpop.xlane.xlu0 %1170
    %v1172 = vmax.f32 %v1057, %v1058
    %1173 = vmax.xlane.f32.xlu0 %v1172
    %v1174 = vpop.xlane.xlu0 %1173
    %v1175 = vmax.f32 %v1059, %v1060
    %1176 = vmax.xlane.f32.xlu0 %v1175
    %v1177 = vpop.xlane.xlu0 %1176
    %v1178 = vmax.f32 %v1061, %v1062
    %1179 = vmax.xlane.f32.xlu0 %v1178
    %v1180 = vpop.xlane.xlu0 %1179
    %v1181 = vmax.f32 %v1063, %v1064
    %1182 = vmax.xlane.f32.xlu0 %v1181
    %v1183 = vpop.xlane.xlu0 %1182
    %v1184 = vmax.f32 %v1065, %v1066
    %1185 = vmax.xlane.f32.xlu0 %v1184
    %v1186 = vpop.xlane.xlu0 %1185
    %v1187 = vmax.f32 %v1067, %v1068
    %1188 = vmax.xlane.f32.xlu0 %v1187
    %v1189 = vpop.xlane.xlu0 %1188
    %v1190 = vmax.f32 %v1069, %v1070
    %1191 = vmax.xlane.f32.xlu0 %v1190
    %v1192 = vpop.xlane.xlu0 %1191
    %v1193 = vmax.f32 %v1071, %v1072
    %1194 = vmax.xlane.f32.xlu0 %v1193
    %v1195 = vpop.xlane.xlu0 %1194
    %v1196 = vmax.f32 %v1073, %v1074
    %1197 = vmax.xlane.f32.xlu0 %v1196
    %v1198 = vpop.xlane.xlu0 %1197
    %v1199 = vmax.f32 %v1075, %v1076
    %1200 = vmax.xlane.f32.xlu0 %v1199
    %v1201 = vpop.xlane.xlu0 %1200
    %v1202 = vmax.f32 %v1077, %v1078
    %1203 = vmax.xlane.f32.xlu0 %v1202
    %v1204 = vpop.xlane.xlu0 %1203
    %v1205 = vmax.f32 %v1079, %v1080
    %1206 = vmax.xlane.f32.xlu0 %v1205
    %v1207 = vpop.xlane.xlu0 %1206
    %v1208 = vmax.f32 %v1081, %v1082
    %1209 = vmax.xlane.f32.xlu0 %v1208
    %v1210 = vpop.xlane.xlu0 %1209
    %v1211 = vmax.f32 %v1083, %v1117
    %v1212 = vmax.f32 %v1084, %v1120
    %v1213 = vmax.f32 %v1085, %v1123
    %v1214 = vmax.f32 %v1086, %v1126
    %v1215 = vmax.f32 %v1087, %v1129
    %v1216 = vmax.f32 %v1088, %v1132
    %v1217 = vmax.f32 %v1089, %v1135
    %v1218 = vmax.f32 %v1090, %v1138
    %v1219 = vmax.f32 %v1091, %v1141
    %v1220 = vmax.f32 %v1092, %v1144
    %v1221 = vmax.f32 %v1093, %v1147
    %v1222 = vmax.f32 %v1094, %v1150
    %v1223 = vmax.f32 %v1095, %v1153
    %v1224 = vmax.f32 %v1096, %v1156
    %v1225 = vmax.f32 %v1097, %v1159
    %v1226 = vmax.f32 %v1098, %v1162
    %v1227 = vmax.f32 %v1099, %v1165
    %v1228 = vmax.f32 %v1100, %v1168
    %v1229 = vmax.f32 %v1101, %v1171
    %v1230 = vmax.f32 %v1102, %v1174
    %v1231 = vmax.f32 %v1103, %v1177
    %v1232 = vmax.f32 %v1104, %v1180
    %v1233 = vmax.f32 %v1105, %v1183
    %v1234 = vmax.f32 %v1106, %v1186
    %v1235 = vmax.f32 %v1107, %v1189
    %v1236 = vmax.f32 %v1108, %v1192
    %v1237 = vmax.f32 %v1109, %v1195
    %v1238 = vmax.f32 %v1110, %v1198
    %v1239 = vmax.f32 %v1111, %v1201
    %v1240 = vmax.f32 %v1112, %v1204
    %v1241 = vmax.f32 %v1113, %v1207
    %v1242 = vmax.f32 %v1114, %v1210
    %v1243 = vsub.f32 %v1083, %v1211
    %v1244 = vsub.f32 %v1084, %v1212
    %v1245 = vsub.f32 %v1085, %v1213
    %v1246 = vsub.f32 %v1086, %v1214
    %v1247 = vsub.f32 %v1087, %v1215
    %v1248 = vsub.f32 %v1088, %v1216
    %v1249 = vsub.f32 %v1089, %v1217
    %v1250 = vsub.f32 %v1090, %v1218
    %v1251 = vsub.f32 %v1091, %v1219
    %v1252 = vsub.f32 %v1092, %v1220
    %v1253 = vsub.f32 %v1093, %v1221
    %v1254 = vsub.f32 %v1094, %v1222
    %v1255 = vsub.f32 %v1095, %v1223
    %v1256 = vsub.f32 %v1096, %v1224
    %v1257 = vsub.f32 %v1097, %v1225
    %v1258 = vsub.f32 %v1098, %v1226
    %v1259 = vsub.f32 %v1099, %v1227
    %v1260 = vsub.f32 %v1100, %v1228
    %v1261 = vsub.f32 %v1101, %v1229
    %v1262 = vsub.f32 %v1102, %v1230
    %v1263 = vsub.f32 %v1103, %v1231
    %v1264 = vsub.f32 %v1104, %v1232
    %v1265 = vsub.f32 %v1105, %v1233
    %v1266 = vsub.f32 %v1106, %v1234
    %v1267 = vsub.f32 %v1107, %v1235
    %v1268 = vsub.f32 %v1108, %v1236
    %v1269 = vsub.f32 %v1109, %v1237
    %v1270 = vsub.f32 %v1110, %v1238
    %v1271 = vsub.f32 %v1111, %v1239
    %v1272 = vsub.f32 %v1112, %v1240
    %v1273 = vsub.f32 %v1113, %v1241
    %v1274 = vsub.f32 %v1114, %v1242
    %v1275 = vmul.f32 %v1243, 1.442695
    %v1276 = vpow.pop %v1275
    %v1277 = vmul.f32 %v1244, 1.442695
    %v1278 = vpow.pop %v1277
    %v1279 = vmul.f32 %v1245, 1.442695
    %v1280 = vpow.pop %v1279
    %v1281 = vmul.f32 %v1246, 1.442695
    %v1282 = vpow.pop %v1281
    %v1283 = vmul.f32 %v1247, 1.442695
    %v1284 = vpow.pop %v1283
    %v1285 = vmul.f32 %v1248, 1.442695
    %v1286 = vpow.pop %v1285
    %v1287 = vmul.f32 %v1249, 1.442695
    %v1288 = vpow.pop %v1287
    %v1289 = vmul.f32 %v1250, 1.442695
    %v1290 = vpow.pop %v1289
    %v1291 = vmul.f32 %v1251, 1.442695
    %v1292 = vpow.pop %v1291
    %v1293 = vmul.f32 %v1252, 1.442695
    %v1294 = vpow.pop %v1293
    %v1295 = vmul.f32 %v1253, 1.442695
    %v1296 = vpow.pop %v1295
    %v1297 = vmul.f32 %v1254, 1.442695
    %v1298 = vpow.pop %v1297
    %v1299 = vmul.f32 %v1255, 1.442695
    %v1300 = vpow.pop %v1299
    %v1301 = vmul.f32 %v1256, 1.442695
    %v1302 = vpow.pop %v1301
    %v1303 = vmul.f32 %v1257, 1.442695
    %v1304 = vpow.pop %v1303
    %v1305 = vmul.f32 %v1258, 1.442695
    %v1306 = vpow.pop %v1305
    %v1307 = vmul.f32 %v1259, 1.442695
    %v1308 = vpow.pop %v1307
    %v1309 = vmul.f32 %v1260, 1.442695
    %v1310 = vpow.pop %v1309
    %v1311 = vmul.f32 %v1261, 1.442695
    %v1312 = vpow.pop %v1311
    %v1313 = vmul.f32 %v1262, 1.442695
    %v1314 = vpow.pop %v1313
    %v1315 = vmul.f32 %v1263, 1.442695
    %v1316 = vpow.pop %v1315
    %v1317 = vmul.f32 %v1264, 1.442695
    %v1318 = vpow.pop %v1317
    %v1319 = vmul.f32 %v1265, 1.442695
    %v1320 = vpow.pop %v1319
    %v1321 = vmul.f32 %v1266, 1.442695
    %v1322 = vpow.pop %v1321
    %v1323 = vmul.f32 %v1267, 1.442695
    %v1324 = vpow.pop %v1323
    %v1325 = vmul.f32 %v1268, 1.442695
    %v1326 = vpow.pop %v1325
    %v1327 = vmul.f32 %v1269, 1.442695
    %v1328 = vpow.pop %v1327
    %v1329 = vmul.f32 %v1270, 1.442695
    %v1330 = vpow.pop %v1329
    %v1331 = vmul.f32 %v1271, 1.442695
    %v1332 = vpow.pop %v1331
    %v1333 = vmul.f32 %v1272, 1.442695
    %v1334 = vpow.pop %v1333
    %v1335 = vmul.f32 %v1273, 1.442695
    %v1336 = vpow.pop %v1335
    %v1337 = vmul.f32 %v1274, 1.442695
    %v1338 = vpow.pop %v1337
    %1340 = vset.pattern.permute.xlu0 0
    %1341 = vperm.xlu0 %1340, %v1211
    %v1342 = vpop.permute.xlu0 %1341
    %1345 = vset.pattern.permute.xlu0 0
    %1346 = vperm.xlu0 %1345, %v1212
    %v1347 = vpop.permute.xlu0 %1346
    %1350 = vset.pattern.permute.xlu0 0
    %1351 = vperm.xlu0 %1350, %v1213
    %v1352 = vpop.permute.xlu0 %1351
    %1355 = vset.pattern.permute.xlu0 0
    %1356 = vperm.xlu0 %1355, %v1214
    %v1357 = vpop.permute.xlu0 %1356
    %1360 = vset.pattern.permute.xlu0 0
    %1361 = vperm.xlu0 %1360, %v1215
    %v1362 = vpop.permute.xlu0 %1361
    %1365 = vset.pattern.permute.xlu0 0
    %1366 = vperm.xlu0 %1365, %v1216
    %v1367 = vpop.permute.xlu0 %1366
    %1370 = vset.pattern.permute.xlu0 0
    %1371 = vperm.xlu0 %1370, %v1217
    %v1372 = vpop.permute.xlu0 %1371
    %1375 = vset.pattern.permute.xlu0 0
    %1376 = vperm.xlu0 %1375, %v1218
    %v1377 = vpop.permute.xlu0 %1376
    %1380 = vset.pattern.permute.xlu0 0
    %1381 = vperm.xlu0 %1380, %v1219
    %v1382 = vpop.permute.xlu0 %1381
    %1385 = vset.pattern.permute.xlu0 0
    %1386 = vperm.xlu0 %1385, %v1220
    %v1387 = vpop.permute.xlu0 %1386
    %1390 = vset.pattern.permute.xlu0 0
    %1391 = vperm.xlu0 %1390, %v1221
    %v1392 = vpop.permute.xlu0 %1391
    %1395 = vset.pattern.permute.xlu0 0
    %1396 = vperm.xlu0 %1395, %v1222
    %v1397 = vpop.permute.xlu0 %1396
    %1400 = vset.pattern.permute.xlu0 0
    %1401 = vperm.xlu0 %1400, %v1223
    %v1402 = vpop.permute.xlu0 %1401
    %1405 = vset.pattern.permute.xlu0 0
    %1406 = vperm.xlu0 %1405, %v1224
    %v1407 = vpop.permute.xlu0 %1406
    %1410 = vset.pattern.permute.xlu0 0
    %1411 = vperm.xlu0 %1410, %v1225
    %v1412 = vpop.permute.xlu0 %1411
    %1415 = vset.pattern.permute.xlu0 0
    %1416 = vperm.xlu0 %1415, %v1226
    %v1417 = vpop.permute.xlu0 %1416
    %1420 = vset.pattern.permute.xlu0 0
    %1421 = vperm.xlu0 %1420, %v1227
    %v1422 = vpop.permute.xlu0 %1421
    %1425 = vset.pattern.permute.xlu0 0
    %1426 = vperm.xlu0 %1425, %v1228
    %v1427 = vpop.permute.xlu0 %1426
    %1430 = vset.pattern.permute.xlu0 0
    %1431 = vperm.xlu0 %1430, %v1229
    %v1432 = vpop.permute.xlu0 %1431
    %1435 = vset.pattern.permute.xlu0 0
    %1436 = vperm.xlu0 %1435, %v1230
    %v1437 = vpop.permute.xlu0 %1436
    %1440 = vset.pattern.permute.xlu0 0
    %1441 = vperm.xlu0 %1440, %v1231
    %v1442 = vpop.permute.xlu0 %1441
    %1445 = vset.pattern.permute.xlu0 0
    %1446 = vperm.xlu0 %1445, %v1232
    %v1447 = vpop.permute.xlu0 %1446
    %1450 = vset.pattern.permute.xlu0 0
    %1451 = vperm.xlu0 %1450, %v1233
    %v1452 = vpop.permute.xlu0 %1451
    %1455 = vset.pattern.permute.xlu0 0
    %1456 = vperm.xlu0 %1455, %v1234
    %v1457 = vpop.permute.xlu0 %1456
    %1460 = vset.pattern.permute.xlu0 0
    %1461 = vperm.xlu0 %1460, %v1235
    %v1462 = vpop.permute.xlu0 %1461
    %1465 = vset.pattern.permute.xlu0 0
    %1466 = vperm.xlu0 %1465, %v1236
    %v1467 = vpop.permute.xlu0 %1466
    %1470 = vset.pattern.permute.xlu0 0
    %1471 = vperm.xlu0 %1470, %v1237
    %v1472 = vpop.permute.xlu0 %1471
    %1475 = vset.pattern.permute.xlu0 0
    %1476 = vperm.xlu0 %1475, %v1238
    %v1477 = vpop.permute.xlu0 %1476
    %1480 = vset.pattern.permute.xlu0 0
    %1481 = vperm.xlu0 %1480, %v1239
    %v1482 = vpop.permute.xlu0 %1481
    %1485 = vset.pattern.permute.xlu0 0
    %1486 = vperm.xlu0 %1485, %v1240
    %v1487 = vpop.permute.xlu0 %1486
    %1490 = vset.pattern.permute.xlu0 0
    %1491 = vperm.xlu0 %1490, %v1241
    %v1492 = vpop.permute.xlu0 %1491
    %1495 = vset.pattern.permute.xlu0 0
    %1496 = vperm.xlu0 %1495, %v1242
    %v1497 = vpop.permute.xlu0 %1496
    %v1499 = vsub.f32 %v280, %v1342
    %v1500 = vsub.f32 %v393, %v1342
    %v1501 = vsub.f32 %v283, %v1347
    %v1502 = vsub.f32 %v396, %v1347
    %v1503 = vsub.f32 %v286, %v1352
    %v1504 = vsub.f32 %v399, %v1352
    %v1505 = vsub.f32 %v289, %v1357
    %v1506 = vsub.f32 %v402, %v1357
    %v1507 = vsub.f32 %v292, %v1362
    %v1508 = vsub.f32 %v405, %v1362
    %v1509 = vsub.f32 %v295, %v1367
    %v1510 = vsub.f32 %v408, %v1367
    %v1511 = vsub.f32 %v298, %v1372
    %v1512 = vsub.f32 %v411, %v1372
    %v1513 = vsub.f32 %v301, %v1377
    %v1514 = vsub.f32 %v414, %v1377
    %v1515 = vsub.f32 %v304, %v1382
    %v1516 = vsub.f32 %v417, %v1382
    %v1517 = vsub.f32 %v307, %v1387
    %v1518 = vsub.f32 %v420, %v1387
    %v1519 = vsub.f32 %v310, %v1392
    %v1520 = vsub.f32 %v423, %v1392
    %v1521 = vsub.f32 %v313, %v1397
    %v1522 = vsub.f32 %v426, %v1397
    %v1523 = vsub.f32 %v316, %v1402
    %v1524 = vsub.f32 %v429, %v1402
    %v1525 = vsub.f32 %v319, %v1407
    %v1526 = vsub.f32 %v432, %v1407
    %v1527 = vsub.f32 %v322, %v1412
    %v1528 = vsub.f32 %v435, %v1412
    %v1529 = vsub.f32 %v325, %v1417
    %v1530 = vsub.f32 %v438, %v1417
    %v1531 = vsub.f32 %v328, %v1422
    %v1532 = vsub.f32 %v441, %v1422
    %v1533 = vsub.f32 %v331, %v1427
    %v1534 = vsub.f32 %v444, %v1427
    %v1535 = vsub.f32 %v334, %v1432
    %v1536 = vsub.f32 %v447, %v1432
    %v1537 = vsub.f32 %v337, %v1437
    %v1538 = vsub.f32 %v450, %v1437
    %v1539 = vsub.f32 %v340, %v1442
    %v1540 = vsub.f32 %v453, %v1442
    %v1541 = vsub.f32 %v343, %v1447
    %v1542 = vsub.f32 %v456, %v1447
    %v1543 = vsub.f32 %v346, %v1452
    %v1544 = vsub.f32 %v459, %v1452
    %v1545 = vsub.f32 %v349, %v1457
    %v1546 = vsub.f32 %v462, %v1457
    %v1547 = vsub.f32 %v352, %v1462
    %v1548 = vsub.f32 %v465, %v1462
    %v1549 = vsub.f32 %v355, %v1467
    %v1550 = vsub.f32 %v468, %v1467
    %v1551 = vsub.f32 %v358, %v1472
    %v1552 = vsub.f32 %v471, %v1472
    %v1553 = vsub.f32 %v361, %v1477
    %v1554 = vsub.f32 %v474, %v1477
    %v1555 = vsub.f32 %v364, %v1482
    %v1556 = vsub.f32 %v477, %v1482
    %v1557 = vsub.f32 %v367, %v1487
    %v1558 = vsub.f32 %v480, %v1487
    %v1559 = vsub.f32 %v370, %v1492
    %v1560 = vsub.f32 %v483, %v1492
    %v1561 = vsub.f32 %v373, %v1497
    %v1562 = vsub.f32 %v486, %v1497
    %v1563 = vmul.f32 %v1499, 1.442695
    %v1564 = vpow.pop %v1563
    %v1565 = vmul.f32 %v1500, 1.442695
    %v1566 = vpow.pop %v1565
    %v1567 = vmul.f32 %v1501, 1.442695
    %v1568 = vpow.pop %v1567
    %v1569 = vmul.f32 %v1502, 1.442695
    %v1570 = vpow.pop %v1569
    %v1571 = vmul.f32 %v1503, 1.442695
    %v1572 = vpow.pop %v1571
    %v1573 = vmul.f32 %v1504, 1.442695
    %v1574 = vpow.pop %v1573
    %v1575 = vmul.f32 %v1505, 1.442695
    %v1576 = vpow.pop %v1575
    %v1577 = vmul.f32 %v1506, 1.442695
    %v1578 = vpow.pop %v1577
    %v1579 = vmul.f32 %v1507, 1.442695
    %v1580 = vpow.pop %v1579
    %v1581 = vmul.f32 %v1508, 1.442695
    %v1582 = vpow.pop %v1581
    %v1583 = vmul.f32 %v1509, 1.442695
    %v1584 = vpow.pop %v1583
    %v1585 = vmul.f32 %v1510, 1.442695
    %v1586 = vpow.pop %v1585
    %v1587 = vmul.f32 %v1511, 1.442695
    %v1588 = vpow.pop %v1587
    %v1589 = vmul.f32 %v1512, 1.442695
    %v1590 = vpow.pop %v1589
    %v1591 = vmul.f32 %v1513, 1.442695
    %v1592 = vpow.pop %v1591
    %v1593 = vmul.f32 %v1514, 1.442695
    %v1594 = vpow.pop %v1593
    %v1595 = vmul.f32 %v1515, 1.442695
    %v1596 = vpow.pop %v1595
    %v1597 = vmul.f32 %v1516, 1.442695
    %v1598 = vpow.pop %v1597
    %v1599 = vmul.f32 %v1517, 1.442695
    %v1600 = vpow.pop %v1599
    %v1601 = vmul.f32 %v1518, 1.442695
    %v1602 = vpow.pop %v1601
    %v1603 = vmul.f32 %v1519, 1.442695
    %v1604 = vpow.pop %v1603
    %v1605 = vmul.f32 %v1520, 1.442695
    %v1606 = vpow.pop %v1605
    %v1607 = vmul.f32 %v1521, 1.442695
    %v1608 = vpow.pop %v1607
    %v1609 = vmul.f32 %v1522, 1.442695
    %v1610 = vpow.pop %v1609
    %v1611 = vmul.f32 %v1523, 1.442695
    %v1612 = vpow.pop %v1611
    %v1613 = vmul.f32 %v1524, 1.442695
    %v1614 = vpow.pop %v1613
    %v1615 = vmul.f32 %v1525, 1.442695
    %v1616 = vpow.pop %v1615
    %v1617 = vmul.f32 %v1526, 1.442695
    %v1618 = vpow.pop %v1617
    %v1619 = vmul.f32 %v1527, 1.442695
    %v1620 = vpow.pop %v1619
    %v1621 = vmul.f32 %v1528, 1.442695
    %v1622 = vpow.pop %v1621
    %v1623 = vmul.f32 %v1529, 1.442695
    %v1624 = vpow.pop %v1623
    %v1625 = vmul.f32 %v1530, 1.442695
    %v1626 = vpow.pop %v1625
    %v1627 = vmul.f32 %v1531, 1.442695
    %v1628 = vpow.pop %v1627
    %v1629 = vmul.f32 %v1532, 1.442695
    %v1630 = vpow.pop %v1629
    %v1631 = vmul.f32 %v1533, 1.442695
    %v1632 = vpow.pop %v1631
    %v1633 = vmul.f32 %v1534, 1.442695
    %v1634 = vpow.pop %v1633
    %v1635 = vmul.f32 %v1535, 1.442695
    %v1636 = vpow.pop %v1635
    %v1637 = vmul.f32 %v1536, 1.442695
    %v1638 = vpow.pop %v1637
    %v1639 = vmul.f32 %v1537, 1.442695
    %v1640 = vpow.pop %v1639
    %v1641 = vmul.f32 %v1538, 1.442695
    %v1642 = vpow.pop %v1641
    %v1643 = vmul.f32 %v1539, 1.442695
    %v1644 = vpow.pop %v1643
    %v1645 = vmul.f32 %v1540, 1.442695
    %v1646 = vpow.pop %v1645
    %v1647 = vmul.f32 %v1541, 1.442695
    %v1648 = vpow.pop %v1647
    %v1649 = vmul.f32 %v1542, 1.442695
    %v1650 = vpow.pop %v1649
    %v1651 = vmul.f32 %v1543, 1.442695
    %v1652 = vpow.pop %v1651
    %v1653 = vmul.f32 %v1544, 1.442695
    %v1654 = vpow.pop %v1653
    %v1655 = vmul.f32 %v1545, 1.442695
    %v1656 = vpow.pop %v1655
    %v1657 = vmul.f32 %v1546, 1.442695
    %v1658 = vpow.pop %v1657
    %v1659 = vmul.f32 %v1547, 1.442695
    %v1660 = vpow.pop %v1659
    %v1661 = vmul.f32 %v1548, 1.442695
    %v1662 = vpow.pop %v1661
    %v1663 = vmul.f32 %v1549, 1.442695
    %v1664 = vpow.pop %v1663
    %v1665 = vmul.f32 %v1550, 1.442695
    %v1666 = vpow.pop %v1665
    %v1667 = vmul.f32 %v1551, 1.442695
    %v1668 = vpow.pop %v1667
    %v1669 = vmul.f32 %v1552, 1.442695
    %v1670 = vpow.pop %v1669
    %v1671 = vmul.f32 %v1553, 1.442695
    %v1672 = vpow.pop %v1671
    %v1673 = vmul.f32 %v1554, 1.442695
    %v1674 = vpow.pop %v1673
    %v1675 = vmul.f32 %v1555, 1.442695
    %v1676 = vpow.pop %v1675
    %v1677 = vmul.f32 %v1556, 1.442695
    %v1678 = vpow.pop %v1677
    %v1679 = vmul.f32 %v1557, 1.442695
    %v1680 = vpow.pop %v1679
    %v1681 = vmul.f32 %v1558, 1.442695
    %v1682 = vpow.pop %v1681
    %v1683 = vmul.f32 %v1559, 1.442695
    %v1684 = vpow.pop %v1683
    %v1685 = vmul.f32 %v1560, 1.442695
    %v1686 = vpow.pop %v1685
    %v1687 = vmul.f32 %v1561, 1.442695
    %v1688 = vpow.pop %v1687
    %v1689 = vmul.f32 %v1562, 1.442695
    %v1690 = vpow.pop %v1689
    %v1691 = vsel %vm632, %v1564, 0.0
    %v1692 = vsel %vm633, %v1566, 0.0
    %v1693 = vsel %vm634, %v1568, 0.0
    %v1694 = vsel %vm635, %v1570, 0.0
    %v1695 = vsel %vm636, %v1572, 0.0
    %v1696 = vsel %vm637, %v1574, 0.0
    %v1697 = vsel %vm638, %v1576, 0.0
    %v1698 = vsel %vm639, %v1578, 0.0
    %v1699 = vsel %vm640, %v1580, 0.0
    %v1700 = vsel %vm641, %v1582, 0.0
    %v1701 = vsel %vm642, %v1584, 0.0
    %v1702 = vsel %vm643, %v1586, 0.0
    %v1703 = vsel %vm644, %v1588, 0.0
    %v1704 = vsel %vm645, %v1590, 0.0
    %v1705 = vsel %vm646, %v1592, 0.0
    %v1706 = vsel %vm647, %v1594, 0.0
    %v1707 = vsel %vm648, %v1596, 0.0
    %v1708 = vsel %vm649, %v1598, 0.0
    %v1709 = vsel %vm650, %v1600, 0.0
    %v1710 = vsel %vm651, %v1602, 0.0
    %v1711 = vsel %vm652, %v1604, 0.0
    %v1712 = vsel %vm653, %v1606, 0.0
    %v1713 = vsel %vm654, %v1608, 0.0
    %v1714 = vsel %vm655, %v1610, 0.0
    %v1715 = vsel %vm656, %v1612, 0.0
    %v1716 = vsel %vm657, %v1614, 0.0
    %v1717 = vsel %vm658, %v1616, 0.0
    %v1718 = vsel %vm659, %v1618, 0.0
    %v1719 = vsel %vm660, %v1620, 0.0
    %v1720 = vsel %vm661, %v1622, 0.0
    %v1721 = vsel %vm662, %v1624, 0.0
    %v1722 = vsel %vm663, %v1626, 0.0
    %v1723 = vsel %vm664, %v1628, 0.0
    %v1724 = vsel %vm665, %v1630, 0.0
    %v1725 = vsel %vm666, %v1632, 0.0
    %v1726 = vsel %vm667, %v1634, 0.0
    %v1727 = vsel %vm668, %v1636, 0.0
    %v1728 = vsel %vm669, %v1638, 0.0
    %v1729 = vsel %vm670, %v1640, 0.0
    %v1730 = vsel %vm671, %v1642, 0.0
    %v1731 = vsel %vm672, %v1644, 0.0
    %v1732 = vsel %vm673, %v1646, 0.0
    %v1733 = vsel %vm674, %v1648, 0.0
    %v1734 = vsel %vm675, %v1650, 0.0
    %v1735 = vsel %vm676, %v1652, 0.0
    %v1736 = vsel %vm677, %v1654, 0.0
    %v1737 = vsel %vm678, %v1656, 0.0
    %v1738 = vsel %vm679, %v1658, 0.0
    %v1739 = vsel %vm680, %v1660, 0.0
    %v1740 = vsel %vm681, %v1662, 0.0
    %v1741 = vsel %vm682, %v1664, 0.0
    %v1742 = vsel %vm683, %v1666, 0.0
    %v1743 = vsel %vm684, %v1668, 0.0
    %v1744 = vsel %vm685, %v1670, 0.0
    %v1745 = vsel %vm686, %v1672, 0.0
    %v1746 = vsel %vm687, %v1674, 0.0
    %v1747 = vsel %vm688, %v1676, 0.0
    %v1748 = vsel %vm689, %v1678, 0.0
    %v1749 = vsel %vm690, %v1680, 0.0
    %v1750 = vsel %vm691, %v1682, 0.0
    %v1751 = vsel %vm692, %v1684, 0.0
    %v1752 = vsel %vm693, %v1686, 0.0
    %v1753 = vsel %vm694, %v1688, 0.0
    %v1754 = vsel %vm695, %v1690, 0.0
    %v1755 = vld [vmem:[#allocation3] sm:$0xff]
    %v1756 = vld [vmem:[#allocation3 + $0x8] sm:$0xff]
    %v1757 = vld [vmem:[#allocation3 + $0x10] sm:$0xff]
    %v1758 = vld [vmem:[#allocation3 + $0x18] sm:$0xff]
    %v1759 = vld [vmem:[#allocation3 + $0x20] sm:$0xff]
    %v1760 = vld [vmem:[#allocation3 + $0x28] sm:$0xff]
    %v1761 = vld [vmem:[#allocation3 + $0x30] sm:$0xff]
    %v1762 = vld [vmem:[#allocation3 + $0x38] sm:$0xff]
    %v1763 = vld [vmem:[#allocation3 + $0x40] sm:$0xff]
    %v1764 = vld [vmem:[#allocation3 + $0x48] sm:$0xff]
    %v1765 = vld [vmem:[#allocation3 + $0x50] sm:$0xff]
    %v1766 = vld [vmem:[#allocation3 + $0x58] sm:$0xff]
    %v1767 = vld [vmem:[#allocation3 + $0x60] sm:$0xff]
    %v1768 = vld [vmem:[#allocation3 + $0x68] sm:$0xff]
    %v1769 = vld [vmem:[#allocation3 + $0x70] sm:$0xff]
    %v1770 = vld [vmem:[#allocation3 + $0x78] sm:$0xff]
    %v1771 = vld [vmem:[#allocation3 + $0x80] sm:$0xff]
    %v1772 = vld [vmem:[#allocation3 + $0x88] sm:$0xff]
    %v1773 = vld [vmem:[#allocation3 + $0x90] sm:$0xff]
    %v1774 = vld [vmem:[#allocation3 + $0x98] sm:$0xff]
    %v1775 = vld [vmem:[#allocation3 + $0xa0] sm:$0xff]
    %v1776 = vld [vmem:[#allocation3 + $0xa8] sm:$0xff]
    %v1777 = vld [vmem:[#allocation3 + $0xb0] sm:$0xff]
    %v1778 = vld [vmem:[#allocation3 + $0xb8] sm:$0xff]
    %v1779 = vld [vmem:[#allocation3 + $0xc0] sm:$0xff]
    %v1780 = vld [vmem:[#allocation3 + $0xc8] sm:$0xff]
    %v1781 = vld [vmem:[#allocation3 + $0xd0] sm:$0xff]
    %v1782 = vld [vmem:[#allocation3 + $0xd8] sm:$0xff]
    %v1783 = vld [vmem:[#allocation3 + $0xe0] sm:$0xff]
    %v1784 = vld [vmem:[#allocation3 + $0xe8] sm:$0xff]
    %v1785 = vld [vmem:[#allocation3 + $0xf0] sm:$0xff]
    %v1786 = vld [vmem:[#allocation3 + $0xf8] sm:$0xff]
    %v1787 = vmul.f32 %v1755, %v1276
    %v1788 = vmul.f32 %v1756, %v1278
    %v1789 = vmul.f32 %v1757, %v1280
    %v1790 = vmul.f32 %v1758, %v1282
    %v1791 = vmul.f32 %v1759, %v1284
    %v1792 = vmul.f32 %v1760, %v1286
    %v1793 = vmul.f32 %v1761, %v1288
    %v1794 = vmul.f32 %v1762, %v1290
    %v1795 = vmul.f32 %v1763, %v1292
    %v1796 = vmul.f32 %v1764, %v1294
    %v1797 = vmul.f32 %v1765, %v1296
    %v1798 = vmul.f32 %v1766, %v1298
    %v1799 = vmul.f32 %v1767, %v1300
    %v1800 = vmul.f32 %v1768, %v1302
    %v1801 = vmul.f32 %v1769, %v1304
    %v1802 = vmul.f32 %v1770, %v1306
    %v1803 = vmul.f32 %v1771, %v1308
    %v1804 = vmul.f32 %v1772, %v1310
    %v1805 = vmul.f32 %v1773, %v1312
    %v1806 = vmul.f32 %v1774, %v1314
    %v1807 = vmul.f32 %v1775, %v1316
    %v1808 = vmul.f32 %v1776, %v1318
    %v1809 = vmul.f32 %v1777, %v1320
    %v1810 = vmul.f32 %v1778, %v1322
    %v1811 = vmul.f32 %v1779, %v1324
    %v1812 = vmul.f32 %v1780, %v1326
    %v1813 = vmul.f32 %v1781, %v1328
    %v1814 = vmul.f32 %v1782, %v1330
    %v1815 = vmul.f32 %v1783, %v1332
    %v1816 = vmul.f32 %v1784, %v1334
    %v1817 = vmul.f32 %v1785, %v1336
    %v1818 = vmul.f32 %v1786, %v1338
    %v1819 = vadd.f32 %v1691, %v1692
    %1820 = vadd.xlane.f32.xlu0 %v1819
    %v1821 = vpop.xlane.xlu0 %1820
    %v1822 = vadd.f32 %v1693, %v1694
    %1823 = vadd.xlane.f32.xlu0 %v1822
    %v1824 = vpop.xlane.xlu0 %1823
    %v1825 = vadd.f32 %v1695, %v1696
    %1826 = vadd.xlane.f32.xlu0 %v1825
    %v1827 = vpop.xlane.xlu0 %1826
    %v1828 = vadd.f32 %v1697, %v1698
    %1829 = vadd.xlane.f32.xlu0 %v1828
    %v1830 = vpop.xlane.xlu0 %1829
    %v1831 = vadd.f32 %v1699, %v1700
    %1832 = vadd.xlane.f32.xlu0 %v1831
    %v1833 = vpop.xlane.xlu0 %1832
    %v1834 = vadd.f32 %v1701, %v1702
    %1835 = vadd.xlane.f32.xlu0 %v1834
    %v1836 = vpop.xlane.xlu0 %1835
    %v1837 = vadd.f32 %v1703, %v1704
    %1838 = vadd.xlane.f32.xlu0 %v1837
    %v1839 = vpop.xlane.xlu0 %1838
    %v1840 = vadd.f32 %v1705, %v1706
    %1841 = vadd.xlane.f32.xlu0 %v1840
    %v1842 = vpop.xlane.xlu0 %1841
    %v1843 = vadd.f32 %v1707, %v1708
    %1844 = vadd.xlane.f32.xlu0 %v1843
    %v1845 = vpop.xlane.xlu0 %1844
    %v1846 = vadd.f32 %v1709, %v1710
    %1847 = vadd.xlane.f32.xlu0 %v1846
    %v1848 = vpop.xlane.xlu0 %1847
    %v1849 = vadd.f32 %v1711, %v1712
    %1850 = vadd.xlane.f32.xlu0 %v1849
    %v1851 = vpop.xlane.xlu0 %1850
    %v1852 = vadd.f32 %v1713, %v1714
    %1853 = vadd.xlane.f32.xlu0 %v1852
    %v1854 = vpop.xlane.xlu0 %1853
    %v1855 = vadd.f32 %v1715, %v1716
    %1856 = vadd.xlane.f32.xlu0 %v1855
    %v1857 = vpop.xlane.xlu0 %1856
    %v1858 = vadd.f32 %v1717, %v1718
    %1859 = vadd.xlane.f32.xlu0 %v1858
    %v1860 = vpop.xlane.xlu0 %1859
    %v1861 = vadd.f32 %v1719, %v1720
    %1862 = vadd.xlane.f32.xlu0 %v1861
    %v1863 = vpop.xlane.xlu0 %1862
    %v1864 = vadd.f32 %v1721, %v1722
    %1865 = vadd.xlane.f32.xlu0 %v1864
    %v1866 = vpop.xlane.xlu0 %1865
    %v1867 = vadd.f32 %v1723, %v1724
    %1868 = vadd.xlane.f32.xlu0 %v1867
    %v1869 = vpop.xlane.xlu0 %1868
    %v1870 = vadd.f32 %v1725, %v1726
    %1871 = vadd.xlane.f32.xlu0 %v1870
    %v1872 = vpop.xlane.xlu0 %1871
    %v1873 = vadd.f32 %v1727, %v1728
    %1874 = vadd.xlane.f32.xlu0 %v1873
    %v1875 = vpop.xlane.xlu0 %1874
    %v1876 = vadd.f32 %v1729, %v1730
    %1877 = vadd.xlane.f32.xlu0 %v1876
    %v1878 = vpop.xlane.xlu0 %1877
    %v1879 = vadd.f32 %v1731, %v1732
    %1880 = vadd.xlane.f32.xlu0 %v1879
    %v1881 = vpop.xlane.xlu0 %1880
    %v1882 = vadd.f32 %v1733, %v1734
    %1883 = vadd.xlane.f32.xlu0 %v1882
    %v1884 = vpop.xlane.xlu0 %1883
    %v1885 = vadd.f32 %v1735, %v1736
    %1886 = vadd.xlane.f32.xlu0 %v1885
    %v1887 = vpop.xlane.xlu0 %1886
    %v1888 = vadd.f32 %v1737, %v1738
    %1889 = vadd.xlane.f32.xlu0 %v1888
    %v1890 = vpop.xlane.xlu0 %1889
    %v1891 = vadd.f32 %v1739, %v1740
    %1892 = vadd.xlane.f32.xlu0 %v1891
    %v1893 = vpop.xlane.xlu0 %1892
    %v1894 = vadd.f32 %v1741, %v1742
    %1895 = vadd.xlane.f32.xlu0 %v1894
    %v1896 = vpop.xlane.xlu0 %1895
    %v1897 = vadd.f32 %v1743, %v1744
    %1898 = vadd.xlane.f32.xlu0 %v1897
    %v1899 = vpop.xlane.xlu0 %1898
    %v1900 = vadd.f32 %v1745, %v1746
    %1901 = vadd.xlane.f32.xlu0 %v1900
    %v1902 = vpop.xlane.xlu0 %1901
    %v1903 = vadd.f32 %v1747, %v1748
    %1904 = vadd.xlane.f32.xlu0 %v1903
    %v1905 = vpop.xlane.xlu0 %1904
    %v1906 = vadd.f32 %v1749, %v1750
    %1907 = vadd.xlane.f32.xlu0 %v1906
    %v1908 = vpop.xlane.xlu0 %1907
    %v1909 = vadd.f32 %v1751, %v1752
    %1910 = vadd.xlane.f32.xlu0 %v1909
    %v1911 = vpop.xlane.xlu0 %1910
    %v1912 = vadd.f32 %v1753, %v1754
    %1913 = vadd.xlane.f32.xlu0 %v1912
    %v1914 = vpop.xlane.xlu0 %1913
    %v1915 = vadd.f32 %v1787, %v1821
    %v1916 = vadd.f32 %v1788, %v1824
    %v1917 = vadd.f32 %v1789, %v1827
    %v1918 = vadd.f32 %v1790, %v1830
    %v1919 = vadd.f32 %v1791, %v1833
    %v1920 = vadd.f32 %v1792, %v1836
    %v1921 = vadd.f32 %v1793, %v1839
    %v1922 = vadd.f32 %v1794, %v1842
    %v1923 = vadd.f32 %v1795, %v1845
    %v1924 = vadd.f32 %v1796, %v1848
    %v1925 = vadd.f32 %v1797, %v1851
    %v1926 = vadd.f32 %v1798, %v1854
    %v1927 = vadd.f32 %v1799, %v1857
    %v1928 = vadd.f32 %v1800, %v1860
    %v1929 = vadd.f32 %v1801, %v1863
    %v1930 = vadd.f32 %v1802, %v1866
    %v1931 = vadd.f32 %v1803, %v1869
    %v1932 = vadd.f32 %v1804, %v1872
    %v1933 = vadd.f32 %v1805, %v1875
    %v1934 = vadd.f32 %v1806, %v1878
    %v1935 = vadd.f32 %v1807, %v1881
    %v1936 = vadd.f32 %v1808, %v1884
    %v1937 = vadd.f32 %v1809, %v1887
    %v1938 = vadd.f32 %v1810, %v1890
    %v1939 = vadd.f32 %v1811, %v1893
    %v1940 = vadd.f32 %v1812, %v1896
    %v1941 = vadd.f32 %v1813, %v1899
    %v1942 = vadd.f32 %v1814, %v1902
    %v1943 = vadd.f32 %v1815, %v1905
    %v1944 = vadd.f32 %v1816, %v1908
    %v1945 = vadd.f32 %v1817, %v1911
    %v1946 = vadd.f32 %v1818, %v1914
    %vm1947 = vcmask 7168
    %1948 = vst.msk [vmem:[#allocation3] sm:$0xff] %vm1947, %v1915
    %1949 = vst.msk [vmem:[#allocation3 + $0x8] sm:$0xff] %vm1947, %v1916
    %1950 = vst.msk [vmem:[#allocation3 + $0x10] sm:$0xff] %vm1947, %v1917
    %1951 = vst.msk [vmem:[#allocation3 + $0x18] sm:$0xff] %vm1947, %v1918
    %1952 = vst.msk [vmem:[#allocation3 + $0x20] sm:$0xff] %vm1947, %v1919
    %1953 = vst.msk [vmem:[#allocation3 + $0x28] sm:$0xff] %vm1947, %v1920
    %1954 = vst.msk [vmem:[#allocation3 + $0x30] sm:$0xff] %vm1947, %v1921
    %1955 = vst.msk [vmem:[#allocation3 + $0x38] sm:$0xff] %vm1947, %v1922
    %1956 = vst.msk [vmem:[#allocation3 + $0x40] sm:$0xff] %vm1947, %v1923
    %1957 = vst.msk [vmem:[#allocation3 + $0x48] sm:$0xff] %vm1947, %v1924
    %1958 = vst.msk [vmem:[#allocation3 + $0x50] sm:$0xff] %vm1947, %v1925
    %1959 = vst.msk [vmem:[#allocation3 + $0x58] sm:$0xff] %vm1947, %v1926
    %1960 = vst.msk [vmem:[#allocation3 + $0x60] sm:$0xff] %vm1947, %v1927
    %1961 = vst.msk [vmem:[#allocation3 + $0x68] sm:$0xff] %vm1947, %v1928
    %1962 = vst.msk [vmem:[#allocation3 + $0x70] sm:$0xff] %vm1947, %v1929
    %1963 = vst.msk [vmem:[#allocation3 + $0x78] sm:$0xff] %vm1947, %v1930
    %1964 = vst.msk [vmem:[#allocation3 + $0x80] sm:$0xff] %vm1947, %v1931
    %1965 = vst.msk [vmem:[#allocation3 + $0x88] sm:$0xff] %vm1947, %v1932
    %1966 = vst.msk [vmem:[#allocation3 + $0x90] sm:$0xff] %vm1947, %v1933
    %1967 = vst.msk [vmem:[#allocation3 + $0x98] sm:$0xff] %vm1947, %v1934
    %1968 = vst.msk [vmem:[#allocation3 + $0xa0] sm:$0xff] %vm1947, %v1935
    %1969 = vst.msk [vmem:[#allocation3 + $0xa8] sm:$0xff] %vm1947, %v1936
    %1970 = vst.msk [vmem:[#allocation3 + $0xb0] sm:$0xff] %vm1947, %v1937
    %1971 = vst.msk [vmem:[#allocation3 + $0xb8] sm:$0xff] %vm1947, %v1938
    %1972 = vst.msk [vmem:[#allocation3 + $0xc0] sm:$0xff] %vm1947, %v1939
    %1973 = vst.msk [vmem:[#allocation3 + $0xc8] sm:$0xff] %vm1947, %v1940
    %1974 = vst.msk [vmem:[#allocation3 + $0xd0] sm:$0xff] %vm1947, %v1941
    %1975 = vst.msk [vmem:[#allocation3 + $0xd8] sm:$0xff] %vm1947, %v1942
    %1976 = vst.msk [vmem:[#allocation3 + $0xe0] sm:$0xff] %vm1947, %v1943
    %1977 = vst.msk [vmem:[#allocation3 + $0xe8] sm:$0xff] %vm1947, %v1944
    %1978 = vst.msk [vmem:[#allocation3 + $0xf0] sm:$0xff] %vm1947, %v1945
    %1979 = vst.msk [vmem:[#allocation3 + $0xf8] sm:$0xff] %vm1947, %v1946
    %v1980 = vld [vmem:[#allocation4] sm:$0xff]
    %v1981 = vld [vmem:[#allocation4 + $0x8] sm:$0xff]
    %v1982 = vld [vmem:[#allocation4 + $0x10] sm:$0xff]
    %v1983 = vld [vmem:[#allocation4 + $0x18] sm:$0xff]
    %v1984 = vld [vmem:[#allocation4 + $0x20] sm:$0xff]
    %v1985 = vld [vmem:[#allocation4 + $0x28] sm:$0xff]
    %v1986 = vld [vmem:[#allocation4 + $0x30] sm:$0xff]
    %v1987 = vld [vmem:[#allocation4 + $0x38] sm:$0xff]
    %v1988 = vld [vmem:[#allocation4 + $0x40] sm:$0xff]
    %v1989 = vld [vmem:[#allocation4 + $0x48] sm:$0xff]
    %v1990 = vld [vmem:[#allocation4 + $0x50] sm:$0xff]
    %v1991 = vld [vmem:[#allocation4 + $0x58] sm:$0xff]
    %v1992 = vld [vmem:[#allocation4 + $0x60] sm:$0xff]
    %v1993 = vld [vmem:[#allocation4 + $0x68] sm:$0xff]
    %v1994 = vld [vmem:[#allocation4 + $0x70] sm:$0xff]
    %v1995 = vld [vmem:[#allocation4 + $0x78] sm:$0xff]
    %v1996 = vld [vmem:[#allocation4 + $0x80] sm:$0xff]
    %v1997 = vld [vmem:[#allocation4 + $0x88] sm:$0xff]
    %v1998 = vld [vmem:[#allocation4 + $0x90] sm:$0xff]
    %v1999 = vld [vmem:[#allocation4 + $0x98] sm:$0xff]
    %v2000 = vld [vmem:[#allocation4 + $0xa0] sm:$0xff]
    %v2001 = vld [vmem:[#allocation4 + $0xa8] sm:$0xff]
    %v2002 = vld [vmem:[#allocation4 + $0xb0] sm:$0xff]
    %v2003 = vld [vmem:[#allocation4 + $0xb8] sm:$0xff]
    %v2004 = vld [vmem:[#allocation4 + $0xc0] sm:$0xff]
    %v2005 = vld [vmem:[#allocation4 + $0xc8] sm:$0xff]
    %v2006 = vld [vmem:[#allocation4 + $0xd0] sm:$0xff]
    %v2007 = vld [vmem:[#allocation4 + $0xd8] sm:$0xff]
    %v2008 = vld [vmem:[#allocation4 + $0xe0] sm:$0xff]
    %v2009 = vld [vmem:[#allocation4 + $0xe8] sm:$0xff]
    %v2010 = vld [vmem:[#allocation4 + $0xf0] sm:$0xff]
    %v2011 = vld [vmem:[#allocation4 + $0xf8] sm:$0xff]
    %v2012 = vmul.f32 %v955, %v280
    %v2013 = vmul.f32 %v956, %v393
    %v2014 = vmul.f32 %v957, %v283
    %v2015 = vmul.f32 %v958, %v396
    %v2016 = vmul.f32 %v959, %v286
    %v2017 = vmul.f32 %v960, %v399
    %v2018 = vmul.f32 %v961, %v289
    %v2019 = vmul.f32 %v962, %v402
    %v2020 = vmul.f32 %v963, %v292
    %v2021 = vmul.f32 %v964, %v405
    %v2022 = vmul.f32 %v965, %v295
    %v2023 = vmul.f32 %v966, %v408
    %v2024 = vmul.f32 %v967, %v298
    %v2025 = vmul.f32 %v968, %v411
    %v2026 = vmul.f32 %v969, %v301
    %v2027 = vmul.f32 %v970, %v414
    %v2028 = vmul.f32 %v971, %v304
    %v2029 = vmul.f32 %v972, %v417
    %v2030 = vmul.f32 %v973, %v307
    %v2031 = vmul.f32 %v974, %v420
    %v2032 = vmul.f32 %v975, %v310
    %v2033 = vmul.f32 %v976, %v423
    %v2034 = vmul.f32 %v977, %v313
    %v2035 = vmul.f32 %v978, %v426
    %v2036 = vmul.f32 %v979, %v316
    %v2037 = vmul.f32 %v980, %v429
    %v2038 = vmul.f32 %v981, %v319
    %v2039 = vmul.f32 %v982, %v432
    %v2040 = vmul.f32 %v983, %v322
    %v2041 = vmul.f32 %v984, %v435
    %v2042 = vmul.f32 %v985, %v325
    %v2043 = vmul.f32 %v986, %v438
    %v2044 = vmul.f32 %v987, %v328
    %v2045 = vmul.f32 %v988, %v441
    %v2046 = vmul.f32 %v989, %v331
    %v2047 = vmul.f32 %v990, %v444
    %v2048 = vmul.f32 %v991, %v334
    %v2049 = vmul.f32 %v992, %v447
    %v2050 = vmul.f32 %v993, %v337
    %v2051 = vmul.f32 %v994, %v450
    %v2052 = vmul.f32 %v995, %v340
    %v2053 = vmul.f32 %v996, %v453
    %v2054 = vmul.f32 %v997, %v343
    %v2055 = vmul.f32 %v998, %v456
    %v2056 = vmul.f32 %v999, %v346
    %v2057 = vmul.f32 %v1000, %v459
    %v2058 = vmul.f32 %v1001, %v349
    %v2059 = vmul.f32 %v1002, %v462
    %v2060 = vmul.f32 %v1003, %v352
    %v2061 = vmul.f32 %v1004, %v465
    %v2062 = vmul.f32 %v1005, %v355
    %v2063 = vmul.f32 %v1006, %v468
    %v2064 = vmul.f32 %v1007, %v358
    %v2065 = vmul.f32 %v1008, %v471
    %v2066 = vmul.f32 %v1009, %v361
    %v2067 = vmul.f32 %v1010, %v474
    %v2068 = vmul.f32 %v1011, %v364
    %v2069 = vmul.f32 %v1012, %v477
    %v2070 = vmul.f32 %v1013, %v367
    %v2071 = vmul.f32 %v1014, %v480
    %v2072 = vmul.f32 %v1015, %v370
    %v2073 = vmul.f32 %v1016, %v483
    %v2074 = vmul.f32 %v1017, %v373
    %v2075 = vmul.f32 %v1018, %v486
    %v2076 = vadd.f32 %v2012, %v2013
    %2077 = vadd.xlane.f32.xlu0 %v2076
    %v2078 = vpop.xlane.xlu0 %2077
    %v2079 = vadd.f32 %v2014, %v2015
    %2080 = vadd.xlane.f32.xlu0 %v2079
    %v2081 = vpop.xlane.xlu0 %2080
    %v2082 = vadd.f32 %v2016, %v2017
    %2083 = vadd.xlane.f32.xlu0 %v2082
    %v2084 = vpop.xlane.xlu0 %2083
    %v2085 = vadd.f32 %v2018, %v2019
    %2086 = vadd.xlane.f32.xlu0 %v2085
    %v2087 = vpop.xlane.xlu0 %2086
    %v2088 = vadd.f32 %v2020, %v2021
    %2089 = vadd.xlane.f32.xlu0 %v2088
    %v2090 = vpop.xlane.xlu0 %2089
    %v2091 = vadd.f32 %v2022, %v2023
    %2092 = vadd.xlane.f32.xlu0 %v2091
    %v2093 = vpop.xlane.xlu0 %2092
    %v2094 = vadd.f32 %v2024, %v2025
    %2095 = vadd.xlane.f32.xlu0 %v2094
    %v2096 = vpop.xlane.xlu0 %2095
    %v2097 = vadd.f32 %v2026, %v2027
    %2098 = vadd.xlane.f32.xlu0 %v2097
    %v2099 = vpop.xlane.xlu0 %2098
    %v2100 = vadd.f32 %v2028, %v2029
    %2101 = vadd.xlane.f32.xlu0 %v2100
    %v2102 = vpop.xlane.xlu0 %2101
    %v2103 = vadd.f32 %v2030, %v2031
    %2104 = vadd.xlane.f32.xlu0 %v2103
    %v2105 = vpop.xlane.xlu0 %2104
    %v2106 = vadd.f32 %v2032, %v2033
    %2107 = vadd.xlane.f32.xlu0 %v2106
    %v2108 = vpop.xlane.xlu0 %2107
    %v2109 = vadd.f32 %v2034, %v2035
    %2110 = vadd.xlane.f32.xlu0 %v2109
    %v2111 = vpop.xlane.xlu0 %2110
    %v2112 = vadd.f32 %v2036, %v2037
    %2113 = vadd.xlane.f32.xlu0 %v2112
    %v2114 = vpop.xlane.xlu0 %2113
    %v2115 = vadd.f32 %v2038, %v2039
    %2116 = vadd.xlane.f32.xlu0 %v2115
    %v2117 = vpop.xlane.xlu0 %2116
    %v2118 = vadd.f32 %v2040, %v2041
    %2119 = vadd.xlane.f32.xlu0 %v2118
    %v2120 = vpop.xlane.xlu0 %2119
    %v2121 = vadd.f32 %v2042, %v2043
    %2122 = vadd.xlane.f32.xlu0 %v2121
    %v2123 = vpop.xlane.xlu0 %2122
    %v2124 = vadd.f32 %v2044, %v2045
    %2125 = vadd.xlane.f32.xlu0 %v2124
    %v2126 = vpop.xlane.xlu0 %2125
    %v2127 = vadd.f32 %v2046, %v2047
    %2128 = vadd.xlane.f32.xlu0 %v2127
    %v2129 = vpop.xlane.xlu0 %2128
    %v2130 = vadd.f32 %v2048, %v2049
    %2131 = vadd.xlane.f32.xlu0 %v2130
    %v2132 = vpop.xlane.xlu0 %2131
    %v2133 = vadd.f32 %v2050, %v2051
    %2134 = vadd.xlane.f32.xlu0 %v2133
    %v2135 = vpop.xlane.xlu0 %2134
    %v2136 = vadd.f32 %v2052, %v2053
    %2137 = vadd.xlane.f32.xlu0 %v2136
    %v2138 = vpop.xlane.xlu0 %2137
    %v2139 = vadd.f32 %v2054, %v2055
    %2140 = vadd.xlane.f32.xlu0 %v2139
    %v2141 = vpop.xlane.xlu0 %2140
    %v2142 = vadd.f32 %v2056, %v2057
    %2143 = vadd.xlane.f32.xlu0 %v2142
    %v2144 = vpop.xlane.xlu0 %2143
    %v2145 = vadd.f32 %v2058, %v2059
    %2146 = vadd.xlane.f32.xlu0 %v2145
    %v2147 = vpop.xlane.xlu0 %2146
    %v2148 = vadd.f32 %v2060, %v2061
    %2149 = vadd.xlane.f32.xlu0 %v2148
    %v2150 = vpop.xlane.xlu0 %2149
    %v2151 = vadd.f32 %v2062, %v2063
    %2152 = vadd.xlane.f32.xlu0 %v2151
    %v2153 = vpop.xlane.xlu0 %2152
    %v2154 = vadd.f32 %v2064, %v2065
    %2155 = vadd.xlane.f32.xlu0 %v2154
    %v2156 = vpop.xlane.xlu0 %2155
    %v2157 = vadd.f32 %v2066, %v2067
    %2158 = vadd.xlane.f32.xlu0 %v2157
    %v2159 = vpop.xlane.xlu0 %2158
    %v2160 = vadd.f32 %v2068, %v2069
    %2161 = vadd.xlane.f32.xlu0 %v2160
    %v2162 = vpop.xlane.xlu0 %2161
    %v2163 = vadd.f32 %v2070, %v2071
    %2164 = vadd.xlane.f32.xlu0 %v2163
    %v2165 = vpop.xlane.xlu0 %2164
    %v2166 = vadd.f32 %v2072, %v2073
    %2167 = vadd.xlane.f32.xlu0 %v2166
    %v2168 = vpop.xlane.xlu0 %2167
    %v2169 = vadd.f32 %v2074, %v2075
    %2170 = vadd.xlane.f32.xlu0 %v2169
    %v2171 = vpop.xlane.xlu0 %2170
    %v2172 = vadd.f32 %v1980, %v2078
    %v2173 = vadd.f32 %v1981, %v2081
    %v2174 = vadd.f32 %v1982, %v2084
    %v2175 = vadd.f32 %v1983, %v2087
    %v2176 = vadd.f32 %v1984, %v2090
    %v2177 = vadd.f32 %v1985, %v2093
    %v2178 = vadd.f32 %v1986, %v2096
    %v2179 = vadd.f32 %v1987, %v2099
    %v2180 = vadd.f32 %v1988, %v2102
    %v2181 = vadd.f32 %v1989, %v2105
    %v2182 = vadd.f32 %v1990, %v2108
    %v2183 = vadd.f32 %v1991, %v2111
    %v2184 = vadd.f32 %v1992, %v2114
    %v2185 = vadd.f32 %v1993, %v2117
    %v2186 = vadd.f32 %v1994, %v2120
    %v2187 = vadd.f32 %v1995, %v2123
    %v2188 = vadd.f32 %v1996, %v2126
    %v2189 = vadd.f32 %v1997, %v2129
    %v2190 = vadd.f32 %v1998, %v2132
    %v2191 = vadd.f32 %v1999, %v2135
    %v2192 = vadd.f32 %v2000, %v2138
    %v2193 = vadd.f32 %v2001, %v2141
    %v2194 = vadd.f32 %v2002, %v2144
    %v2195 = vadd.f32 %v2003, %v2147
    %v2196 = vadd.f32 %v2004, %v2150
    %v2197 = vadd.f32 %v2005, %v2153
    %v2198 = vadd.f32 %v2006, %v2156
    %v2199 = vadd.f32 %v2007, %v2159
    %v2200 = vadd.f32 %v2008, %v2162
    %v2201 = vadd.f32 %v2009, %v2165
    %v2202 = vadd.f32 %v2010, %v2168
    %v2203 = vadd.f32 %v2011, %v2171
    %2204 = vst.msk [vmem:[#allocation4] sm:$0xff] %vm1947, %v2172
    %2205 = vst.msk [vmem:[#allocation4 + $0x8] sm:$0xff] %vm1947, %v2173
    %2206 = vst.msk [vmem:[#allocation4 + $0x10] sm:$0xff] %vm1947, %v2174
    %2207 = vst.msk [vmem:[#allocation4 + $0x18] sm:$0xff] %vm1947, %v2175
    %2208 = vst.msk [vmem:[#allocation4 + $0x20] sm:$0xff] %vm1947, %v2176
    %2209 = vst.msk [vmem:[#allocation4 + $0x28] sm:$0xff] %vm1947, %v2177
    %2210 = vst.msk [vmem:[#allocation4 + $0x30] sm:$0xff] %vm1947, %v2178
    %2211 = vst.msk [vmem:[#allocation4 + $0x38] sm:$0xff] %vm1947, %v2179
    %2212 = vst.msk [vmem:[#allocation4 + $0x40] sm:$0xff] %vm1947, %v2180
    %2213 = vst.msk [vmem:[#allocation4 + $0x48] sm:$0xff] %vm1947, %v2181
    %2214 = vst.msk [vmem:[#allocation4 + $0x50] sm:$0xff] %vm1947, %v2182
    %2215 = vst.msk [vmem:[#allocation4 + $0x58] sm:$0xff] %vm1947, %v2183
    %2216 = vst.msk [vmem:[#allocation4 + $0x60] sm:$0xff] %vm1947, %v2184
    %2217 = vst.msk [vmem:[#allocation4 + $0x68] sm:$0xff] %vm1947, %v2185
    %2218 = vst.msk [vmem:[#allocation4 + $0x70] sm:$0xff] %vm1947, %v2186
    %2219 = vst.msk [vmem:[#allocation4 + $0x78] sm:$0xff] %vm1947, %v2187
    %2220 = vst.msk [vmem:[#allocation4 + $0x80] sm:$0xff] %vm1947, %v2188
    %2221 = vst.msk [vmem:[#allocation4 + $0x88] sm:$0xff] %vm1947, %v2189
    %2222 = vst.msk [vmem:[#allocation4 + $0x90] sm:$0xff] %vm1947, %v2190
    %2223 = vst.msk [vmem:[#allocation4 + $0x98] sm:$0xff] %vm1947, %v2191
    %2224 = vst.msk [vmem:[#allocation4 + $0xa0] sm:$0xff] %vm1947, %v2192
    %2225 = vst.msk [vmem:[#allocation4 + $0xa8] sm:$0xff] %vm1947, %v2193
    %2226 = vst.msk [vmem:[#allocation4 + $0xb0] sm:$0xff] %vm1947, %v2194
    %2227 = vst.msk [vmem:[#allocation4 + $0xb8] sm:$0xff] %vm1947, %v2195
    %2228 = vst.msk [vmem:[#allocation4 + $0xc0] sm:$0xff] %vm1947, %v2196
    %2229 = vst.msk [vmem:[#allocation4 + $0xc8] sm:$0xff] %vm1947, %v2197
    %2230 = vst.msk [vmem:[#allocation4 + $0xd0] sm:$0xff] %vm1947, %v2198
    %2231 = vst.msk [vmem:[#allocation4 + $0xd8] sm:$0xff] %vm1947, %v2199
    %2232 = vst.msk [vmem:[#allocation4 + $0xe0] sm:$0xff] %vm1947, %v2200
    %2233 = vst.msk [vmem:[#allocation4 + $0xe8] sm:$0xff] %vm1947, %v2201
    %2234 = vst.msk [vmem:[#allocation4 + $0xf0] sm:$0xff] %vm1947, %v2202
    %2235 = vst.msk [vmem:[#allocation4 + $0xf8] sm:$0xff] %vm1947, %v2203
    %v2236 = vld [vmem:[#allocation5] sm:$0xff]
    %v2237 = vld [vmem:[#allocation5 + $0x8] sm:$0xff]
    %v2238 = vld [vmem:[#allocation5 + $0x10] sm:$0xff]
    %v2239 = vld [vmem:[#allocation5 + $0x18] sm:$0xff]
    %v2240 = vld [vmem:[#allocation5 + $0x20] sm:$0xff]
    %v2241 = vld [vmem:[#allocation5 + $0x28] sm:$0xff]
    %v2242 = vld [vmem:[#allocation5 + $0x30] sm:$0xff]
    %v2243 = vld [vmem:[#allocation5 + $0x38] sm:$0xff]
    %v2244 = vld [vmem:[#allocation5 + $0x40] sm:$0xff]
    %v2245 = vld [vmem:[#allocation5 + $0x48] sm:$0xff]
    %v2246 = vld [vmem:[#allocation5 + $0x50] sm:$0xff]
    %v2247 = vld [vmem:[#allocation5 + $0x58] sm:$0xff]
    %v2248 = vld [vmem:[#allocation5 + $0x60] sm:$0xff]
    %v2249 = vld [vmem:[#allocation5 + $0x68] sm:$0xff]
    %v2250 = vld [vmem:[#allocation5 + $0x70] sm:$0xff]
    %v2251 = vld [vmem:[#allocation5 + $0x78] sm:$0xff]
    %v2252 = vld [vmem:[#allocation5 + $0x80] sm:$0xff]
    %v2253 = vld [vmem:[#allocation5 + $0x88] sm:$0xff]
    %v2254 = vld [vmem:[#allocation5 + $0x90] sm:$0xff]
    %v2255 = vld [vmem:[#allocation5 + $0x98] sm:$0xff]
    %v2256 = vld [vmem:[#allocation5 + $0xa0] sm:$0xff]
    %v2257 = vld [vmem:[#allocation5 + $0xa8] sm:$0xff]
    %v2258 = vld [vmem:[#allocation5 + $0xb0] sm:$0xff]
    %v2259 = vld [vmem:[#allocation5 + $0xb8] sm:$0xff]
    %v2260 = vld [vmem:[#allocation5 + $0xc0] sm:$0xff]
    %v2261 = vld [vmem:[#allocation5 + $0xc8] sm:$0xff]
    %v2262 = vld [vmem:[#allocation5 + $0xd0] sm:$0xff]
    %v2263 = vld [vmem:[#allocation5 + $0xd8] sm:$0xff]
    %v2264 = vld [vmem:[#allocation5 + $0xe0] sm:$0xff]
    %v2265 = vld [vmem:[#allocation5 + $0xe8] sm:$0xff]
    %v2266 = vld [vmem:[#allocation5 + $0xf0] sm:$0xff]
    %v2267 = vld [vmem:[#allocation5 + $0xf8] sm:$0xff]
    %v2268 = vadd.f32 %v955, %v956
    %2269 = vadd.xlane.f32.xlu0 %v2268
    %v2270 = vpop.xlane.xlu0 %2269
    %v2271 = vadd.f32 %v957, %v958
    %2272 = vadd.xlane.f32.xlu0 %v2271
    %v2273 = vpop.xlane.xlu0 %2272
    %v2274 = vadd.f32 %v959, %v960
    %2275 = vadd.xlane.f32.xlu0 %v2274
    %v2276 = vpop.xlane.xlu0 %2275
    %v2277 = vadd.f32 %v961, %v962
    %2278 = vadd.xlane.f32.xlu0 %v2277
    %v2279 = vpop.xlane.xlu0 %2278
    %v2280 = vadd.f32 %v963, %v964
    %2281 = vadd.xlane.f32.xlu0 %v2280
    %v2282 = vpop.xlane.xlu0 %2281
    %v2283 = vadd.f32 %v965, %v966
    %2284 = vadd.xlane.f32.xlu0 %v2283
    %v2285 = vpop.xlane.xlu0 %2284
    %v2286 = vadd.f32 %v967, %v968
    %2287 = vadd.xlane.f32.xlu0 %v2286
    %v2288 = vpop.xlane.xlu0 %2287
    %v2289 = vadd.f32 %v969, %v970
    %2290 = vadd.xlane.f32.xlu0 %v2289
    %v2291 = vpop.xlane.xlu0 %2290
    %v2292 = vadd.f32 %v971, %v972
    %2293 = vadd.xlane.f32.xlu0 %v2292
    %v2294 = vpop.xlane.xlu0 %2293
    %v2295 = vadd.f32 %v973, %v974
    %2296 = vadd.xlane.f32.xlu0 %v2295
    %v2297 = vpop.xlane.xlu0 %2296
    %v2298 = vadd.f32 %v975, %v976
    %2299 = vadd.xlane.f32.xlu0 %v2298
    %v2300 = vpop.xlane.xlu0 %2299
    %v2301 = vadd.f32 %v977, %v978
    %2302 = vadd.xlane.f32.xlu0 %v2301
    %v2303 = vpop.xlane.xlu0 %2302
    %v2304 = vadd.f32 %v979, %v980
    %2305 = vadd.xlane.f32.xlu0 %v2304
    %v2306 = vpop.xlane.xlu0 %2305
    %v2307 = vadd.f32 %v981, %v982
    %2308 = vadd.xlane.f32.xlu0 %v2307
    %v2309 = vpop.xlane.xlu0 %2308
    %v2310 = vadd.f32 %v983, %v984
    %2311 = vadd.xlane.f32.xlu0 %v2310
    %v2312 = vpop.xlane.xlu0 %2311
    %v2313 = vadd.f32 %v985, %v986
    %2314 = vadd.xlane.f32.xlu0 %v2313
    %v2315 = vpop.xlane.xlu0 %2314
    %v2316 = vadd.f32 %v987, %v988
    %2317 = vadd.xlane.f32.xlu0 %v2316
    %v2318 = vpop.xlane.xlu0 %2317
    %v2319 = vadd.f32 %v989, %v990
    %2320 = vadd.xlane.f32.xlu0 %v2319
    %v2321 = vpop.xlane.xlu0 %2320
    %v2322 = vadd.f32 %v991, %v992
    %2323 = vadd.xlane.f32.xlu0 %v2322
    %v2324 = vpop.xlane.xlu0 %2323
    %v2325 = vadd.f32 %v993, %v994
    %2326 = vadd.xlane.f32.xlu0 %v2325
    %v2327 = vpop.xlane.xlu0 %2326
    %v2328 = vadd.f32 %v995, %v996
    %2329 = vadd.xlane.f32.xlu0 %v2328
    %v2330 = vpop.xlane.xlu0 %2329
    %v2331 = vadd.f32 %v997, %v998
    %2332 = vadd.xlane.f32.xlu0 %v2331
    %v2333 = vpop.xlane.xlu0 %2332
    %v2334 = vadd.f32 %v999, %v1000
    %2335 = vadd.xlane.f32.xlu0 %v2334
    %v2336 = vpop.xlane.xlu0 %2335
    %v2337 = vadd.f32 %v1001, %v1002
    %2338 = vadd.xlane.f32.xlu0 %v2337
    %v2339 = vpop.xlane.xlu0 %2338
    %v2340 = vadd.f32 %v1003, %v1004
    %2341 = vadd.xlane.f32.xlu0 %v2340
    %v2342 = vpop.xlane.xlu0 %2341
    %v2343 = vadd.f32 %v1005, %v1006
    %2344 = vadd.xlane.f32.xlu0 %v2343
    %v2345 = vpop.xlane.xlu0 %2344
    %v2346 = vadd.f32 %v1007, %v1008
    %2347 = vadd.xlane.f32.xlu0 %v2346
    %v2348 = vpop.xlane.xlu0 %2347
    %v2349 = vadd.f32 %v1009, %v1010
    %2350 = vadd.xlane.f32.xlu0 %v2349
    %v2351 = vpop.xlane.xlu0 %2350
    %v2352 = vadd.f32 %v1011, %v1012
    %2353 = vadd.xlane.f32.xlu0 %v2352
    %v2354 = vpop.xlane.xlu0 %2353
    %v2355 = vadd.f32 %v1013, %v1014
    %2356 = vadd.xlane.f32.xlu0 %v2355
    %v2357 = vpop.xlane.xlu0 %2356
    %v2358 = vadd.f32 %v1015, %v1016
    %2359 = vadd.xlane.f32.xlu0 %v2358
    %v2360 = vpop.xlane.xlu0 %2359
    %v2361 = vadd.f32 %v1017, %v1018
    %2362 = vadd.xlane.f32.xlu0 %v2361
    %v2363 = vpop.xlane.xlu0 %2362
    %v2364 = vadd.f32 %v2236, %v2270
    %v2365 = vadd.f32 %v2237, %v2273
    %v2366 = vadd.f32 %v2238, %v2276
    %v2367 = vadd.f32 %v2239, %v2279
    %v2368 = vadd.f32 %v2240, %v2282
    %v2369 = vadd.f32 %v2241, %v2285
    %v2370 = vadd.f32 %v2242, %v2288
    %v2371 = vadd.f32 %v2243, %v2291
    %v2372 = vadd.f32 %v2244, %v2294
    %v2373 = vadd.f32 %v2245, %v2297
    %v2374 = vadd.f32 %v2246, %v2300
    %v2375 = vadd.f32 %v2247, %v2303
    %v2376 = vadd.f32 %v2248, %v2306
    %v2377 = vadd.f32 %v2249, %v2309
    %v2378 = vadd.f32 %v2250, %v2312
    %v2379 = vadd.f32 %v2251, %v2315
    %v2380 = vadd.f32 %v2252, %v2318
    %v2381 = vadd.f32 %v2253, %v2321
    %v2382 = vadd.f32 %v2254, %v2324
    %v2383 = vadd.f32 %v2255, %v2327
    %v2384 = vadd.f32 %v2256, %v2330
    %v2385 = vadd.f32 %v2257, %v2333
    %v2386 = vadd.f32 %v2258, %v2336
    %v2387 = vadd.f32 %v2259, %v2339
    %v2388 = vadd.f32 %v2260, %v2342
    %v2389 = vadd.f32 %v2261, %v2345
    %v2390 = vadd.f32 %v2262, %v2348
    %v2391 = vadd.f32 %v2263, %v2351
    %v2392 = vadd.f32 %v2264, %v2354
    %v2393 = vadd.f32 %v2265, %v2357
    %v2394 = vadd.f32 %v2266, %v2360
    %v2395 = vadd.f32 %v2267, %v2363
    %2396 = vst.msk [vmem:[#allocation5] sm:$0xff] %vm1947, %v2364
    %2397 = vst.msk [vmem:[#allocation5 + $0x8] sm:$0xff] %vm1947, %v2365
    %2398 = vst.msk [vmem:[#allocation5 + $0x10] sm:$0xff] %vm1947, %v2366
    %2399 = vst.msk [vmem:[#allocation5 + $0x18] sm:$0xff] %vm1947, %v2367
    %2400 = vst.msk [vmem:[#allocation5 + $0x20] sm:$0xff] %vm1947, %v2368
    %2401 = vst.msk [vmem:[#allocation5 + $0x28] sm:$0xff] %vm1947, %v2369
    %2402 = vst.msk [vmem:[#allocation5 + $0x30] sm:$0xff] %vm1947, %v2370
    %2403 = vst.msk [vmem:[#allocation5 + $0x38] sm:$0xff] %vm1947, %v2371
    %2404 = vst.msk [vmem:[#allocation5 + $0x40] sm:$0xff] %vm1947, %v2372
    %2405 = vst.msk [vmem:[#allocation5 + $0x48] sm:$0xff] %vm1947, %v2373
    %2406 = vst.msk [vmem:[#allocation5 + $0x50] sm:$0xff] %vm1947, %v2374
    %2407 = vst.msk [vmem:[#allocation5 + $0x58] sm:$0xff] %vm1947, %v2375
    %2408 = vst.msk [vmem:[#allocation5 + $0x60] sm:$0xff] %vm1947, %v2376
    %2409 = vst.msk [vmem:[#allocation5 + $0x68] sm:$0xff] %vm1947, %v2377
    %2410 = vst.msk [vmem:[#allocation5 + $0x70] sm:$0xff] %vm1947, %v2378
    %2411 = vst.msk [vmem:[#allocation5 + $0x78] sm:$0xff] %vm1947, %v2379
    %2412 = vst.msk [vmem:[#allocation5 + $0x80] sm:$0xff] %vm1947, %v2380
    %2413 = vst.msk [vmem:[#allocation5 + $0x88] sm:$0xff] %vm1947, %v2381
    %2414 = vst.msk [vmem:[#allocation5 + $0x90] sm:$0xff] %vm1947, %v2382
    %2415 = vst.msk [vmem:[#allocation5 + $0x98] sm:$0xff] %vm1947, %v2383
    %2416 = vst.msk [vmem:[#allocation5 + $0xa0] sm:$0xff] %vm1947, %v2384
    %2417 = vst.msk [vmem:[#allocation5 + $0xa8] sm:$0xff] %vm1947, %v2385
    %2418 = vst.msk [vmem:[#allocation5 + $0xb0] sm:$0xff] %vm1947, %v2386
    %2419 = vst.msk [vmem:[#allocation5 + $0xb8] sm:$0xff] %vm1947, %v2387
    %2420 = vst.msk [vmem:[#allocation5 + $0xc0] sm:$0xff] %vm1947, %v2388
    %2421 = vst.msk [vmem:[#allocation5 + $0xc8] sm:$0xff] %vm1947, %v2389
    %2422 = vst.msk [vmem:[#allocation5 + $0xd0] sm:$0xff] %vm1947, %v2390
    %2423 = vst.msk [vmem:[#allocation5 + $0xd8] sm:$0xff] %vm1947, %v2391
    %2424 = vst.msk [vmem:[#allocation5 + $0xe0] sm:$0xff] %vm1947, %v2392
    %2425 = vst.msk [vmem:[#allocation5 + $0xe8] sm:$0xff] %vm1947, %v2393
    %2426 = vst.msk [vmem:[#allocation5 + $0xf0] sm:$0xff] %vm1947, %v2394
    %2427 = vst.msk [vmem:[#allocation5 + $0xf8] sm:$0xff] %vm1947, %v2395
    %2428 = vst.msk [vmem:[#allocation2] sm:$0xff] %vm1947, %v1211
    %2429 = vst.msk [vmem:[#allocation2 + $0x8] sm:$0xff] %vm1947, %v1212
    %2430 = vst.msk [vmem:[#allocation2 + $0x10] sm:$0xff] %vm1947, %v1213
    %2431 = vst.msk [vmem:[#allocation2 + $0x18] sm:$0xff] %vm1947, %v1214
    %2432 = vst.msk [vmem:[#allocation2 + $0x20] sm:$0xff] %vm1947, %v1215
    %2433 = vst.msk [vmem:[#allocation2 + $0x28] sm:$0xff] %vm1947, %v1216
    %2434 = vst.msk [vmem:[#allocation2 + $0x30] sm:$0xff] %vm1947, %v1217
    %2435 = vst.msk [vmem:[#allocation2 + $0x38] sm:$0xff] %vm1947, %v1218
    %2436 = vst.msk [vmem:[#allocation2 + $0x40] sm:$0xff] %vm1947, %v1219
    %2437 = vst.msk [vmem:[#allocation2 + $0x48] sm:$0xff] %vm1947, %v1220
    %2438 = vst.msk [vmem:[#allocation2 + $0x50] sm:$0xff] %vm1947, %v1221
    %2439 = vst.msk [vmem:[#allocation2 + $0x58] sm:$0xff] %vm1947, %v1222
    %2440 = vst.msk [vmem:[#allocation2 + $0x60] sm:$0xff] %vm1947, %v1223
    %2441 = vst.msk [vmem:[#allocation2 + $0x68] sm:$0xff] %vm1947, %v1224
    %2442 = vst.msk [vmem:[#allocation2 + $0x70] sm:$0xff] %vm1947, %v1225
    %2443 = vst.msk [vmem:[#allocation2 + $0x78] sm:$0xff] %vm1947, %v1226
    %2444 = vst.msk [vmem:[#allocation2 + $0x80] sm:$0xff] %vm1947, %v1227
    %2445 = vst.msk [vmem:[#allocation2 + $0x88] sm:$0xff] %vm1947, %v1228
    %2446 = vst.msk [vmem:[#allocation2 + $0x90] sm:$0xff] %vm1947, %v1229
    %2447 = vst.msk [vmem:[#allocation2 + $0x98] sm:$0xff] %vm1947, %v1230
    %2448 = vst.msk [vmem:[#allocation2 + $0xa0] sm:$0xff] %vm1947, %v1231
    %2449 = vst.msk [vmem:[#allocation2 + $0xa8] sm:$0xff] %vm1947, %v1232
    %2450 = vst.msk [vmem:[#allocation2 + $0xb0] sm:$0xff] %vm1947, %v1233
    %2451 = vst.msk [vmem:[#allocation2 + $0xb8] sm:$0xff] %vm1947, %v1234
    %2452 = vst.msk [vmem:[#allocation2 + $0xc0] sm:$0xff] %vm1947, %v1235
    %2453 = vst.msk [vmem:[#allocation2 + $0xc8] sm:$0xff] %vm1947, %v1236
    %2454 = vst.msk [vmem:[#allocation2 + $0xd0] sm:$0xff] %vm1947, %v1237
    %2455 = vst.msk [vmem:[#allocation2 + $0xd8] sm:$0xff] %vm1947, %v1238
    %2456 = vst.msk [vmem:[#allocation2 + $0xe0] sm:$0xff] %vm1947, %v1239
    %2457 = vst.msk [vmem:[#allocation2 + $0xe8] sm:$0xff] %vm1947, %v1240
    %2458 = vst.msk [vmem:[#allocation2 + $0xf0] sm:$0xff] %vm1947, %v1241
    %2459 = vst.msk [vmem:[#allocation2 + $0xf8] sm:$0xff] %vm1947, %v1242
    // Predicated region
    $region26: #{tpu_custom_call.1} parent=1 // pred_check
      %p2460 = pneg %p33
    $region27: #{tpu_custom_call.1} parent=1 // pred_check_branch
      %2462 = sbr.rel (%p2460) target = $region29
    $region28: #{tpu_custom_call.1} parent=1 // pred_region
      %v2463 = vld [vmem:[#allocation5] sm:$0xff]
      %v2464 = vld [vmem:[#allocation5 + $0x8] sm:$0xff]
      %v2465 = vld [vmem:[#allocation5 + $0x10] sm:$0xff]
      %v2466 = vld [vmem:[#allocation5 + $0x18] sm:$0xff]
      %v2467 = vld [vmem:[#allocation5 + $0x20] sm:$0xff]
      %v2468 = vld [vmem:[#allocation5 + $0x28] sm:$0xff]
      %v2469 = vld [vmem:[#allocation5 + $0x30] sm:$0xff]
      %v2470 = vld [vmem:[#allocation5 + $0x38] sm:$0xff]
      %v2471 = vld [vmem:[#allocation5 + $0x40] sm:$0xff]
      %v2472 = vld [vmem:[#allocation5 + $0x48] sm:$0xff]
      %v2473 = vld [vmem:[#allocation5 + $0x50] sm:$0xff]
      %v2474 = vld [vmem:[#allocation5 + $0x58] sm:$0xff]
      %v2475 = vld [vmem:[#allocation5 + $0x60] sm:$0xff]
      %v2476 = vld [vmem:[#allocation5 + $0x68] sm:$0xff]
      %v2477 = vld [vmem:[#allocation5 + $0x70] sm:$0xff]
      %v2478 = vld [vmem:[#allocation5 + $0x78] sm:$0xff]
      %v2479 = vld [vmem:[#allocation5 + $0x80] sm:$0xff]
      %v2480 = vld [vmem:[#allocation5 + $0x88] sm:$0xff]
      %v2481 = vld [vmem:[#allocation5 + $0x90] sm:$0xff]
      %v2482 = vld [vmem:[#allocation5 + $0x98] sm:$0xff]
      %v2483 = vld [vmem:[#allocation5 + $0xa0] sm:$0xff]
      %v2484 = vld [vmem:[#allocation5 + $0xa8] sm:$0xff]
      %v2485 = vld [vmem:[#allocation5 + $0xb0] sm:$0xff]
      %v2486 = vld [vmem:[#allocation5 + $0xb8] sm:$0xff]
      %v2487 = vld [vmem:[#allocation5 + $0xc0] sm:$0xff]
      %v2488 = vld [vmem:[#allocation5 + $0xc8] sm:$0xff]
      %v2489 = vld [vmem:[#allocation5 + $0xd0] sm:$0xff]
      %v2490 = vld [vmem:[#allocation5 + $0xd8] sm:$0xff]
      %v2491 = vld [vmem:[#allocation5 + $0xe0] sm:$0xff]
      %v2492 = vld [vmem:[#allocation5 + $0xe8] sm:$0xff]
      %v2493 = vld [vmem:[#allocation5 + $0xf0] sm:$0xff]
      %v2494 = vld [vmem:[#allocation5 + $0xf8] sm:$0xff]
      %v2495 = vrcp.pop %v2463
      %v2496 = vrcp.pop %v2464
      %v2497 = vrcp.pop %v2465
      %v2498 = vrcp.pop %v2466
      %v2499 = vrcp.pop %v2467
      %v2500 = vrcp.pop %v2468
      %v2501 = vrcp.pop %v2469
      %v2502 = vrcp.pop %v2470
      %v2503 = vrcp.pop %v2471
      %v2504 = vrcp.pop %v2472
      %v2505 = vrcp.pop %v2473
      %v2506 = vrcp.pop %v2474
      %v2507 = vrcp.pop %v2475
      %v2508 = vrcp.pop %v2476
      %v2509 = vrcp.pop %v2477
      %v2510 = vrcp.pop %v2478
      %v2511 = vrcp.pop %v2479
      %v2512 = vrcp.pop %v2480
      %v2513 = vrcp.pop %v2481
      %v2514 = vrcp.pop %v2482
      %v2515 = vrcp.pop %v2483
      %v2516 = vrcp.pop %v2484
      %v2517 = vrcp.pop %v2485
      %v2518 = vrcp.pop %v2486
      %v2519 = vrcp.pop %v2487
      %v2520 = vrcp.pop %v2488
      %v2521 = vrcp.pop %v2489
      %v2522 = vrcp.pop %v2490
      %v2523 = vrcp.pop %v2491
      %v2524 = vrcp.pop %v2492
      %v2525 = vrcp.pop %v2493
      %v2526 = vrcp.pop %v2494
      %v2527 = vld [vmem:[#allocation4] sm:$0xff]
      %v2528 = vld [vmem:[#allocation4 + $0x8] sm:$0xff]
      %v2529 = vld [vmem:[#allocation4 + $0x10] sm:$0xff]
      %v2530 = vld [vmem:[#allocation4 + $0x18] sm:$0xff]
      %v2531 = vld [vmem:[#allocation4 + $0x20] sm:$0xff]
      %v2532 = vld [vmem:[#allocation4 + $0x28] sm:$0xff]
      %v2533 = vld [vmem:[#allocation4 + $0x30] sm:$0xff]
      %v2534 = vld [vmem:[#allocation4 + $0x38] sm:$0xff]
      %v2535 = vld [vmem:[#allocation4 + $0x40] sm:$0xff]
      %v2536 = vld [vmem:[#allocation4 + $0x48] sm:$0xff]
      %v2537 = vld [vmem:[#allocation4 + $0x50] sm:$0xff]
      %v2538 = vld [vmem:[#allocation4 + $0x58] sm:$0xff]
      %v2539 = vld [vmem:[#allocation4 + $0x60] sm:$0xff]
      %v2540 = vld [vmem:[#allocation4 + $0x68] sm:$0xff]
      %v2541 = vld [vmem:[#allocation4 + $0x70] sm:$0xff]
      %v2542 = vld [vmem:[#allocation4 + $0x78] sm:$0xff]
      %v2543 = vld [vmem:[#allocation4 + $0x80] sm:$0xff]
      %v2544 = vld [vmem:[#allocation4 + $0x88] sm:$0xff]
      %v2545 = vld [vmem:[#allocation4 + $0x90] sm:$0xff]
      %v2546 = vld [vmem:[#allocation4 + $0x98] sm:$0xff]
      %v2547 = vld [vmem:[#allocation4 + $0xa0] sm:$0xff]
      %v2548 = vld [vmem:[#allocation4 + $0xa8] sm:$0xff]
      %v2549 = vld [vmem:[#allocation4 + $0xb0] sm:$0xff]
      %v2550 = vld [vmem:[#allocation4 + $0xb8] sm:$0xff]
      %v2551 = vld [vmem:[#allocation4 + $0xc0] sm:$0xff]
      %v2552 = vld [vmem:[#allocation4 + $0xc8] sm:$0xff]
      %v2553 = vld [vmem:[#allocation4 + $0xd0] sm:$0xff]
      %v2554 = vld [vmem:[#allocation4 + $0xd8] sm:$0xff]
      %v2555 = vld [vmem:[#allocation4 + $0xe0] sm:$0xff]
      %v2556 = vld [vmem:[#allocation4 + $0xe8] sm:$0xff]
      %v2557 = vld [vmem:[#allocation4 + $0xf0] sm:$0xff]
      %v2558 = vld [vmem:[#allocation4 + $0xf8] sm:$0xff]
      %v2559 = vmul.f32 %v2527, %v2495
      %v2560 = vmul.f32 %v2528, %v2496
      %v2561 = vmul.f32 %v2529, %v2497
      %v2562 = vmul.f32 %v2530, %v2498
      %v2563 = vmul.f32 %v2531, %v2499
      %v2564 = vmul.f32 %v2532, %v2500
      %v2565 = vmul.f32 %v2533, %v2501
      %v2566 = vmul.f32 %v2534, %v2502
      %v2567 = vmul.f32 %v2535, %v2503
      %v2568 = vmul.f32 %v2536, %v2504
      %v2569 = vmul.f32 %v2537, %v2505
      %v2570 = vmul.f32 %v2538, %v2506
      %v2571 = vmul.f32 %v2539, %v2507
      %v2572 = vmul.f32 %v2540, %v2508
      %v2573 = vmul.f32 %v2541, %v2509
      %v2574 = vmul.f32 %v2542, %v2510
      %v2575 = vmul.f32 %v2543, %v2511
      %v2576 = vmul.f32 %v2544, %v2512
      %v2577 = vmul.f32 %v2545, %v2513
      %v2578 = vmul.f32 %v2546, %v2514
      %v2579 = vmul.f32 %v2547, %v2515
      %v2580 = vmul.f32 %v2548, %v2516
      %v2581 = vmul.f32 %v2549, %v2517
      %v2582 = vmul.f32 %v2550, %v2518
      %v2583 = vmul.f32 %v2551, %v2519
      %v2584 = vmul.f32 %v2552, %v2520
      %v2585 = vmul.f32 %v2553, %v2521
      %v2586 = vmul.f32 %v2554, %v2522
      %v2587 = vmul.f32 %v2555, %v2523
      %v2588 = vmul.f32 %v2556, %v2524
      %v2589 = vmul.f32 %v2557, %v2525
      %v2590 = vmul.f32 %v2558, %v2526
      %v2591 = vld [vmem:[#allocation2] sm:$0xff]
      %v2592 = vld [vmem:[#allocation2 + $0x8] sm:$0xff]
      %v2593 = vld [vmem:[#allocation2 + $0x10] sm:$0xff]
      %v2594 = vld [vmem:[#allocation2 + $0x18] sm:$0xff]
      %v2595 = vld [vmem:[#allocation2 + $0x20] sm:$0xff]
      %v2596 = vld [vmem:[#allocation2 + $0x28] sm:$0xff]
      %v2597 = vld [vmem:[#allocation2 + $0x30] sm:$0xff]
      %v2598 = vld [vmem:[#allocation2 + $0x38] sm:$0xff]
      %v2599 = vld [vmem:[#allocation2 + $0x40] sm:$0xff]
      %v2600 = vld [vmem:[#allocation2 + $0x48] sm:$0xff]
      %v2601 = vld [vmem:[#allocation2 + $0x50] sm:$0xff]
      %v2602 = vld [vmem:[#allocation2 + $0x58] sm:$0xff]
      %v2603 = vld [vmem:[#allocation2 + $0x60] sm:$0xff]
      %v2604 = vld [vmem:[#allocation2 + $0x68] sm:$0xff]
      %v2605 = vld [vmem:[#allocation2 + $0x70] sm:$0xff]
      %v2606 = vld [vmem:[#allocation2 + $0x78] sm:$0xff]
      %v2607 = vld [vmem:[#allocation2 + $0x80] sm:$0xff]
      %v2608 = vld [vmem:[#allocation2 + $0x88] sm:$0xff]
      %v2609 = vld [vmem:[#allocation2 + $0x90] sm:$0xff]
      %v2610 = vld [vmem:[#allocation2 + $0x98] sm:$0xff]
      %v2611 = vld [vmem:[#allocation2 + $0xa0] sm:$0xff]
      %v2612 = vld [vmem:[#allocation2 + $0xa8] sm:$0xff]
      %v2613 = vld [vmem:[#allocation2 + $0xb0] sm:$0xff]
      %v2614 = vld [vmem:[#allocation2 + $0xb8] sm:$0xff]
      %v2615 = vld [vmem:[#allocation2 + $0xc0] sm:$0xff]
      %v2616 = vld [vmem:[#allocation2 + $0xc8] sm:$0xff]
      %v2617 = vld [vmem:[#allocation2 + $0xd0] sm:$0xff]
      %v2618 = vld [vmem:[#allocation2 + $0xd8] sm:$0xff]
      %v2619 = vld [vmem:[#allocation2 + $0xe0] sm:$0xff]
      %v2620 = vld [vmem:[#allocation2 + $0xe8] sm:$0xff]
      %v2621 = vld [vmem:[#allocation2 + $0xf0] sm:$0xff]
      %v2622 = vld [vmem:[#allocation2 + $0xf8] sm:$0xff]
      %v2623 = vsub.f32 %v2559, %v2591
      %v2624 = vsub.f32 %v2560, %v2592
      %v2625 = vsub.f32 %v2561, %v2593
      %v2626 = vsub.f32 %v2562, %v2594
      %v2627 = vsub.f32 %v2563, %v2595
      %v2628 = vsub.f32 %v2564, %v2596
      %v2629 = vsub.f32 %v2565, %v2597
      %v2630 = vsub.f32 %v2566, %v2598
      %v2631 = vsub.f32 %v2567, %v2599
      %v2632 = vsub.f32 %v2568, %v2600
      %v2633 = vsub.f32 %v2569, %v2601
      %v2634 = vsub.f32 %v2570, %v2602
      %v2635 = vsub.f32 %v2571, %v2603
      %v2636 = vsub.f32 %v2572, %v2604
      %v2637 = vsub.f32 %v2573, %v2605
      %v2638 = vsub.f32 %v2574, %v2606
      %v2639 = vsub.f32 %v2575, %v2607
      %v2640 = vsub.f32 %v2576, %v2608
      %v2641 = vsub.f32 %v2577, %v2609
      %v2642 = vsub.f32 %v2578, %v2610
      %v2643 = vsub.f32 %v2579, %v2611
      %v2644 = vsub.f32 %v2580, %v2612
      %v2645 = vsub.f32 %v2581, %v2613
      %v2646 = vsub.f32 %v2582, %v2614
      %v2647 = vsub.f32 %v2583, %v2615
      %v2648 = vsub.f32 %v2584, %v2616
      %v2649 = vsub.f32 %v2585, %v2617
      %v2650 = vsub.f32 %v2586, %v2618
      %v2651 = vsub.f32 %v2587, %v2619
      %v2652 = vsub.f32 %v2588, %v2620
      %v2653 = vsub.f32 %v2589, %v2621
      %v2654 = vsub.f32 %v2590, %v2622
      %v2655 = vld [vmem:[#allocation3] sm:$0xff]
      %v2656 = vld [vmem:[#allocation3 + $0x8] sm:$0xff]
      %v2657 = vld [vmem:[#allocation3 + $0x10] sm:$0xff]
      %v2658 = vld [vmem:[#allocation3 + $0x18] sm:$0xff]
      %v2659 = vld [vmem:[#allocation3 + $0x20] sm:$0xff]
      %v2660 = vld [vmem:[#allocation3 + $0x28] sm:$0xff]
      %v2661 = vld [vmem:[#allocation3 + $0x30] sm:$0xff]
      %v2662 = vld [vmem:[#allocation3 + $0x38] sm:$0xff]
      %v2663 = vld [vmem:[#allocation3 + $0x40] sm:$0xff]
      %v2664 = vld [vmem:[#allocation3 + $0x48] sm:$0xff]
      %v2665 = vld [vmem:[#allocation3 + $0x50] sm:$0xff]
      %v2666 = vld [vmem:[#allocation3 + $0x58] sm:$0xff]
      %v2667 = vld [vmem:[#allocation3 + $0x60] sm:$0xff]
      %v2668 = vld [vmem:[#allocation3 + $0x68] sm:$0xff]
      %v2669 = vld [vmem:[#allocation3 + $0x70] sm:$0xff]
      %v2670 = vld [vmem:[#allocation3 + $0x78] sm:$0xff]
      %v2671 = vld [vmem:[#allocation3 + $0x80] sm:$0xff]
      %v2672 = vld [vmem:[#allocation3 + $0x88] sm:$0xff]
      %v2673 = vld [vmem:[#allocation3 + $0x90] sm:$0xff]
      %v2674 = vld [vmem:[#allocation3 + $0x98] sm:$0xff]
      %v2675 = vld [vmem:[#allocation3 + $0xa0] sm:$0xff]
      %v2676 = vld [vmem:[#allocation3 + $0xa8] sm:$0xff]
      %v2677 = vld [vmem:[#allocation3 + $0xb0] sm:$0xff]
      %v2678 = vld [vmem:[#allocation3 + $0xb8] sm:$0xff]
      %v2679 = vld [vmem:[#allocation3 + $0xc0] sm:$0xff]
      %v2680 = vld [vmem:[#allocation3 + $0xc8] sm:$0xff]
      %v2681 = vld [vmem:[#allocation3 + $0xd0] sm:$0xff]
      %v2682 = vld [vmem:[#allocation3 + $0xd8] sm:$0xff]
      %v2683 = vld [vmem:[#allocation3 + $0xe0] sm:$0xff]
      %v2684 = vld [vmem:[#allocation3 + $0xe8] sm:$0xff]
      %v2685 = vld [vmem:[#allocation3 + $0xf0] sm:$0xff]
      %v2686 = vld [vmem:[#allocation3 + $0xf8] sm:$0xff]
      %v2687 = vlog2.pop %v2655
      %v2688 = vmul.f32 %v2687, 0.6931472
      %v2689 = vlog2.pop %v2656
      %v2690 = vmul.f32 %v2689, 0.6931472
      %v2691 = vlog2.pop %v2657
      %v2692 = vmul.f32 %v2691, 0.6931472
      %v2693 = vlog2.pop %v2658
      %v2694 = vmul.f32 %v2693, 0.6931472
      %v2695 = vlog2.pop %v2659
      %v2696 = vmul.f32 %v2695, 0.6931472
      %v2697 = vlog2.pop %v2660
      %v2698 = vmul.f32 %v2697, 0.6931472
      %v2699 = vlog2.pop %v2661
      %v2700 = vmul.f32 %v2699, 0.6931472
      %v2701 = vlog2.pop %v2662
      %v2702 = vmul.f32 %v2701, 0.6931472
      %v2703 = vlog2.pop %v2663
      %v2704 = vmul.f32 %v2703, 0.6931472
      %v2705 = vlog2.pop %v2664
      %v2706 = vmul.f32 %v2705, 0.6931472
      %v2707 = vlog2.pop %v2665
      %v2708 = vmul.f32 %v2707, 0.6931472
      %v2709 = vlog2.pop %v2666
      %v2710 = vmul.f32 %v2709, 0.6931472
      %v2711 = vlog2.pop %v2667
      %v2712 = vmul.f32 %v2711, 0.6931472
      %v2713 = vlog2.pop %v2668
      %v2714 = vmul.f32 %v2713, 0.6931472
      %v2715 = vlog2.pop %v2669
      %v2716 = vmul.f32 %v2715, 0.6931472
      %v2717 = vlog2.pop %v2670
      %v2718 = vmul.f32 %v2717, 0.6931472
      %v2719 = vlog2.pop %v2671
      %v2720 = vmul.f32 %v2719, 0.6931472
      %v2721 = vlog2.pop %v2672
      %v2722 = vmul.f32 %v2721, 0.6931472
      %v2723 = vlog2.pop %v2673
      %v2724 = vmul.f32 %v2723, 0.6931472
      %v2725 = vlog2.pop %v2674
      %v2726 = vmul.f32 %v2725, 0.6931472
      %v2727 = vlog2.pop %v2675
      %v2728 = vmul.f32 %v2727, 0.6931472
      %v2729 = vlog2.pop %v2676
      %v2730 = vmul.f32 %v2729, 0.6931472
      %v2731 = vlog2.pop %v2677
      %v2732 = vmul.f32 %v2731, 0.6931472
      %v2733 = vlog2.pop %v2678
      %v2734 = vmul.f32 %v2733, 0.6931472
      %v2735 = vlog2.pop %v2679
      %v2736 = vmul.f32 %v2735, 0.6931472
      %v2737 = vlog2.pop %v2680
      %v2738 = vmul.f32 %v2737, 0.6931472
      %v2739 = vlog2.pop %v2681
      %v2740 = vmul.f32 %v2739, 0.6931472
      %v2741 = vlog2.pop %v2682
      %v2742 = vmul.f32 %v2741, 0.6931472
      %v2743 = vlog2.pop %v2683
      %v2744 = vmul.f32 %v2743, 0.6931472
      %v2745 = vlog2.pop %v2684
      %v2746 = vmul.f32 %v2745, 0.6931472
      %v2747 = vlog2.pop %v2685
      %v2748 = vmul.f32 %v2747, 0.6931472
      %v2749 = vlog2.pop %v2686
      %v2750 = vmul.f32 %v2749, 0.6931472
      %v2751 = vsub.f32 %v2623, %v2688
      %v2752 = vsub.f32 %v2624, %v2690
      %v2753 = vsub.f32 %v2625, %v2692
      %v2754 = vsub.f32 %v2626, %v2694
      %v2755 = vsub.f32 %v2627, %v2696
      %v2756 = vsub.f32 %v2628, %v2698
      %v2757 = vsub.f32 %v2629, %v2700
      %v2758 = vsub.f32 %v2630, %v2702
      %v2759 = vsub.f32 %v2631, %v2704
      %v2760 = vsub.f32 %v2632, %v2706
      %v2761 = vsub.f32 %v2633, %v2708
      %v2762 = vsub.f32 %v2634, %v2710
      %v2763 = vsub.f32 %v2635, %v2712
      %v2764 = vsub.f32 %v2636, %v2714
      %v2765 = vsub.f32 %v2637, %v2716
      %v2766 = vsub.f32 %v2638, %v2718
      %v2767 = vsub.f32 %v2639, %v2720
      %v2768 = vsub.f32 %v2640, %v2722
      %v2769 = vsub.f32 %v2641, %v2724
      %v2770 = vsub.f32 %v2642, %v2726
      %v2771 = vsub.f32 %v2643, %v2728
      %v2772 = vsub.f32 %v2644, %v2730
      %v2773 = vsub.f32 %v2645, %v2732
      %v2774 = vsub.f32 %v2646, %v2734
      %v2775 = vsub.f32 %v2647, %v2736
      %v2776 = vsub.f32 %v2648, %v2738
      %v2777 = vsub.f32 %v2649, %v2740
      %v2778 = vsub.f32 %v2650, %v2742
      %v2779 = vsub.f32 %v2651, %v2744
      %v2780 = vsub.f32 %v2652, %v2746
      %v2781 = vsub.f32 %v2653, %v2748
      %v2782 = vsub.f32 %v2654, %v2750
      %v2783 = vmul.f32 %v2751, -1.0
      %v2784 = vmul.f32 %v2752, -1.0
      %v2785 = vmul.f32 %v2753, -1.0
      %v2786 = vmul.f32 %v2754, -1.0
      %v2787 = vmul.f32 %v2755, -1.0
      %v2788 = vmul.f32 %v2756, -1.0
      %v2789 = vmul.f32 %v2757, -1.0
      %v2790 = vmul.f32 %v2758, -1.0
      %v2791 = vmul.f32 %v2759, -1.0
      %v2792 = vmul.f32 %v2760, -1.0
      %v2793 = vmul.f32 %v2761, -1.0
      %v2794 = vmul.f32 %v2762, -1.0
      %v2795 = vmul.f32 %v2763, -1.0
      %v2796 = vmul.f32 %v2764, -1.0
      %v2797 = vmul.f32 %v2765, -1.0
      %v2798 = vmul.f32 %v2766, -1.0
      %v2799 = vmul.f32 %v2767, -1.0
      %v2800 = vmul.f32 %v2768, -1.0
      %v2801 = vmul.f32 %v2769, -1.0
      %v2802 = vmul.f32 %v2770, -1.0
      %v2803 = vmul.f32 %v2771, -1.0
      %v2804 = vmul.f32 %v2772, -1.0
      %v2805 = vmul.f32 %v2773, -1.0
      %v2806 = vmul.f32 %v2774, -1.0
      %v2807 = vmul.f32 %v2775, -1.0
      %v2808 = vmul.f32 %v2776, -1.0
      %v2809 = vmul.f32 %v2777, -1.0
      %v2810 = vmul.f32 %v2778, -1.0
      %v2811 = vmul.f32 %v2779, -1.0
      %v2812 = vmul.f32 %v2780, -1.0
      %v2813 = vmul.f32 %v2781, -1.0
      %v2814 = vmul.f32 %v2782, -1.0
      %2815 = vst.msk [vmem:[%s4] sm:$0xff] %vm1947, %v2783
      %2816 = vst.msk [vmem:[%s4 + $0x8] sm:$0xff] %vm1947, %v2784
      %2817 = vst.msk [vmem:[%s4 + $0x10] sm:$0xff] %vm1947, %v2785
      %2818 = vst.msk [vmem:[%s4 + $0x18] sm:$0xff] %vm1947, %v2786
      %2819 = vst.msk [vmem:[%s4 + $0x20] sm:$0xff] %vm1947, %v2787
      %2820 = vst.msk [vmem:[%s4 + $0x28] sm:$0xff] %vm1947, %v2788
      %2821 = vst.msk [vmem:[%s4 + $0x30] sm:$0xff] %vm1947, %v2789
      %2822 = vst.msk [vmem:[%s4 + $0x38] sm:$0xff] %vm1947, %v2790
      %2823 = vst.msk [vmem:[%s4 + $0x40] sm:$0xff] %vm1947, %v2791
      %2824 = vst.msk [vmem:[%s4 + $0x48] sm:$0xff] %vm1947, %v2792
      %2825 = vst.msk [vmem:[%s4 + $0x50] sm:$0xff] %vm1947, %v2793
      %2826 = vst.msk [vmem:[%s4 + $0x58] sm:$0xff] %vm1947, %v2794
      %2827 = vst.msk [vmem:[%s4 + $0x60] sm:$0xff] %vm1947, %v2795
      %2828 = vst.msk [vmem:[%s4 + $0x68] sm:$0xff] %vm1947, %v2796
      %2829 = vst.msk [vmem:[%s4 + $0x70] sm:$0xff] %vm1947, %v2797
      %2830 = vst.msk [vmem:[%s4 + $0x78] sm:$0xff] %vm1947, %v2798
      %2831 = vst.msk [vmem:[%s4 + $0x80] sm:$0xff] %vm1947, %v2799
      %2832 = vst.msk [vmem:[%s4 + $0x88] sm:$0xff] %vm1947, %v2800
      %2833 = vst.msk [vmem:[%s4 + $0x90] sm:$0xff] %vm1947, %v2801
      %2834 = vst.msk [vmem:[%s4 + $0x98] sm:$0xff] %vm1947, %v2802
      %2835 = vst.msk [vmem:[%s4 + $0xa0] sm:$0xff] %vm1947, %v2803
      %2836 = vst.msk [vmem:[%s4 + $0xa8] sm:$0xff] %vm1947, %v2804
      %2837 = vst.msk [vmem:[%s4 + $0xb0] sm:$0xff] %vm1947, %v2805
      %2838 = vst.msk [vmem:[%s4 + $0xb8] sm:$0xff] %vm1947, %v2806
      %2839 = vst.msk [vmem:[%s4 + $0xc0] sm:$0xff] %vm1947, %v2807
      %2840 = vst.msk [vmem:[%s4 + $0xc8] sm:$0xff] %vm1947, %v2808
      %2841 = vst.msk [vmem:[%s4 + $0xd0] sm:$0xff] %vm1947, %v2809
      %2842 = vst.msk [vmem:[%s4 + $0xd8] sm:$0xff] %vm1947, %v2810
      %2843 = vst.msk [vmem:[%s4 + $0xe0] sm:$0xff] %vm1947, %v2811
      %2844 = vst.msk [vmem:[%s4 + $0xe8] sm:$0xff] %vm1947, %v2812
      %2845 = vst.msk [vmem:[%s4 + $0xf0] sm:$0xff] %vm1947, %v2813
      %2846 = vst.msk [vmem:[%s4 + $0xf8] sm:$0xff] %vm1947, %v2814
    $region29: #{tpu_custom_call.1} parent=1 // pred_fallthru
      _
    // Predicated region
    $region30: #{tpu_custom_call.1} parent=1 // pred_check
      _
    $region31: #{tpu_custom_call.1} parent=1 // pred_check_branch
      %2848 = sbr.rel (0) target = $region33
    $region32: #{tpu_custom_call.1} parent=1 // pred_region
      _
    $region33: #{tpu_custom_call.1} parent=1 // pred_fallthru
      _
    // Predicated region
    $region34: #{tpu_custom_call.1} parent=1 // pred_check
      _
    $region35: #{tpu_custom_call.1} parent=1 // pred_check_branch
      %2850 = sbr.rel (0) target = $region37
    $region36: #{tpu_custom_call.1} parent=1 // pred_region
      _
    $region37: #{tpu_custom_call.1} parent=1 // pred_fallthru
      _
    %2851 = vsyncpa [#allocation7], 1

</llo_original>
